<compile_context>
chip_gen: v7x
topology: tpu7x:2x2x1
jax: 0.10.0
libtpu: 0.0.40
codegen_flags: <defaults>
</compile_context>

<pallas_src>
import functools

import jax
import jax.numpy as jnp
from jax import lax
from jax.experimental import pallas as pl
from jax.experimental.pallas import tpu as pltpu  # noqa: F401


def _layernorm(x, gamma, beta, eps=1e-5):
    mu = jnp.mean(x, axis=-1, keepdims=True)
    var = jnp.mean(jnp.square(x - mu), axis=-1, keepdims=True)
    return (x - mu) * lax.rsqrt(var + eps) * gamma + beta


def _itrm_kernel(nhead, num_layers, batch,
                 feat_ref, waff_ref, wqkv_ref, wo_ref, w1_ref, w2_ref,
                 vec_ref, out_ref):
    M = feat_ref.shape[0]                 # S * B, rows ordered (s, b)
    D = wo_ref.shape[-1]                  # d_model
    dff = w1_ref.shape[-1]
    dh = D // nhead

    # b_aff lives in row 8 of layer-0's packed vector slab.
    v0 = vec_ref[0]                       # (9, Wmax)
    b_aff = v0[8:9, :D]

    # affine_matrix: Linear(input_dim -> d_model) on all S*B rows at once.
    x = jnp.dot(feat_ref[...], waff_ref[...],
                preferred_element_type=jnp.float32) + b_aff

    # Block-diagonal batch mask as an additive bias (built ONCE).  Rows are
    # (s, b)-interleaved, so batch id = index % B.
    ri = lax.broadcasted_iota(jnp.int32, (M, M), 0)
    ci = lax.broadcasted_iota(jnp.int32, (M, M), 1)
    mask_bias = jnp.where((ri % batch) == (ci % batch),
                          jnp.float32(0.0), jnp.float32(-1e30))

    for l in range(num_layers):
        vl = vec_ref[l]                   # (9, Wmax) packed per-layer vectors
        bqkv = vl[0:1, :3 * D]            # q-part already pre-scaled by 1/sqrt(dh)
        bo = vl[1:2, :D]
        b1 = vl[2:3, :dff]
        b2 = vl[3:4, :D]
        g1 = vl[4:5, :D]
        be1 = vl[5:6, :D]
        g2 = vl[6:7, :D]
        be2 = vl[7:8, :D]

        # ---- multi-head self-attention (fused QKV projection) ----
        qkv = jnp.dot(x, wqkv_ref[l],
                      preferred_element_type=jnp.float32) + bqkv      # (M, 3D)
        wo_l = wo_ref[l]                                              # (D, D)

        attn = jnp.zeros((M, D), jnp.float32)
        for h in range(nhead):
            qh = qkv[:, h * dh:(h + 1) * dh]
            kh = qkv[:, D + h * dh:D + (h + 1) * dh]
            vh = qkv[:, 2 * D + h * dh:2 * D + (h + 1) * dh]
            s = lax.dot_general(qh, kh, (((1,), (1,)), ((), ())),
                                preferred_element_type=jnp.float32)   # (M, M)
            s = s + mask_bias
            s = s - jnp.max(s, axis=-1, keepdims=True)
            p = jnp.exp(s)
            p = p * pl.reciprocal(jnp.sum(p, axis=-1, keepdims=True), approx=True)
            ctx = jnp.dot(p, vh, preferred_element_type=jnp.float32)  # (M, dh)
            # output projection folded per head (no lane-dim concat of heads)
            attn = attn + jnp.dot(ctx, wo_l[h * dh:(h + 1) * dh, :],
                                  preferred_element_type=jnp.float32)
        x = _layernorm(x + attn + bo, g1, be1)

        # ---- feed-forward ----
        hdn = jnp.maximum(
            jnp.dot(x, w1_ref[l], preferred_element_type=jnp.float32) + b1, 0.0)
        ff = jnp.dot(hdn, w2_ref[l], preferred_element_type=jnp.float32) + b2
        x = _layernorm(x + ff, g2, be2)

    out_ref[...] = x.astype(out_ref.dtype)


def pack_params(p, *, nhead=4):
    """Pack the natural parameter dict into the kernel's 6 param arrays."""
    L, _, D = p["wo"].shape
    dff = p["w1"].shape[-1]
    dh = D // nhead
    scale = 1.0 / float(dh) ** 0.5
    W = max(3 * D, dff, D)

    def pad_row(v):  # (L, 1, w) -> (L, 1, W)
        return jnp.pad(v, ((0, 0), (0, 0), (0, W - v.shape[-1])))

    # Fold the attention scale into q's weight & bias (host side, free).
    wqkv = jnp.concatenate([p["wq"] * scale, p["wk"], p["wv"]], axis=-1)  # (L,D,3D)
    bqkv = jnp.concatenate([p["bq"] * scale, p["bk"], p["bv"]], axis=-1)  # (L,1,3D)

    # b_aff rides in row 8 of layer 0's slab (other layers zero).
    b_aff_rows = jnp.zeros((L, 1, D), jnp.float32).at[0].set(p["b_aff"])

    vec_rows = [bqkv, p["bo"], p["b1"], p["b2"],
                p["g1"], p["be1"], p["g2"], p["be2"], b_aff_rows]
    vecs = jnp.concatenate([pad_row(v) for v in vec_rows], axis=1)        # (L,9,W)
    return dict(w_aff=p["w_aff"], wqkv=wqkv, wo=p["wo"],
                w1=p["w1"], w2=p["w2"], vecs=vecs)


def internal_temporal_relation(feature, packed, *, nhead=4, num_layers=2):
    """feature: (S, B, input_dim) f32 -> (S, B, d_model) f32."""
    S, B, Din = feature.shape
    D = packed["w_aff"].shape[1]
    feat2d = feature.reshape(S * B, Din)          # free reshape, no transpose

    # TODO(synk): on v7x (2 TensorCores/chip) shard the batch across cores via
    # pl.core_map; single-core path kept for portability to v5e/v6e.
    kernel = functools.partial(_itrm_kernel, nhead, num_layers, B)
    out2d = pl.pallas_call(
        kernel,
        out_shape=jax.ShapeDtypeStruct((S * B, D), jnp.float32),
    )(feat2d, packed["w_aff"], packed["wqkv"], packed["wo"],
      packed["w1"], packed["w2"], packed["vecs"])
    return out2d.reshape(S, B, D)                 # free reshape back


def reference_forward(feature, params, *, nhead=4, num_layers=2):
    """Pure-JAX reference (same math, vmapped over batch)."""
    D = params["w_aff"].shape[1]
    dh = D // nhead
    scale = 1.0 / (dh ** 0.5)

    def single(x):                                # x: (S, Din)
        x = x @ params["w_aff"] + params["b_aff"]
        for l in range(num_layers):
            q = x @ params["wq"][l] + params["bq"][l]
            k = x @ params["wk"][l] + params["bk"][l]
            v = x @ params["wv"][l] + params["bv"][l]
            heads = []
            for h in range(nhead):
                qh, kh, vh = (t[:, h * dh:(h + 1) * dh] for t in (q, k, v))
                s = (qh @ kh.T) * scale
                s = s - jnp.max(s, axis=-1, keepdims=True)
                p = jnp.exp(s)
                p = p / jnp.sum(p, axis=-1, keepdims=True)
                heads.append(p @ vh)
            attn = jnp.concatenate(heads, axis=-1) @ params["wo"][l] + params["bo"][l]
            x = _layernorm(x + attn, params["g1"][l], params["be1"][l])
            ff = jnp.maximum(x @ params["w1"][l] + params["b1"][l], 0.0)
            ff = ff @ params["w2"][l] + params["b2"][l]
            x = _layernorm(x + ff, params["g2"][l], params["be2"][l])
        return x

    xb = jnp.transpose(feature, (1, 0, 2))
    yb = jax.vmap(single)(xb)
    return jnp.transpose(yb, (1, 0, 2))


def make_params(key, input_dim, d_model, dff, num_layers=2):
    ks = jax.random.split(key, 20)
    n = lambda k, shape, s=0.05: (s * jax.random.normal(k, shape)).astype(jnp.float32)
    L = num_layers
    return {
        "w_aff": n(ks[0], (input_dim, d_model)),
        "b_aff": n(ks[1], (1, d_model)),
        "wq": n(ks[2], (L, d_model, d_model)),
        "wk": n(ks[3], (L, d_model, d_model)),
        "wv": n(ks[4], (L, d_model, d_model)),
        "wo": n(ks[5], (L, d_model, d_model)),
        "bq": n(ks[6], (L, 1, d_model)),
        "bk": n(ks[7], (L, 1, d_model)),
        "bv": n(ks[8], (L, 1, d_model)),
        "bo": n(ks[9], (L, 1, d_model)),
        "w1": n(ks[10], (L, d_model, dff)),
        "b1": n(ks[11], (L, 1, dff)),
        "w2": n(ks[12], (L, dff, d_model)),
        "b2": n(ks[13], (L, 1, d_model)),
        "g1": (1.0 + 0.1 * jax.random.normal(ks[14], (L, 1, d_model))).astype(jnp.float32),
        "be1": n(ks[15], (L, 1, d_model)),
        "g2": (1.0 + 0.1 * jax.random.normal(ks[16], (L, 1, d_model))).astype(jnp.float32),
        "be2": n(ks[17], (L, 1, d_model)),
    }


if __name__ == "__main__":
    S, B, INPUT_DIM, D_MODEL, DFF = 8, 2, 64, 32, 64   # small, consistent with module
    key = jax.random.PRNGKey(0)
    k_feat, k_par = jax.random.split(key)
    feature = jax.random.normal(k_feat, (S, B, INPUT_DIM), dtype=jnp.float32)
    params = make_params(k_par, INPUT_DIM, D_MODEL, DFF)
    packed = jax.tree_util.tree_map(jax.block_until_ready, pack_params(params))

    run = jax.jit(internal_temporal_relation)
    out = jax.block_until_ready(run(feature, packed))

    ref = jax.block_until_ready(reference_forward(feature, params))
    assert out.shape == (S, B, D_MODEL), out.shape
    assert jnp.allclose(out, ref, atol=2e-3, rtol=2e-3), "mismatch vs reference"
    print("KERNEL_OK")
</pallas_src>

<mosaic_0001>
module attributes {stable_mosaic.version = 11 : i64} {
  func.func @_itrm_kernel(%arg0: memref<16x64xf32, #tpu.memory_space<vmem>>, %arg1: memref<64x32xf32, #tpu.memory_space<vmem>>, %arg2: memref<2x32x96xf32, #tpu.memory_space<vmem>>, %arg3: memref<2x32x32xf32, #tpu.memory_space<vmem>>, %arg4: memref<2x32x64xf32, #tpu.memory_space<vmem>>, %arg5: memref<2x64x32xf32, #tpu.memory_space<vmem>>, %arg6: memref<2x9x96xf32, #tpu.memory_space<vmem>>, %arg7: memref<16x32xf32, #tpu.memory_space<vmem>>) attributes {dimension_semantics = [], scalar_prefetch = 0 : i64, scratch_operands = 0 : i64, tpu.core_type = #tpu.core_type<tc>} {
    %c0 = arith.constant 0 : index
    %c0_0 = arith.constant 0 : index
    %c0_1 = arith.constant 0 : index
    %0 = vector.load %arg6[%c0, %c0_0, %c0_1] : memref<2x9x96xf32, #tpu.memory_space<vmem>>, vector<1x9x96xf32>
    %1 = vector.shape_cast %0 : vector<1x9x96xf32> to vector<9x96xf32>
    %2 = vector.extract_strided_slice %1 {offsets = [8, 0], sizes = [1, 32], strides = [1, 1]} : vector<9x96xf32> to vector<1x32xf32>
    %c0_2 = arith.constant 0 : index
    %c0_3 = arith.constant 0 : index
    %3 = vector.load %arg0[%c0_2, %c0_3] : memref<16x64xf32, #tpu.memory_space<vmem>>, vector<16x64xf32>
    %c0_4 = arith.constant 0 : index
    %c0_5 = arith.constant 0 : index
    %4 = vector.load %arg1[%c0_4, %c0_5] : memref<64x32xf32, #tpu.memory_space<vmem>>, vector<64x32xf32>
    %cst = arith.constant dense<0.000000e+00> : vector<16x32xf32>
    %5 = tpu.matmul %3, %4, %cst {dimension_numbers = #tpu.dot_dimension_numbers<[1], [0], [0], [1], [0, 0, 1, 1], [], []>} : vector<16x64xf32>, vector<64x32xf32>, vector<16x32xf32> -> vector<16x32xf32>
    %6 = vector.broadcast %2 : vector<1x32xf32> to vector<16x32xf32>
    %7 = arith.addf %5, %6 : vector<16x32xf32>
    %8 = tpu.iota {dimensions = array<i32: 0>} : vector<16x16xi32>
    %9 = tpu.iota {dimensions = array<i32: 1>} : vector<16x16xi32>
    %c2_i32 = arith.constant 2 : i32
    %c0_i32 = arith.constant 0 : i32
    %10 = arith.cmpi eq, %c2_i32, %c0_i32 : i32
    %c1_i32 = arith.constant 1 : i32
    %11 = arith.select %10, %c1_i32, %c2_i32 : i32
    %12 = vector.broadcast %11 : i32 to vector<16x16xi32>
    %13 = arith.remsi %8, %12 : vector<16x16xi32>
    %c0_i32_6 = arith.constant 0 : i32
    %14 = vector.broadcast %c0_i32_6 : i32 to vector<16x16xi32>
    %15 = arith.cmpi ne, %13, %14 : vector<16x16xi32>
    %c0_i32_7 = arith.constant 0 : i32
    %16 = vector.broadcast %c0_i32_7 : i32 to vector<16x16xi32>
    %17 = arith.cmpi slt, %13, %16 : vector<16x16xi32>
    %c0_i32_8 = arith.constant 0 : i32
    %18 = arith.cmpi slt, %11, %c0_i32_8 : i32
    %19 = vector.broadcast %18 : i1 to vector<16x16xi1>
    %20 = vector.broadcast %19 : vector<16x16xi1> to vector<16x16xi1>
    %21 = arith.xori %17, %20 : vector<16x16xi1>
    %22 = arith.andi %21, %15 : vector<16x16xi1>
    %23 = vector.broadcast %11 : i32 to vector<16x16xi32>
    %24 = arith.addi %13, %23 : vector<16x16xi32>
    %25 = arith.select %22, %24, %13 : vector<16x16xi1>, vector<16x16xi32>
    %c2_i32_9 = arith.constant 2 : i32
    %c0_i32_10 = arith.constant 0 : i32
    %26 = arith.cmpi eq, %c2_i32_9, %c0_i32_10 : i32
    %c1_i32_11 = arith.constant 1 : i32
    %27 = arith.select %26, %c1_i32_11, %c2_i32_9 : i32
    %28 = vector.broadcast %27 : i32 to vector<16x16xi32>
    %29 = arith.remsi %9, %28 : vector<16x16xi32>
    %c0_i32_12 = arith.constant 0 : i32
    %30 = vector.broadcast %c0_i32_12 : i32 to vector<16x16xi32>
    %31 = arith.cmpi ne, %29, %30 : vector<16x16xi32>
    %c0_i32_13 = arith.constant 0 : i32
    %32 = vector.broadcast %c0_i32_13 : i32 to vector<16x16xi32>
    %33 = arith.cmpi slt, %29, %32 : vector<16x16xi32>
    %c0_i32_14 = arith.constant 0 : i32
    %34 = arith.cmpi slt, %27, %c0_i32_14 : i32
    %35 = vector.broadcast %34 : i1 to vector<16x16xi1>
    %36 = vector.broadcast %35 : vector<16x16xi1> to vector<16x16xi1>
    %37 = arith.xori %33, %36 : vector<16x16xi1>
    %38 = arith.andi %37, %31 : vector<16x16xi1>
    %39 = vector.broadcast %27 : i32 to vector<16x16xi32>
    %40 = arith.addi %29, %39 : vector<16x16xi32>
    %41 = arith.select %38, %40, %29 : vector<16x16xi1>, vector<16x16xi32>
    %42 = arith.cmpi eq, %25, %41 : vector<16x16xi32>
    %cst_15 = arith.constant 0.000000e+00 : f32
    %cst_16 = arith.constant -1.000000e+30 : f32
    %43 = vector.broadcast %cst_15 : f32 to vector<16x16xf32>
    %44 = vector.broadcast %cst_16 : f32 to vector<16x16xf32>
    %45 = arith.select %42, %43, %44 : vector<16x16xi1>, vector<16x16xf32>
    %c0_17 = arith.constant 0 : index
    %c0_18 = arith.constant 0 : index
    %c0_19 = arith.constant 0 : index
    %46 = vector.load %arg6[%c0_17, %c0_18, %c0_19] : memref<2x9x96xf32, #tpu.memory_space<vmem>>, vector<1x9x96xf32>
    %47 = vector.shape_cast %46 : vector<1x9x96xf32> to vector<9x96xf32>
    %48 = vector.extract_strided_slice %47 {offsets = [0, 0], sizes = [1, 96], strides = [1, 1]} : vector<9x96xf32> to vector<1x96xf32>
    %49 = vector.extract_strided_slice %47 {offsets = [1, 0], sizes = [1, 32], strides = [1, 1]} : vector<9x96xf32> to vector<1x32xf32>
    %50 = vector.extract_strided_slice %47 {offsets = [2, 0], sizes = [1, 64], strides = [1, 1]} : vector<9x96xf32> to vector<1x64xf32>
    %51 = vector.extract_strided_slice %47 {offsets = [3, 0], sizes = [1, 32], strides = [1, 1]} : vector<9x96xf32> to vector<1x32xf32>
    %52 = vector.extract_strided_slice %47 {offsets = [4, 0], sizes = [1, 32], strides = [1, 1]} : vector<9x96xf32> to vector<1x32xf32>
    %53 = vector.extract_strided_slice %47 {offsets = [5, 0], sizes = [1, 32], strides = [1, 1]} : vector<9x96xf32> to vector<1x32xf32>
    %54 = vector.extract_strided_slice %47 {offsets = [6, 0], sizes = [1, 32], strides = [1, 1]} : vector<9x96xf32> to vector<1x32xf32>
    %55 = vector.extract_strided_slice %47 {offsets = [7, 0], sizes = [1, 32], strides = [1, 1]} : vector<9x96xf32> to vector<1x32xf32>
    %c0_20 = arith.constant 0 : index
    %c0_21 = arith.constant 0 : index
    %c0_22 = arith.constant 0 : index
    %56 = vector.load %arg2[%c0_20, %c0_21, %c0_22] : memref<2x32x96xf32, #tpu.memory_space<vmem>>, vector<1x32x96xf32>
    %57 = vector.shape_cast %56 : vector<1x32x96xf32> to vector<32x96xf32>
    %cst_23 = arith.constant dense<0.000000e+00> : vector<16x96xf32>
    %58 = tpu.matmul %7, %57, %cst_23 {dimension_numbers = #tpu.dot_dimension_numbers<[1], [0], [0], [1], [0, 0, 1, 1], [], []>} : vector<16x32xf32>, vector<32x96xf32>, vector<16x96xf32> -> vector<16x96xf32>
    %59 = vector.broadcast %48 : vector<1x96xf32> to vector<16x96xf32>
    %60 = arith.addf %58, %59 : vector<16x96xf32>
    %c0_24 = arith.constant 0 : index
    %c0_25 = arith.constant 0 : index
    %c0_26 = arith.constant 0 : index
    %61 = vector.load %arg3[%c0_24, %c0_25, %c0_26] : memref<2x32x32xf32, #tpu.memory_space<vmem>>, vector<1x32x32xf32>
    %62 = vector.shape_cast %61 : vector<1x32x32xf32> to vector<32x32xf32>
    %cst_27 = arith.constant 0.000000e+00 : f32
    %63 = vector.broadcast %cst_27 : f32 to vector<16x32xf32>
    %64 = vector.extract_strided_slice %60 {offsets = [0, 0], sizes = [16, 8], strides = [1, 1]} : vector<16x96xf32> to vector<16x8xf32>
    %65 = vector.extract_strided_slice %60 {offsets = [0, 32], sizes = [16, 8], strides = [1, 1]} : vector<16x96xf32> to vector<16x8xf32>
    %66 = vector.extract_strided_slice %60 {offsets = [0, 64], sizes = [16, 8], strides = [1, 1]} : vector<16x96xf32> to vector<16x8xf32>
    %cst_28 = arith.constant dense<0.000000e+00> : vector<16x16xf32>
    %67 = tpu.matmul %64, %65, %cst_28 {dimension_numbers = #tpu.dot_dimension_numbers<[1], [1], [0], [0], [0, 0, 1, 0], [], []>} : vector<16x8xf32>, vector<16x8xf32>, vector<16x16xf32> -> vector<16x16xf32>
    %68 = arith.addf %67, %45 : vector<16x16xf32>
    %cst_29 = arith.constant dense<0xFF800000> : vector<16xf32>
    %69 = vector.multi_reduction <maximumf>, %68, %cst_29 [1] : vector<16x16xf32> to vector<16xf32>
    %70 = vector.shape_cast %69 : vector<16xf32> to vector<16x1xf32>
    %71 = vector.broadcast %70 : vector<16x1xf32> to vector<16x16xf32>
    %72 = arith.subf %68, %71 : vector<16x16xf32>
    %73 = math.exp %72 : vector<16x16xf32>
    %cst_30 = arith.constant dense<0.000000e+00> : vector<16xf32>
    %74 = vector.multi_reduction <add>, %73, %cst_30 [1] : vector<16x16xf32> to vector<16xf32>
    %75 = vector.shape_cast %74 : vector<16xf32> to vector<16x1xf32>
    %76 = tpu.reciprocal %75 {approx = true} : vector<16x1xf32> -> vector<16x1xf32>
    %77 = vector.broadcast %76 : vector<16x1xf32> to vector<16x16xf32>
    %78 = arith.mulf %73, %77 : vector<16x16xf32>
    %cst_31 = arith.constant dense<0.000000e+00> : vector<16x8xf32>
    %79 = tpu.matmul %78, %66, %cst_31 {dimension_numbers = #tpu.dot_dimension_numbers<[1], [0], [0], [1], [0, 0, 1, 1], [], []>} : vector<16x16xf32>, vector<16x8xf32>, vector<16x8xf32> -> vector<16x8xf32>
    %80 = vector.extract_strided_slice %62 {offsets = [0, 0], sizes = [8, 32], strides = [1, 1]} : vector<32x32xf32> to vector<8x32xf32>
    %cst_32 = arith.constant dense<0.000000e+00> : vector<16x32xf32>
    %81 = tpu.matmul %79, %80, %cst_32 {dimension_numbers = #tpu.dot_dimension_numbers<[1], [0], [0], [1], [0, 0, 1, 1], [], []>} : vector<16x8xf32>, vector<8x32xf32>, vector<16x32xf32> -> vector<16x32xf32>
    %82 = arith.addf %63, %81 : vector<16x32xf32>
    %83 = vector.extract_strided_slice %60 {offsets = [0, 8], sizes = [16, 8], strides = [1, 1]} : vector<16x96xf32> to vector<16x8xf32>
    %84 = vector.extract_strided_slice %60 {offsets = [0, 40], sizes = [16, 8], strides = [1, 1]} : vector<16x96xf32> to vector<16x8xf32>
    %85 = vector.extract_strided_slice %60 {offsets = [0, 72], sizes = [16, 8], strides = [1, 1]} : vector<16x96xf32> to vector<16x8xf32>
    %cst_33 = arith.constant dense<0.000000e+00> : vector<16x16xf32>
    %86 = tpu.matmul %83, %84, %cst_33 {dimension_numbers = #tpu.dot_dimension_numbers<[1], [1], [0], [0], [0, 0, 1, 0], [], []>} : vector<16x8xf32>, vector<16x8xf32>, vector<16x16xf32> -> vector<16x16xf32>
    %87 = arith.addf %86, %45 : vector<16x16xf32>
    %cst_34 = arith.constant dense<0xFF800000> : vector<16xf32>
    %88 = vector.multi_reduction <maximumf>, %87, %cst_34 [1] : vector<16x16xf32> to vector<16xf32>
    %89 = vector.shape_cast %88 : vector<16xf32> to vector<16x1xf32>
    %90 = vector.broadcast %89 : vector<16x1xf32> to vector<16x16xf32>
    %91 = arith.subf %87, %90 : vector<16x16xf32>
    %92 = math.exp %91 : vector<16x16xf32>
    %cst_35 = arith.constant dense<0.000000e+00> : vector<16xf32>
    %93 = vector.multi_reduction <add>, %92, %cst_35 [1] : vector<16x16xf32> to vector<16xf32>
    %94 = vector.shape_cast %93 : vector<16xf32> to vector<16x1xf32>
    %95 = tpu.reciprocal %94 {approx = true} : vector<16x1xf32> -> vector<16x1xf32>
    %96 = vector.broadcast %95 : vector<16x1xf32> to vector<16x16xf32>
    %97 = arith.mulf %92, %96 : vector<16x16xf32>
    %cst_36 = arith.constant dense<0.000000e+00> : vector<16x8xf32>
    %98 = tpu.matmul %97, %85, %cst_36 {dimension_numbers = #tpu.dot_dimension_numbers<[1], [0], [0], [1], [0, 0, 1, 1], [], []>} : vector<16x16xf32>, vector<16x8xf32>, vector<16x8xf32> -> vector<16x8xf32>
    %99 = vector.extract_strided_slice %62 {offsets = [8, 0], sizes = [8, 32], strides = [1, 1]} : vector<32x32xf32> to vector<8x32xf32>
    %cst_37 = arith.constant dense<0.000000e+00> : vector<16x32xf32>
    %100 = tpu.matmul %98, %99, %cst_37 {dimension_numbers = #tpu.dot_dimension_numbers<[1], [0], [0], [1], [0, 0, 1, 1], [], []>} : vector<16x8xf32>, vector<8x32xf32>, vector<16x32xf32> -> vector<16x32xf32>
    %101 = arith.addf %82, %100 : vector<16x32xf32>
    %102 = vector.extract_strided_slice %60 {offsets = [0, 16], sizes = [16, 8], strides = [1, 1]} : vector<16x96xf32> to vector<16x8xf32>
    %103 = vector.extract_strided_slice %60 {offsets = [0, 48], sizes = [16, 8], strides = [1, 1]} : vector<16x96xf32> to vector<16x8xf32>
    %104 = vector.extract_strided_slice %60 {offsets = [0, 80], sizes = [16, 8], strides = [1, 1]} : vector<16x96xf32> to vector<16x8xf32>
    %cst_38 = arith.constant dense<0.000000e+00> : vector<16x16xf32>
    %105 = tpu.matmul %102, %103, %cst_38 {dimension_numbers = #tpu.dot_dimension_numbers<[1], [1], [0], [0], [0, 0, 1, 0], [], []>} : vector<16x8xf32>, vector<16x8xf32>, vector<16x16xf32> -> vector<16x16xf32>
    %106 = arith.addf %105, %45 : vector<16x16xf32>
    %cst_39 = arith.constant dense<0xFF800000> : vector<16xf32>
    %107 = vector.multi_reduction <maximumf>, %106, %cst_39 [1] : vector<16x16xf32> to vector<16xf32>
    %108 = vector.shape_cast %107 : vector<16xf32> to vector<16x1xf32>
    %109 = vector.broadcast %108 : vector<16x1xf32> to vector<16x16xf32>
    %110 = arith.subf %106, %109 : vector<16x16xf32>
    %111 = math.exp %110 : vector<16x16xf32>
    %cst_40 = arith.constant dense<0.000000e+00> : vector<16xf32>
    %112 = vector.multi_reduction <add>, %111, %cst_40 [1] : vector<16x16xf32> to vector<16xf32>
    %113 = vector.shape_cast %112 : vector<16xf32> to vector<16x1xf32>
    %114 = tpu.reciprocal %113 {approx = true} : vector<16x1xf32> -> vector<16x1xf32>
    %115 = vector.broadcast %114 : vector<16x1xf32> to vector<16x16xf32>
    %116 = arith.mulf %111, %115 : vector<16x16xf32>
    %cst_41 = arith.constant dense<0.000000e+00> : vector<16x8xf32>
    %117 = tpu.matmul %116, %104, %cst_41 {dimension_numbers = #tpu.dot_dimension_numbers<[1], [0], [0], [1], [0, 0, 1, 1], [], []>} : vector<16x16xf32>, vector<16x8xf32>, vector<16x8xf32> -> vector<16x8xf32>
    %118 = vector.extract_strided_slice %62 {offsets = [16, 0], sizes = [8, 32], strides = [1, 1]} : vector<32x32xf32> to vector<8x32xf32>
    %cst_42 = arith.constant dense<0.000000e+00> : vector<16x32xf32>
    %119 = tpu.matmul %117, %118, %cst_42 {dimension_numbers = #tpu.dot_dimension_numbers<[1], [0], [0], [1], [0, 0, 1, 1], [], []>} : vector<16x8xf32>, vector<8x32xf32>, vector<16x32xf32> -> vector<16x32xf32>
    %120 = arith.addf %101, %119 : vector<16x32xf32>
    %121 = vector.extract_strided_slice %60 {offsets = [0, 24], sizes = [16, 8], strides = [1, 1]} : vector<16x96xf32> to vector<16x8xf32>
    %122 = vector.extract_strided_slice %60 {offsets = [0, 56], sizes = [16, 8], strides = [1, 1]} : vector<16x96xf32> to vector<16x8xf32>
    %123 = vector.extract_strided_slice %60 {offsets = [0, 88], sizes = [16, 8], strides = [1, 1]} : vector<16x96xf32> to vector<16x8xf32>
    %cst_43 = arith.constant dense<0.000000e+00> : vector<16x16xf32>
    %124 = tpu.matmul %121, %122, %cst_43 {dimension_numbers = #tpu.dot_dimension_numbers<[1], [1], [0], [0], [0, 0, 1, 0], [], []>} : vector<16x8xf32>, vector<16x8xf32>, vector<16x16xf32> -> vector<16x16xf32>
    %125 = arith.addf %124, %45 : vector<16x16xf32>
    %cst_44 = arith.constant dense<0xFF800000> : vector<16xf32>
    %126 = vector.multi_reduction <maximumf>, %125, %cst_44 [1] : vector<16x16xf32> to vector<16xf32>
    %127 = vector.shape_cast %126 : vector<16xf32> to vector<16x1xf32>
    %128 = vector.broadcast %127 : vector<16x1xf32> to vector<16x16xf32>
    %129 = arith.subf %125, %128 : vector<16x16xf32>
    %130 = math.exp %129 : vector<16x16xf32>
    %cst_45 = arith.constant dense<0.000000e+00> : vector<16xf32>
    %131 = vector.multi_reduction <add>, %130, %cst_45 [1] : vector<16x16xf32> to vector<16xf32>
    %132 = vector.shape_cast %131 : vector<16xf32> to vector<16x1xf32>
    %133 = tpu.reciprocal %132 {approx = true} : vector<16x1xf32> -> vector<16x1xf32>
    %134 = vector.broadcast %133 : vector<16x1xf32> to vector<16x16xf32>
    %135 = arith.mulf %130, %134 : vector<16x16xf32>
    %cst_46 = arith.constant dense<0.000000e+00> : vector<16x8xf32>
    %136 = tpu.matmul %135, %123, %cst_46 {dimension_numbers = #tpu.dot_dimension_numbers<[1], [0], [0], [1], [0, 0, 1, 1], [], []>} : vector<16x16xf32>, vector<16x8xf32>, vector<16x8xf32> -> vector<16x8xf32>
    %137 = vector.extract_strided_slice %62 {offsets = [24, 0], sizes = [8, 32], strides = [1, 1]} : vector<32x32xf32> to vector<8x32xf32>
    %cst_47 = arith.constant dense<0.000000e+00> : vector<16x32xf32>
    %138 = tpu.matmul %136, %137, %cst_47 {dimension_numbers = #tpu.dot_dimension_numbers<[1], [0], [0], [1], [0, 0, 1, 1], [], []>} : vector<16x8xf32>, vector<8x32xf32>, vector<16x32xf32> -> vector<16x32xf32>
    %139 = arith.addf %120, %138 : vector<16x32xf32>
    %140 = arith.addf %7, %139 : vector<16x32xf32>
    %141 = vector.broadcast %49 : vector<1x32xf32> to vector<16x32xf32>
    %142 = arith.addf %140, %141 : vector<16x32xf32>
    %cst_48 = arith.constant dense<0.000000e+00> : vector<16xf32>
    %143 = vector.multi_reduction <add>, %142, %cst_48 [1] : vector<16x32xf32> to vector<16xf32>
    %144 = vector.shape_cast %143 : vector<16xf32> to vector<16x1xf32>
    %cst_49 = arith.constant 3.200000e+01 : f32
    %145 = vector.broadcast %cst_49 : f32 to vector<16x1xf32>
    %146 = arith.divf %144, %145 : vector<16x1xf32>
    %147 = vector.broadcast %146 : vector<16x1xf32> to vector<16x32xf32>
    %148 = arith.subf %142, %147 : vector<16x32xf32>
    %149 = arith.mulf %148, %148 : vector<16x32xf32>
    %cst_50 = arith.constant dense<0.000000e+00> : vector<16xf32>
    %150 = vector.multi_reduction <add>, %149, %cst_50 [1] : vector<16x32xf32> to vector<16xf32>
    %151 = vector.shape_cast %150 : vector<16xf32> to vector<16x1xf32>
    %cst_51 = arith.constant 3.200000e+01 : f32
    %152 = vector.broadcast %cst_51 : f32 to vector<16x1xf32>
    %153 = arith.divf %151, %152 : vector<16x1xf32>
    %154 = vector.broadcast %146 : vector<16x1xf32> to vector<16x32xf32>
    %155 = arith.subf %142, %154 : vector<16x32xf32>
    %cst_52 = arith.constant 9.99999974E-6 : f32
    %156 = vector.broadcast %cst_52 : f32 to vector<16x1xf32>
    %157 = arith.addf %153, %156 : vector<16x1xf32>
    %158 = math.rsqrt %157 : vector<16x1xf32>
    %159 = vector.broadcast %158 : vector<16x1xf32> to vector<16x32xf32>
    %160 = arith.mulf %155, %159 : vector<16x32xf32>
    %161 = vector.broadcast %52 : vector<1x32xf32> to vector<16x32xf32>
    %162 = arith.mulf %160, %161 : vector<16x32xf32>
    %163 = vector.broadcast %53 : vector<1x32xf32> to vector<16x32xf32>
    %164 = arith.addf %162, %163 : vector<16x32xf32>
    %c0_53 = arith.constant 0 : index
    %c0_54 = arith.constant 0 : index
    %c0_55 = arith.constant 0 : index
    %165 = vector.load %arg4[%c0_53, %c0_54, %c0_55] : memref<2x32x64xf32, #tpu.memory_space<vmem>>, vector<1x32x64xf32>
    %166 = vector.shape_cast %165 : vector<1x32x64xf32> to vector<32x64xf32>
    %cst_56 = arith.constant dense<0.000000e+00> : vector<16x64xf32>
    %167 = tpu.matmul %164, %166, %cst_56 {dimension_numbers = #tpu.dot_dimension_numbers<[1], [0], [0], [1], [0, 0, 1, 1], [], []>} : vector<16x32xf32>, vector<32x64xf32>, vector<16x64xf32> -> vector<16x64xf32>
    %168 = vector.broadcast %50 : vector<1x64xf32> to vector<16x64xf32>
    %169 = arith.addf %167, %168 : vector<16x64xf32>
    %cst_57 = arith.constant 0.000000e+00 : f32
    %170 = vector.broadcast %cst_57 : f32 to vector<16x64xf32>
    %171 = arith.maximumf %169, %170 : vector<16x64xf32>
    %c0_58 = arith.constant 0 : index
    %c0_59 = arith.constant 0 : index
    %c0_60 = arith.constant 0 : index
    %172 = vector.load %arg5[%c0_58, %c0_59, %c0_60] : memref<2x64x32xf32, #tpu.memory_space<vmem>>, vector<1x64x32xf32>
    %173 = vector.shape_cast %172 : vector<1x64x32xf32> to vector<64x32xf32>
    %cst_61 = arith.constant dense<0.000000e+00> : vector<16x32xf32>
    %174 = tpu.matmul %171, %173, %cst_61 {dimension_numbers = #tpu.dot_dimension_numbers<[1], [0], [0], [1], [0, 0, 1, 1], [], []>} : vector<16x64xf32>, vector<64x32xf32>, vector<16x32xf32> -> vector<16x32xf32>
    %175 = vector.broadcast %51 : vector<1x32xf32> to vector<16x32xf32>
    %176 = arith.addf %174, %175 : vector<16x32xf32>
    %177 = arith.addf %164, %176 : vector<16x32xf32>
    %cst_62 = arith.constant dense<0.000000e+00> : vector<16xf32>
    %178 = vector.multi_reduction <add>, %177, %cst_62 [1] : vector<16x32xf32> to vector<16xf32>
    %179 = vector.shape_cast %178 : vector<16xf32> to vector<16x1xf32>
    %cst_63 = arith.constant 3.200000e+01 : f32
    %180 = vector.broadcast %cst_63 : f32 to vector<16x1xf32>
    %181 = arith.divf %179, %180 : vector<16x1xf32>
    %182 = vector.broadcast %181 : vector<16x1xf32> to vector<16x32xf32>
    %183 = arith.subf %177, %182 : vector<16x32xf32>
    %184 = arith.mulf %183, %183 : vector<16x32xf32>
    %cst_64 = arith.constant dense<0.000000e+00> : vector<16xf32>
    %185 = vector.multi_reduction <add>, %184, %cst_64 [1] : vector<16x32xf32> to vector<16xf32>
    %186 = vector.shape_cast %185 : vector<16xf32> to vector<16x1xf32>
    %cst_65 = arith.constant 3.200000e+01 : f32
    %187 = vector.broadcast %cst_65 : f32 to vector<16x1xf32>
    %188 = arith.divf %186, %187 : vector<16x1xf32>
    %189 = vector.broadcast %181 : vector<16x1xf32> to vector<16x32xf32>
    %190 = arith.subf %177, %189 : vector<16x32xf32>
    %cst_66 = arith.constant 9.99999974E-6 : f32
    %191 = vector.broadcast %cst_66 : f32 to vector<16x1xf32>
    %192 = arith.addf %188, %191 : vector<16x1xf32>
    %193 = math.rsqrt %192 : vector<16x1xf32>
    %194 = vector.broadcast %193 : vector<16x1xf32> to vector<16x32xf32>
    %195 = arith.mulf %190, %194 : vector<16x32xf32>
    %196 = vector.broadcast %54 : vector<1x32xf32> to vector<16x32xf32>
    %197 = arith.mulf %195, %196 : vector<16x32xf32>
    %198 = vector.broadcast %55 : vector<1x32xf32> to vector<16x32xf32>
    %199 = arith.addf %197, %198 : vector<16x32xf32>
    %c1 = arith.constant 1 : index
    %c0_67 = arith.constant 0 : index
    %c0_68 = arith.constant 0 : index
    %200 = vector.load %arg6[%c1, %c0_67, %c0_68] : memref<2x9x96xf32, #tpu.memory_space<vmem>>, vector<1x9x96xf32>
    %201 = vector.shape_cast %200 : vector<1x9x96xf32> to vector<9x96xf32>
    %202 = vector.extract_strided_slice %201 {offsets = [0, 0], sizes = [1, 96], strides = [1, 1]} : vector<9x96xf32> to vector<1x96xf32>
    %203 = vector.extract_strided_slice %201 {offsets = [1, 0], sizes = [1, 32], strides = [1, 1]} : vector<9x96xf32> to vector<1x32xf32>
    %204 = vector.extract_strided_slice %201 {offsets = [2, 0], sizes = [1, 64], strides = [1, 1]} : vector<9x96xf32> to vector<1x64xf32>
    %205 = vector.extract_strided_slice %201 {offsets = [3, 0], sizes = [1, 32], strides = [1, 1]} : vector<9x96xf32> to vector<1x32xf32>
    %206 = vector.extract_strided_slice %201 {offsets = [4, 0], sizes = [1, 32], strides = [1, 1]} : vector<9x96xf32> to vector<1x32xf32>
    %207 = vector.extract_strided_slice %201 {offsets = [5, 0], sizes = [1, 32], strides = [1, 1]} : vector<9x96xf32> to vector<1x32xf32>
    %208 = vector.extract_strided_slice %201 {offsets = [6, 0], sizes = [1, 32], strides = [1, 1]} : vector<9x96xf32> to vector<1x32xf32>
    %209 = vector.extract_strided_slice %201 {offsets = [7, 0], sizes = [1, 32], strides = [1, 1]} : vector<9x96xf32> to vector<1x32xf32>
    %c1_69 = arith.constant 1 : index
    %c0_70 = arith.constant 0 : index
    %c0_71 = arith.constant 0 : index
    %210 = vector.load %arg2[%c1_69, %c0_70, %c0_71] : memref<2x32x96xf32, #tpu.memory_space<vmem>>, vector<1x32x96xf32>
    %211 = vector.shape_cast %210 : vector<1x32x96xf32> to vector<32x96xf32>
    %cst_72 = arith.constant dense<0.000000e+00> : vector<16x96xf32>
    %212 = tpu.matmul %199, %211, %cst_72 {dimension_numbers = #tpu.dot_dimension_numbers<[1], [0], [0], [1], [0, 0, 1, 1], [], []>} : vector<16x32xf32>, vector<32x96xf32>, vector<16x96xf32> -> vector<16x96xf32>
    %213 = vector.broadcast %202 : vector<1x96xf32> to vector<16x96xf32>
    %214 = arith.addf %212, %213 : vector<16x96xf32>
    %c1_73 = arith.constant 1 : index
    %c0_74 = arith.constant 0 : index
    %c0_75 = arith.constant 0 : index
    %215 = vector.load %arg3[%c1_73, %c0_74, %c0_75] : memref<2x32x32xf32, #tpu.memory_space<vmem>>, vector<1x32x32xf32>
    %216 = vector.shape_cast %215 : vector<1x32x32xf32> to vector<32x32xf32>
    %cst_76 = arith.constant 0.000000e+00 : f32
    %217 = vector.broadcast %cst_76 : f32 to vector<16x32xf32>
    %218 = vector.extract_strided_slice %214 {offsets = [0, 0], sizes = [16, 8], strides = [1, 1]} : vector<16x96xf32> to vector<16x8xf32>
    %219 = vector.extract_strided_slice %214 {offsets = [0, 32], sizes = [16, 8], strides = [1, 1]} : vector<16x96xf32> to vector<16x8xf32>
    %220 = vector.extract_strided_slice %214 {offsets = [0, 64], sizes = [16, 8], strides = [1, 1]} : vector<16x96xf32> to vector<16x8xf32>
    %cst_77 = arith.constant dense<0.000000e+00> : vector<16x16xf32>
    %221 = tpu.matmul %218, %219, %cst_77 {dimension_numbers = #tpu.dot_dimension_numbers<[1], [1], [0], [0], [0, 0, 1, 0], [], []>} : vector<16x8xf32>, vector<16x8xf32>, vector<16x16xf32> -> vector<16x16xf32>
    %222 = arith.addf %221, %45 : vector<16x16xf32>
    %cst_78 = arith.constant dense<0xFF800000> : vector<16xf32>
    %223 = vector.multi_reduction <maximumf>, %222, %cst_78 [1] : vector<16x16xf32> to vector<16xf32>
    %224 = vector.shape_cast %223 : vector<16xf32> to vector<16x1xf32>
    %225 = vector.broadcast %224 : vector<16x1xf32> to vector<16x16xf32>
    %226 = arith.subf %222, %225 : vector<16x16xf32>
    %227 = math.exp %226 : vector<16x16xf32>
    %cst_79 = arith.constant dense<0.000000e+00> : vector<16xf32>
    %228 = vector.multi_reduction <add>, %227, %cst_79 [1] : vector<16x16xf32> to vector<16xf32>
    %229 = vector.shape_cast %228 : vector<16xf32> to vector<16x1xf32>
    %230 = tpu.reciprocal %229 {approx = true} : vector<16x1xf32> -> vector<16x1xf32>
    %231 = vector.broadcast %230 : vector<16x1xf32> to vector<16x16xf32>
    %232 = arith.mulf %227, %231 : vector<16x16xf32>
    %cst_80 = arith.constant dense<0.000000e+00> : vector<16x8xf32>
    %233 = tpu.matmul %232, %220, %cst_80 {dimension_numbers = #tpu.dot_dimension_numbers<[1], [0], [0], [1], [0, 0, 1, 1], [], []>} : vector<16x16xf32>, vector<16x8xf32>, vector<16x8xf32> -> vector<16x8xf32>
    %234 = vector.extract_strided_slice %216 {offsets = [0, 0], sizes = [8, 32], strides = [1, 1]} : vector<32x32xf32> to vector<8x32xf32>
    %cst_81 = arith.constant dense<0.000000e+00> : vector<16x32xf32>
    %235 = tpu.matmul %233, %234, %cst_81 {dimension_numbers = #tpu.dot_dimension_numbers<[1], [0], [0], [1], [0, 0, 1, 1], [], []>} : vector<16x8xf32>, vector<8x32xf32>, vector<16x32xf32> -> vector<16x32xf32>
    %236 = arith.addf %217, %235 : vector<16x32xf32>
    %237 = vector.extract_strided_slice %214 {offsets = [0, 8], sizes = [16, 8], strides = [1, 1]} : vector<16x96xf32> to vector<16x8xf32>
    %238 = vector.extract_strided_slice %214 {offsets = [0, 40], sizes = [16, 8], strides = [1, 1]} : vector<16x96xf32> to vector<16x8xf32>
    %239 = vector.extract_strided_slice %214 {offsets = [0, 72], sizes = [16, 8], strides = [1, 1]} : vector<16x96xf32> to vector<16x8xf32>
    %cst_82 = arith.constant dense<0.000000e+00> : vector<16x16xf32>
    %240 = tpu.matmul %237, %238, %cst_82 {dimension_numbers = #tpu.dot_dimension_numbers<[1], [1], [0], [0], [0, 0, 1, 0], [], []>} : vector<16x8xf32>, vector<16x8xf32>, vector<16x16xf32> -> vector<16x16xf32>
    %241 = arith.addf %240, %45 : vector<16x16xf32>
    %cst_83 = arith.constant dense<0xFF800000> : vector<16xf32>
    %242 = vector.multi_reduction <maximumf>, %241, %cst_83 [1] : vector<16x16xf32> to vector<16xf32>
    %243 = vector.shape_cast %242 : vector<16xf32> to vector<16x1xf32>
    %244 = vector.broadcast %243 : vector<16x1xf32> to vector<16x16xf32>
    %245 = arith.subf %241, %244 : vector<16x16xf32>
    %246 = math.exp %245 : vector<16x16xf32>
    %cst_84 = arith.constant dense<0.000000e+00> : vector<16xf32>
    %247 = vector.multi_reduction <add>, %246, %cst_84 [1] : vector<16x16xf32> to vector<16xf32>
    %248 = vector.shape_cast %247 : vector<16xf32> to vector<16x1xf32>
    %249 = tpu.reciprocal %248 {approx = true} : vector<16x1xf32> -> vector<16x1xf32>
    %250 = vector.broadcast %249 : vector<16x1xf32> to vector<16x16xf32>
    %251 = arith.mulf %246, %250 : vector<16x16xf32>
    %cst_85 = arith.constant dense<0.000000e+00> : vector<16x8xf32>
    %252 = tpu.matmul %251, %239, %cst_85 {dimension_numbers = #tpu.dot_dimension_numbers<[1], [0], [0], [1], [0, 0, 1, 1], [], []>} : vector<16x16xf32>, vector<16x8xf32>, vector<16x8xf32> -> vector<16x8xf32>
    %253 = vector.extract_strided_slice %216 {offsets = [8, 0], sizes = [8, 32], strides = [1, 1]} : vector<32x32xf32> to vector<8x32xf32>
    %cst_86 = arith.constant dense<0.000000e+00> : vector<16x32xf32>
    %254 = tpu.matmul %252, %253, %cst_86 {dimension_numbers = #tpu.dot_dimension_numbers<[1], [0], [0], [1], [0, 0, 1, 1], [], []>} : vector<16x8xf32>, vector<8x32xf32>, vector<16x32xf32> -> vector<16x32xf32>
    %255 = arith.addf %236, %254 : vector<16x32xf32>
    %256 = vector.extract_strided_slice %214 {offsets = [0, 16], sizes = [16, 8], strides = [1, 1]} : vector<16x96xf32> to vector<16x8xf32>
    %257 = vector.extract_strided_slice %214 {offsets = [0, 48], sizes = [16, 8], strides = [1, 1]} : vector<16x96xf32> to vector<16x8xf32>
    %258 = vector.extract_strided_slice %214 {offsets = [0, 80], sizes = [16, 8], strides = [1, 1]} : vector<16x96xf32> to vector<16x8xf32>
    %cst_87 = arith.constant dense<0.000000e+00> : vector<16x16xf32>
    %259 = tpu.matmul %256, %257, %cst_87 {dimension_numbers = #tpu.dot_dimension_numbers<[1], [1], [0], [0], [0, 0, 1, 0], [], []>} : vector<16x8xf32>, vector<16x8xf32>, vector<16x16xf32> -> vector<16x16xf32>
    %260 = arith.addf %259, %45 : vector<16x16xf32>
    %cst_88 = arith.constant dense<0xFF800000> : vector<16xf32>
    %261 = vector.multi_reduction <maximumf>, %260, %cst_88 [1] : vector<16x16xf32> to vector<16xf32>
    %262 = vector.shape_cast %261 : vector<16xf32> to vector<16x1xf32>
    %263 = vector.broadcast %262 : vector<16x1xf32> to vector<16x16xf32>
    %264 = arith.subf %260, %263 : vector<16x16xf32>
    %265 = math.exp %264 : vector<16x16xf32>
    %cst_89 = arith.constant dense<0.000000e+00> : vector<16xf32>
    %266 = vector.multi_reduction <add>, %265, %cst_89 [1] : vector<16x16xf32> to vector<16xf32>
    %267 = vector.shape_cast %266 : vector<16xf32> to vector<16x1xf32>
    %268 = tpu.reciprocal %267 {approx = true} : vector<16x1xf32> -> vector<16x1xf32>
    %269 = vector.broadcast %268 : vector<16x1xf32> to vector<16x16xf32>
    %270 = arith.mulf %265, %269 : vector<16x16xf32>
    %cst_90 = arith.constant dense<0.000000e+00> : vector<16x8xf32>
    %271 = tpu.matmul %270, %258, %cst_90 {dimension_numbers = #tpu.dot_dimension_numbers<[1], [0], [0], [1], [0, 0, 1, 1], [], []>} : vector<16x16xf32>, vector<16x8xf32>, vector<16x8xf32> -> vector<16x8xf32>
    %272 = vector.extract_strided_slice %216 {offsets = [16, 0], sizes = [8, 32], strides = [1, 1]} : vector<32x32xf32> to vector<8x32xf32>
    %cst_91 = arith.constant dense<0.000000e+00> : vector<16x32xf32>
    %273 = tpu.matmul %271, %272, %cst_91 {dimension_numbers = #tpu.dot_dimension_numbers<[1], [0], [0], [1], [0, 0, 1, 1], [], []>} : vector<16x8xf32>, vector<8x32xf32>, vector<16x32xf32> -> vector<16x32xf32>
    %274 = arith.addf %255, %273 : vector<16x32xf32>
    %275 = vector.extract_strided_slice %214 {offsets = [0, 24], sizes = [16, 8], strides = [1, 1]} : vector<16x96xf32> to vector<16x8xf32>
    %276 = vector.extract_strided_slice %214 {offsets = [0, 56], sizes = [16, 8], strides = [1, 1]} : vector<16x96xf32> to vector<16x8xf32>
    %277 = vector.extract_strided_slice %214 {offsets = [0, 88], sizes = [16, 8], strides = [1, 1]} : vector<16x96xf32> to vector<16x8xf32>
    %cst_92 = arith.constant dense<0.000000e+00> : vector<16x16xf32>
    %278 = tpu.matmul %275, %276, %cst_92 {dimension_numbers = #tpu.dot_dimension_numbers<[1], [1], [0], [0], [0, 0, 1, 0], [], []>} : vector<16x8xf32>, vector<16x8xf32>, vector<16x16xf32> -> vector<16x16xf32>
    %279 = arith.addf %278, %45 : vector<16x16xf32>
    %cst_93 = arith.constant dense<0xFF800000> : vector<16xf32>
    %280 = vector.multi_reduction <maximumf>, %279, %cst_93 [1] : vector<16x16xf32> to vector<16xf32>
    %281 = vector.shape_cast %280 : vector<16xf32> to vector<16x1xf32>
    %282 = vector.broadcast %281 : vector<16x1xf32> to vector<16x16xf32>
    %283 = arith.subf %279, %282 : vector<16x16xf32>
    %284 = math.exp %283 : vector<16x16xf32>
    %cst_94 = arith.constant dense<0.000000e+00> : vector<16xf32>
    %285 = vector.multi_reduction <add>, %284, %cst_94 [1] : vector<16x16xf32> to vector<16xf32>
    %286 = vector.shape_cast %285 : vector<16xf32> to vector<16x1xf32>
    %287 = tpu.reciprocal %286 {approx = true} : vector<16x1xf32> -> vector<16x1xf32>
    %288 = vector.broadcast %287 : vector<16x1xf32> to vector<16x16xf32>
    %289 = arith.mulf %284, %288 : vector<16x16xf32>
    %cst_95 = arith.constant dense<0.000000e+00> : vector<16x8xf32>
    %290 = tpu.matmul %289, %277, %cst_95 {dimension_numbers = #tpu.dot_dimension_numbers<[1], [0], [0], [1], [0, 0, 1, 1], [], []>} : vector<16x16xf32>, vector<16x8xf32>, vector<16x8xf32> -> vector<16x8xf32>
    %291 = vector.extract_strided_slice %216 {offsets = [24, 0], sizes = [8, 32], strides = [1, 1]} : vector<32x32xf32> to vector<8x32xf32>
    %cst_96 = arith.constant dense<0.000000e+00> : vector<16x32xf32>
    %292 = tpu.matmul %290, %291, %cst_96 {dimension_numbers = #tpu.dot_dimension_numbers<[1], [0], [0], [1], [0, 0, 1, 1], [], []>} : vector<16x8xf32>, vector<8x32xf32>, vector<16x32xf32> -> vector<16x32xf32>
    %293 = arith.addf %274, %292 : vector<16x32xf32>
    %294 = arith.addf %199, %293 : vector<16x32xf32>
    %295 = vector.broadcast %203 : vector<1x32xf32> to vector<16x32xf32>
    %296 = arith.addf %294, %295 : vector<16x32xf32>
    %cst_97 = arith.constant dense<0.000000e+00> : vector<16xf32>
    %297 = vector.multi_reduction <add>, %296, %cst_97 [1] : vector<16x32xf32> to vector<16xf32>
    %298 = vector.shape_cast %297 : vector<16xf32> to vector<16x1xf32>
    %cst_98 = arith.constant 3.200000e+01 : f32
    %299 = vector.broadcast %cst_98 : f32 to vector<16x1xf32>
    %300 = arith.divf %298, %299 : vector<16x1xf32>
    %301 = vector.broadcast %300 : vector<16x1xf32> to vector<16x32xf32>
    %302 = arith.subf %296, %301 : vector<16x32xf32>
    %303 = arith.mulf %302, %302 : vector<16x32xf32>
    %cst_99 = arith.constant dense<0.000000e+00> : vector<16xf32>
    %304 = vector.multi_reduction <add>, %303, %cst_99 [1] : vector<16x32xf32> to vector<16xf32>
    %305 = vector.shape_cast %304 : vector<16xf32> to vector<16x1xf32>
    %cst_100 = arith.constant 3.200000e+01 : f32
    %306 = vector.broadcast %cst_100 : f32 to vector<16x1xf32>
    %307 = arith.divf %305, %306 : vector<16x1xf32>
    %308 = vector.broadcast %300 : vector<16x1xf32> to vector<16x32xf32>
    %309 = arith.subf %296, %308 : vector<16x32xf32>
    %cst_101 = arith.constant 9.99999974E-6 : f32
    %310 = vector.broadcast %cst_101 : f32 to vector<16x1xf32>
    %311 = arith.addf %307, %310 : vector<16x1xf32>
    %312 = math.rsqrt %311 : vector<16x1xf32>
    %313 = vector.broadcast %312 : vector<16x1xf32> to vector<16x32xf32>
    %314 = arith.mulf %309, %313 : vector<16x32xf32>
    %315 = vector.broadcast %206 : vector<1x32xf32> to vector<16x32xf32>
    %316 = arith.mulf %314, %315 : vector<16x32xf32>
    %317 = vector.broadcast %207 : vector<1x32xf32> to vector<16x32xf32>
    %318 = arith.addf %316, %317 : vector<16x32xf32>
    %c1_102 = arith.constant 1 : index
    %c0_103 = arith.constant 0 : index
    %c0_104 = arith.constant 0 : index
    %319 = vector.load %arg4[%c1_102, %c0_103, %c0_104] : memref<2x32x64xf32, #tpu.memory_space<vmem>>, vector<1x32x64xf32>
    %320 = vector.shape_cast %319 : vector<1x32x64xf32> to vector<32x64xf32>
    %cst_105 = arith.constant dense<0.000000e+00> : vector<16x64xf32>
    %321 = tpu.matmul %318, %320, %cst_105 {dimension_numbers = #tpu.dot_dimension_numbers<[1], [0], [0], [1], [0, 0, 1, 1], [], []>} : vector<16x32xf32>, vector<32x64xf32>, vector<16x64xf32> -> vector<16x64xf32>
    %322 = vector.broadcast %204 : vector<1x64xf32> to vector<16x64xf32>
    %323 = arith.addf %321, %322 : vector<16x64xf32>
    %cst_106 = arith.constant 0.000000e+00 : f32
    %324 = vector.broadcast %cst_106 : f32 to vector<16x64xf32>
    %325 = arith.maximumf %323, %324 : vector<16x64xf32>
    %c1_107 = arith.constant 1 : index
    %c0_108 = arith.constant 0 : index
    %c0_109 = arith.constant 0 : index
    %326 = vector.load %arg5[%c1_107, %c0_108, %c0_109] : memref<2x64x32xf32, #tpu.memory_space<vmem>>, vector<1x64x32xf32>
    %327 = vector.shape_cast %326 : vector<1x64x32xf32> to vector<64x32xf32>
    %cst_110 = arith.constant dense<0.000000e+00> : vector<16x32xf32>
    %328 = tpu.matmul %325, %327, %cst_110 {dimension_numbers = #tpu.dot_dimension_numbers<[1], [0], [0], [1], [0, 0, 1, 1], [], []>} : vector<16x64xf32>, vector<64x32xf32>, vector<16x32xf32> -> vector<16x32xf32>
    %329 = vector.broadcast %205 : vector<1x32xf32> to vector<16x32xf32>
    %330 = arith.addf %328, %329 : vector<16x32xf32>
    %331 = arith.addf %318, %330 : vector<16x32xf32>
    %cst_111 = arith.constant dense<0.000000e+00> : vector<16xf32>
    %332 = vector.multi_reduction <add>, %331, %cst_111 [1] : vector<16x32xf32> to vector<16xf32>
    %333 = vector.shape_cast %332 : vector<16xf32> to vector<16x1xf32>
    %cst_112 = arith.constant 3.200000e+01 : f32
    %334 = vector.broadcast %cst_112 : f32 to vector<16x1xf32>
    %335 = arith.divf %333, %334 : vector<16x1xf32>
    %336 = vector.broadcast %335 : vector<16x1xf32> to vector<16x32xf32>
    %337 = arith.subf %331, %336 : vector<16x32xf32>
    %338 = arith.mulf %337, %337 : vector<16x32xf32>
    %cst_113 = arith.constant dense<0.000000e+00> : vector<16xf32>
    %339 = vector.multi_reduction <add>, %338, %cst_113 [1] : vector<16x32xf32> to vector<16xf32>
    %340 = vector.shape_cast %339 : vector<16xf32> to vector<16x1xf32>
    %cst_114 = arith.constant 3.200000e+01 : f32
    %341 = vector.broadcast %cst_114 : f32 to vector<16x1xf32>
    %342 = arith.divf %340, %341 : vector<16x1xf32>
    %343 = vector.broadcast %335 : vector<16x1xf32> to vector<16x32xf32>
    %344 = arith.subf %331, %343 : vector<16x32xf32>
    %cst_115 = arith.constant 9.99999974E-6 : f32
    %345 = vector.broadcast %cst_115 : f32 to vector<16x1xf32>
    %346 = arith.addf %342, %345 : vector<16x1xf32>
    %347 = math.rsqrt %346 : vector<16x1xf32>
    %348 = vector.broadcast %347 : vector<16x1xf32> to vector<16x32xf32>
    %349 = arith.mulf %344, %348 : vector<16x32xf32>
    %350 = vector.broadcast %208 : vector<1x32xf32> to vector<16x32xf32>
    %351 = arith.mulf %349, %350 : vector<16x32xf32>
    %352 = vector.broadcast %209 : vector<1x32xf32> to vector<16x32xf32>
    %353 = arith.addf %351, %352 : vector<16x32xf32>
    %c0_116 = arith.constant 0 : index
    %c0_117 = arith.constant 0 : index
    %354 = vector.load %arg7[%c0_116, %c0_117] : memref<16x32xf32, #tpu.memory_space<vmem>>, vector<16x32xf32>
    tpu.vector_store %arg7[%c0_116, %c0_117], %353 {strides = array<i32>} : memref<16x32xf32, #tpu.memory_space<vmem>>, vector<16x32xf32>,
    return
  }
}

</mosaic_0001>

<llo_original>
// kernel: internal_temporal_relation.1
$region0: #{internal_temporal_relation.1}
  #allocation0 [shape = 'u32[]', space=smem, size = 0x4, offset = 0x4, fixed_abs, tag = 'smem constant byte address 0x4 - core index']
  #allocation1 [shape = 'u32[144,128]{1,0:T(1,128)}', space=vmem, size = 0x12000, scoped, tag = 'internal scratch']
  %s0 = inlined_call_operand.vmem [shape: f32[16,64], index: 0, kind: input, shape index: {}]
  %s1 = inlined_call_operand.vmem [shape: f32[64,32], index: 1, kind: input, shape index: {}]
  %s2 = inlined_call_operand.vmem [shape: f32[2,32,96], index: 2, kind: input, shape index: {}]
  %s3 = inlined_call_operand.vmem [shape: f32[2,32,32], index: 3, kind: input, shape index: {}]
  %s4 = inlined_call_operand.vmem [shape: f32[2,32,64], index: 4, kind: input, shape index: {}]
  %s5 = inlined_call_operand.vmem [shape: f32[2,64,32], index: 5, kind: input, shape index: {}]
  %s6 = inlined_call_operand.vmem [shape: f32[2,9,96], index: 6, kind: input, shape index: {}]
  %s7 = inlined_call_operand.hbm [shape: f32[16,32], index: 7, kind: output, shape index: {}]
  %s8 = sld [smem:[#allocation0]]
  $region38: #{internal_temporal_relation.1} parent=0
    _
  %s10 = ssub.s32 1, %s8
  %s11 = scalar_select 0, %s10, %s8
  $region1: #{internal_temporal_relation.1} parent=0
    #allocation2 [shape = 'u8[8192]{0}', space=vmem, size = 0x2000, scoped, tag = 'output window, operand 0, single buffered']
    #allocation3 [shape = 's32[1]{0}', space=sflag, size = 0x4, scoped, tag = 'scoped memory for internal_temporal_relation.1']
    %12 = vsyncpa [#allocation3], 0
    // Predicated region
    $region2: #{internal_temporal_relation.1} parent=1 // pred_check
      _
    $region3: #{internal_temporal_relation.1} parent=1 // pred_check_branch
      %14 = sbr.rel (0) target = $region5
    $region4: #{internal_temporal_relation.1} parent=1 // pred_region
      _
    $region5: #{internal_temporal_relation.1} parent=1 // pred_fallthru
      _
    // Predicated region
    $region6: #{internal_temporal_relation.1} parent=1 // pred_check
      _
    $region7: #{internal_temporal_relation.1} parent=1 // pred_check_branch
      %16 = sbr.rel (0) target = $region9
    $region8: #{internal_temporal_relation.1} parent=1 // pred_region
      _
    $region9: #{internal_temporal_relation.1} parent=1 // pred_fallthru
      _
    // Predicated region
    $region10: #{internal_temporal_relation.1} parent=1 // pred_check
      _
    $region11: #{internal_temporal_relation.1} parent=1 // pred_check_branch
      %18 = sbr.rel (0) target = $region13
    $region12: #{internal_temporal_relation.1} parent=1 // pred_region
      _
    $region13: #{internal_temporal_relation.1} parent=1 // pred_fallthru
      _
    // Predicated region
    $region14: #{internal_temporal_relation.1} parent=1 // pred_check
      _
    $region15: #{internal_temporal_relation.1} parent=1 // pred_check_branch
      %20 = sbr.rel (0) target = $region17
    $region16: #{internal_temporal_relation.1} parent=1 // pred_region
      _
    $region17: #{internal_temporal_relation.1} parent=1 // pred_fallthru
      _
    // Predicated region
    $region18: #{internal_temporal_relation.1} parent=1 // pred_check
      _
    $region19: #{internal_temporal_relation.1} parent=1 // pred_check_branch
      %22 = sbr.rel (0) target = $region21
    $region20: #{internal_temporal_relation.1} parent=1 // pred_region
      _
    $region21: #{internal_temporal_relation.1} parent=1 // pred_fallthru
      _
    // Predicated region
    $region22: #{internal_temporal_relation.1} parent=1 // pred_check
      _
    $region23: #{internal_temporal_relation.1} parent=1 // pred_check_branch
      %24 = sbr.rel (0) target = $region25
    $region24: #{internal_temporal_relation.1} parent=1 // pred_region
      _
    $region25: #{internal_temporal_relation.1} parent=1 // pred_fallthru
      _
    // Predicated region
    $region26: #{internal_temporal_relation.1} parent=1 // pred_check
      _
    $region27: #{internal_temporal_relation.1} parent=1 // pred_check_branch
      %26 = sbr.rel (0) target = $region29
    $region28: #{internal_temporal_relation.1} parent=1 // pred_region
      _
    $region29: #{internal_temporal_relation.1} parent=1 // pred_fallthru
      _
    %v27 = vld [vmem:[%s6] sm:$0xff]
    %v28 = vld [vmem:[%s6 + $0x8] sm:$0x1]
    %v29 = vld [vmem:[%s0] sm:$0xff]
    %v30 = vld [vmem:[%s0 + $0x8] sm:$0xff]
    %v31 = vld [vmem:[%s1] sm:$0xff]
    %v32 = vld [vmem:[%s1 + $0x8] sm:$0xff]
    %v33 = vld [vmem:[%s1 + $0x10] sm:$0xff]
    %v34 = vld [vmem:[%s1 + $0x18] sm:$0xff]
    %v35 = vld [vmem:[%s1 + $0x20] sm:$0xff]
    %v36 = vld [vmem:[%s1 + $0x28] sm:$0xff]
    %v37 = vld [vmem:[%s1 + $0x30] sm:$0xff]
    %v38 = vld [vmem:[%s1 + $0x38] sm:$0xff]
    %v39 = vlaneseq
    %v40 = vshrl.u32 %v39, 7
    %v41 = vsub.s32 0, %v40
    %v42 = vrot.slane %v28, %v41
    %vm43 = vcmask 523264
    %v45 = vsel %vm43, %v29, 0
    %v48 = vsel %vm43, %v30, 0
    %50 = vmatprep.subr.mxu0 0.0
    %51 = vmatpush1.msra.mxu0 %v31
    %52 = vmatprep.subr.mxu0 0.0
    %53 = vmatpush1.msra.mxu0 %v32
    %54 = vmatprep.subr.mxu0 0.0
    %55 = vmatpush1.msra.mxu0 %v33
    %56 = vmatprep.subr.mxu0 0.0
    %57 = vmatpush1.msra.mxu0 %v34
    %58 = vmatprep.subr.mxu0 0.0
    %59 = vmatpush1.msra.mxu0 %v35
    %60 = vmatprep.subr.mxu0 0.0
    %61 = vmatpush1.msra.mxu0 %v36
    %62 = vmatprep.subr.mxu0 0.0
    %63 = vmatpush1.msra.mxu0 %v37
    %64 = vmatprep.subr.mxu0 0.0
    %65 = vmatpush1.msra.mxu0 %v38
    %66 = vmatprep.subr.mxu0 0.0
    %67 = vmatpush1.msra.mxu0 0.0
    %68 = vmatprep.subr.mxu0 0.0
    %69 = vmatpush1.msra.mxu0 0.0
    %70 = vmatprep.subr.mxu0 0.0
    %71 = vmatpush1.msra.mxu0 0.0
    %72 = vmatprep.subr.mxu0 0.0
    %73 = vmatpush1.msra.mxu0 0.0
    %74 = vmatprep.subr.mxu0 0.0
    %75 = vmatpush1.msra.mxu0 0.0
    %76 = vmatprep.subr.mxu0 0.0
    %77 = vmatpush1.msra.mxu0 0.0
    %78 = vmatprep.subr.mxu0 0.0
    %79 = vmatpush1.msra.mxu0 0.0
    %80 = vmatprep.subr.mxu0 0.0
    %81 = vmatpush1.msra.mxu0 0.0
    %82 = vmatprep.subr.mxu0 0.0
    %83 = vmatpush1.msra.mxu0 0.0
    %84 = vmatprep.subr.mxu0 0.0
    %85 = vmatpush1.msra.mxu0 0.0
    %86 = vmatprep.subr.mxu0 0.0
    %87 = vmatpush1.msra.mxu0 0.0
    %88 = vmatprep.subr.mxu0 0.0
    %89 = vmatpush1.msra.mxu0 0.0
    %90 = vmatprep.subr.mxu0 0.0
    %91 = vmatpush1.msra.mxu0 0.0
    %92 = vmatprep.subr.mxu0 0.0
    %93 = vmatpush1.msra.mxu0 0.0
    %94 = vmatprep.subr.mxu0 0.0
    %95 = vmatpush1.msra.mxu0 0.0
    %96 = vmatprep.subr.mxu0 0.0
    %97 = vmatpush1.msra.mxu0 0.0
    %98 = vmatprep.subr.mxu0 0.0
    %99 = vmatpush1.msra.mxu0 0.0
    %100 = vmatprep.subr.mxu0 0.0
    %101 = vmatpush1.msra.mxu0 0.0
    %102 = vmatprep.subr.mxu0 0.0
    %103 = vmatpush1.msra.mxu0 0.0
    %104 = vmatprep.subr.mxu0 0.0
    %105 = vmatpush1.msra.mxu0 0.0
    %106 = vmatprep.subr.mxu0 0.0
    %107 = vmatpush1.msra.mxu0 0.0
    %108 = vmatprep.subr.mxu0 0.0
    %109 = vmatpush1.msra.mxu0 0.0
    %110 = vmatprep.subr.mxu0 0.0
    %111 = vmatpush1.msra.mxu0 0.0
    %112 = vmatprep.subr.mxu0 0.0
    %113 = vmatpush1.msra.mxu0 0.0
    %114 = vmatprep.mubr.f32.mxu0 0.0
    %115 = vmatmul.mubr.f32.gmra.mrb[0].mxu0 %v45
    %v116 = vpop.f32.mrb[0].mxu0
    %v117 = vadd.f32 %v42, %v116
    %v118 = vpop.f32.mrb[0].mxu0
    %119 = vmatprep.mubr.f32.mxu0 0.0
    %120 = vmatmul.mubr.f32.gmra.mrb[0].mxu0 %v48
    %v121 = vpop.f32.mrb[0].mxu0
    %v122 = vadd.f32 %v42, %v121
    %v123 = vpop.f32.mrb[0].mxu0
    %124 = vdwg.mxu0
    %v125 = vlaneseq
    %v126 = vshrl.u32 %v125, 7
    %v127 = vadd.s32 %v126, 8
    %v128 = vlaneseq
    %v129 = vand.u32 %v128, 127
    %vm130 = vcmp.lt.s32.totalorder %v126, 0
    %v131 = vsub.s32 0, %v126
    %v132 = vsel %vm130, %v131, %v126
    %v133 = vshrl.u32 %v132, 1
    %v134 = vand.u32 %v132, 1
    %v135 = vsub.s32 0, %v134
    %v136 = vsel %vm130, %v135, %v134
    %vm137 = vcmp.lt.s32.totalorder %v127, 0
    %v138 = vsub.s32 0, %v127
    %v139 = vsel %vm137, %v138, %v127
    %v140 = vshrl.u32 %v139, 1
    %v141 = vand.u32 %v139, 1
    %v142 = vsub.s32 0, %v141
    %v143 = vsel %vm137, %v142, %v141
    %vm144 = vcmp.ne.s32.totalorder %v136, 0
    %vm145 = vcmp.ne.s32.totalorder %v143, 0
    %vm146 = vcmp.lt.s32.totalorder %v136, 0
    %vm147 = vcmp.lt.s32.totalorder %v143, 0
    %vm148 = vmand %vm146, %vm144
    %vm149 = vmand %vm147, %vm145
    %v150 = vadd.s32 %v136, 2
    %v151 = vadd.s32 %v143, 2
    %v152 = vsel %vm148, %v150, %v136
    %v153 = vsel %vm149, %v151, %v143
    %vm154 = vcmp.lt.s32.totalorder %v129, 0
    %v155 = vsub.s32 0, %v129
    %v156 = vsel %vm154, %v155, %v129
    %v157 = vshrl.u32 %v156, 1
    %v158 = vand.u32 %v156, 1
    %v159 = vsub.s32 0, %v158
    %v160 = vsel %vm154, %v159, %v158
    %vm161 = vcmp.ne.s32.totalorder %v160, 0
    %vm162 = vcmp.lt.s32.totalorder %v160, 0
    %vm163 = vmand %vm162, %vm161
    %v164 = vadd.s32 %v160, 2
    %v165 = vsel %vm163, %v164, %v160
    %vm166 = vcmp.eq.s32.totalorder %v152, %v165
    %vm167 = vcmp.eq.s32.totalorder %v153, %v165
    %v168 = vsel %vm166, 0.0, -1e+30
    %v169 = vsel %vm167, 0.0, -1e+30
    %v170 = vld [vmem:[%s2] sm:$0xff]
    %v171 = vld [vmem:[%s2 + $0x8] sm:$0xff]
    %v172 = vld [vmem:[%s2 + $0x10] sm:$0xff]
    %v173 = vld [vmem:[%s2 + $0x18] sm:$0xff]
    %v174 = vlaneseq
    %v175 = vshrl.u32 %v174, 7
    %v176 = vsub.s32 0, %v175
    %v177 = vrot.slane %v27, %v176
    %vm178 = vcmask 261120
    %v180 = vsel %vm178, %v117, 0
    %v183 = vsel %vm178, %v122, 0
    %185 = vmatprep.subr.mxu0 0.0
    %186 = vmatpush1.msra.mxu0 %v170
    %187 = vmatprep.subr.mxu0 0.0
    %188 = vmatpush1.msra.mxu0 %v171
    %189 = vmatprep.subr.mxu0 0.0
    %190 = vmatpush1.msra.mxu0 %v172
    %191 = vmatprep.subr.mxu0 0.0
    %192 = vmatpush1.msra.mxu0 %v173
    %193 = vmatprep.subr.mxu0 0.0
    %194 = vmatpush1.msra.mxu0 0.0
    %195 = vmatprep.subr.mxu0 0.0
    %196 = vmatpush1.msra.mxu0 0.0
    %197 = vmatprep.subr.mxu0 0.0
    %198 = vmatpush1.msra.mxu0 0.0
    %199 = vmatprep.subr.mxu0 0.0
    %200 = vmatpush1.msra.mxu0 0.0
    %201 = vmatprep.subr.mxu0 0.0
    %202 = vmatpush1.msra.mxu0 0.0
    %203 = vmatprep.subr.mxu0 0.0
    %204 = vmatpush1.msra.mxu0 0.0
    %205 = vmatprep.subr.mxu0 0.0
    %206 = vmatpush1.msra.mxu0 0.0
    %207 = vmatprep.subr.mxu0 0.0
    %208 = vmatpush1.msra.mxu0 0.0
    %209 = vmatprep.subr.mxu0 0.0
    %210 = vmatpush1.msra.mxu0 0.0
    %211 = vmatprep.subr.mxu0 0.0
    %212 = vmatpush1.msra.mxu0 0.0
    %213 = vmatprep.subr.mxu0 0.0
    %214 = vmatpush1.msra.mxu0 0.0
    %215 = vmatprep.subr.mxu0 0.0
    %216 = vmatpush1.msra.mxu0 0.0
    %217 = vmatprep.subr.mxu0 0.0
    %218 = vmatpush1.msra.mxu0 0.0
    %219 = vmatprep.subr.mxu0 0.0
    %220 = vmatpush1.msra.mxu0 0.0
    %221 = vmatprep.subr.mxu0 0.0
    %222 = vmatpush1.msra.mxu0 0.0
    %223 = vmatprep.subr.mxu0 0.0
    %224 = vmatpush1.msra.mxu0 0.0
    %225 = vmatprep.subr.mxu0 0.0
    %226 = vmatpush1.msra.mxu0 0.0
    %227 = vmatprep.subr.mxu0 0.0
    %228 = vmatpush1.msra.mxu0 0.0
    %229 = vmatprep.subr.mxu0 0.0
    %230 = vmatpush1.msra.mxu0 0.0
    %231 = vmatprep.subr.mxu0 0.0
    %232 = vmatpush1.msra.mxu0 0.0
    %233 = vmatprep.subr.mxu0 0.0
    %234 = vmatpush1.msra.mxu0 0.0
    %235 = vmatprep.subr.mxu0 0.0
    %236 = vmatpush1.msra.mxu0 0.0
    %237 = vmatprep.subr.mxu0 0.0
    %238 = vmatpush1.msra.mxu0 0.0
    %239 = vmatprep.subr.mxu0 0.0
    %240 = vmatpush1.msra.mxu0 0.0
    %241 = vmatprep.subr.mxu0 0.0
    %242 = vmatpush1.msra.mxu0 0.0
    %243 = vmatprep.subr.mxu0 0.0
    %244 = vmatpush1.msra.mxu0 0.0
    %245 = vmatprep.subr.mxu0 0.0
    %246 = vmatpush1.msra.mxu0 0.0
    %247 = vmatprep.subr.mxu0 0.0
    %248 = vmatpush1.msra.mxu0 0.0
    %249 = vmatprep.mubr.f32.mxu0 0.0
    %250 = vmatmul.mubr.f32.gmra.mrb[0].mxu0 %v180
    %v251 = vpop.f32.mrb[0].mxu0
    %v252 = vadd.f32 %v177, %v251
    %v253 = vpop.f32.mrb[0].mxu0
    %254 = vmatprep.mubr.f32.mxu0 0.0
    %255 = vmatmul.mubr.f32.gmra.mrb[0].mxu0 %v183
    %v256 = vpop.f32.mrb[0].mxu0
    %v257 = vadd.f32 %v177, %v256
    %v258 = vpop.f32.mrb[0].mxu0
    %259 = vdwg.mxu0
    %v260 = vld [vmem:[%s3] sm:$0xff]
    %v261 = vld [vmem:[%s3 + $0x8] sm:$0xff]
    %v262 = vld [vmem:[%s3 + $0x10] sm:$0xff]
    %v263 = vld [vmem:[%s3 + $0x18] sm:$0xff]
    %266 = vrot.lane.b32.xlu0 %v252, 96
    %v267 = vpop.permute.xlu0 %266
    %268 = vrot.lane.b32.xlu0 %v257, 96
    %v269 = vpop.permute.xlu0 %268
    %vm270 = vcmask 64512
    %v271 = vsel %vm270, %v252, 0
    %v273 = vsel %vm270, %v257, 0
    %v275 = vsel %vm270, %v267, 0
    %v277 = vsel %vm270, %v269, 0
    %279 = vmatprep.subr.mxu0 0.0
    %280 = vmatpush1.xpose.msra.mxu0 %v275
    %281 = vmatprep.subr.mxu0 0.0
    %282 = vmatpush1.xpose.msra.mxu0 %v277
    %283 = vmatprep.subr.mxu0 0.0
    %284 = vmatpush1.xpose.msra.mxu0 0.0
    %285 = vmatprep.subr.mxu0 0.0
    %286 = vmatpush1.xpose.msra.mxu0 0.0
    %287 = vmatprep.subr.mxu0 0.0
    %288 = vmatpush1.xpose.msra.mxu0 0.0
    %289 = vmatprep.subr.mxu0 0.0
    %290 = vmatpush1.xpose.msra.mxu0 0.0
    %291 = vmatprep.subr.mxu0 0.0
    %292 = vmatpush1.xpose.msra.mxu0 0.0
    %293 = vmatprep.subr.mxu0 0.0
    %294 = vmatpush1.xpose.msra.mxu0 0.0
    %295 = vmatprep.subr.mxu0 0.0
    %296 = vmatpush1.xpose.msra.mxu0 0.0
    %297 = vmatprep.subr.mxu0 0.0
    %298 = vmatpush1.xpose.msra.mxu0 0.0
    %299 = vmatprep.subr.mxu0 0.0
    %300 = vmatpush1.xpose.msra.mxu0 0.0
    %301 = vmatprep.subr.mxu0 0.0
    %302 = vmatpush1.xpose.msra.mxu0 0.0
    %303 = vmatprep.subr.mxu0 0.0
    %304 = vmatpush1.xpose.msra.mxu0 0.0
    %305 = vmatprep.subr.mxu0 0.0
    %306 = vmatpush1.xpose.msra.mxu0 0.0
    %307 = vmatprep.subr.mxu0 0.0
    %308 = vmatpush1.xpose.msra.mxu0 0.0
    %309 = vmatprep.subr.mxu0 0.0
    %310 = vmatpush1.xpose.msra.mxu0 0.0
    %311 = vmatprep.subr.mxu0 0.0
    %312 = vmatpush1.xpose.msra.mxu0 0.0
    %313 = vmatprep.subr.mxu0 0.0
    %314 = vmatpush1.xpose.msra.mxu0 0.0
    %315 = vmatprep.subr.mxu0 0.0
    %316 = vmatpush1.xpose.msra.mxu0 0.0
    %317 = vmatprep.subr.mxu0 0.0
    %318 = vmatpush1.xpose.msra.mxu0 0.0
    %319 = vmatprep.subr.mxu0 0.0
    %320 = vmatpush1.xpose.msra.mxu0 0.0
    %321 = vmatprep.subr.mxu0 0.0
    %322 = vmatpush1.xpose.msra.mxu0 0.0
    %323 = vmatprep.subr.mxu0 0.0
    %324 = vmatpush1.xpose.msra.mxu0 0.0
    %325 = vmatprep.subr.mxu0 0.0
    %326 = vmatpush1.xpose.msra.mxu0 0.0
    %327 = vmatprep.subr.mxu0 0.0
    %328 = vmatpush1.xpose.msra.mxu0 0.0
    %329 = vmatprep.subr.mxu0 0.0
    %330 = vmatpush1.xpose.msra.mxu0 0.0
    %331 = vmatprep.subr.mxu0 0.0
    %332 = vmatpush1.xpose.msra.mxu0 0.0
    %333 = vmatprep.subr.mxu0 0.0
    %334 = vmatpush1.xpose.msra.mxu0 0.0
    %335 = vmatprep.subr.mxu0 0.0
    %336 = vmatpush1.xpose.msra.mxu0 0.0
    %337 = vmatprep.subr.mxu0 0.0
    %338 = vmatpush1.xpose.msra.mxu0 0.0
    %339 = vmatprep.subr.mxu0 0.0
    %340 = vmatpush1.xpose.msra.mxu0 0.0
    %341 = vmatprep.subr.mxu0 0.0
    %342 = vmatpush1.xpose.msra.mxu0 0.0
    %343 = vmatprep.mubr.f32.mxu0 0.0
    %344 = vmatmul.mubr.f32.gmra.mrb[0].mxu0 %v271
    %v345 = vpop.f32.mrb[0].mxu0
    %v346 = vadd.f32 %v168, %v345
    %v347 = vpop.f32.mrb[0].mxu0
    %348 = vmatprep.mubr.f32.mxu0 0.0
    %349 = vmatmul.mubr.f32.gmra.mrb[0].mxu0 %v273
    %v350 = vpop.f32.mrb[0].mxu0
    %v351 = vadd.f32 %v169, %v350
    %v352 = vpop.f32.mrb[0].mxu0
    %353 = vdwg.mxu0
    %vm354 = vcmask 130048
    %v355 = vsel %vm354, %v346, -inf
    %356 = vmax.xlane.f32.xlu0 %v355
    %v357 = vpop.xlane.xlu0 %356
    %v358 = vsel %vm354, %v351, -inf
    %359 = vmax.xlane.f32.xlu0 %v358
    %v360 = vpop.xlane.xlu0 %359
    %v361 = vsub.f32 %v346, %v357
    %v362 = vsub.f32 %v351, %v360
    %v363 = vmul.f32 %v361, 1.442695
    %v364 = vpow.pop %v363
    %v365 = vmul.f32 %v362, 1.442695
    %v366 = vpow.pop %v365
    %v367 = vsel %vm354, %v364, 0.0
    %368 = vadd.xlane.f32.xlu0 %v367
    %v369 = vpop.xlane.xlu0 %368
    %v370 = vsel %vm354, %v366, 0.0
    %371 = vadd.xlane.f32.xlu0 %v370
    %v372 = vpop.xlane.xlu0 %371
    %v373 = vrcp.pop %v369
    %v374 = vrcp.pop %v372
    %v375 = vmul.f32 %v364, %v373
    %v376 = vmul.f32 %v366, %v374
    %377 = vrot.lane.b32.xlu0 %v252, 64
    %v378 = vpop.permute.xlu0 %377
    %379 = vrot.lane.b32.xlu0 %v257, 64
    %v380 = vpop.permute.xlu0 %379
    %v384 = vsel %vm354, %v375, 0
    %v387 = vsel %vm354, %v376, 0
    %389 = vmatprep.subr.mxu0 0.0
    %390 = vmatpush1.msra.mxu0 %v378
    %391 = vmatprep.subr.mxu0 0.0
    %392 = vmatpush1.msra.mxu0 %v380
    %393 = vmatprep.subr.mxu0 0.0
    %394 = vmatpush1.msra.mxu0 0.0
    %395 = vmatprep.subr.mxu0 0.0
    %396 = vmatpush1.msra.mxu0 0.0
    %397 = vmatprep.subr.mxu0 0.0
    %398 = vmatpush1.msra.mxu0 0.0
    %399 = vmatprep.subr.mxu0 0.0
    %400 = vmatpush1.msra.mxu0 0.0
    %401 = vmatprep.subr.mxu0 0.0
    %402 = vmatpush1.msra.mxu0 0.0
    %403 = vmatprep.subr.mxu0 0.0
    %404 = vmatpush1.msra.mxu0 0.0
    %405 = vmatprep.subr.mxu0 0.0
    %406 = vmatpush1.msra.mxu0 0.0
    %407 = vmatprep.subr.mxu0 0.0
    %408 = vmatpush1.msra.mxu0 0.0
    %409 = vmatprep.subr.mxu0 0.0
    %410 = vmatpush1.msra.mxu0 0.0
    %411 = vmatprep.subr.mxu0 0.0
    %412 = vmatpush1.msra.mxu0 0.0
    %413 = vmatprep.subr.mxu0 0.0
    %414 = vmatpush1.msra.mxu0 0.0
    %415 = vmatprep.subr.mxu0 0.0
    %416 = vmatpush1.msra.mxu0 0.0
    %417 = vmatprep.subr.mxu0 0.0
    %418 = vmatpush1.msra.mxu0 0.0
    %419 = vmatprep.subr.mxu0 0.0
    %420 = vmatpush1.msra.mxu0 0.0
    %421 = vmatprep.subr.mxu0 0.0
    %422 = vmatpush1.msra.mxu0 0.0
    %423 = vmatprep.subr.mxu0 0.0
    %424 = vmatpush1.msra.mxu0 0.0
    %425 = vmatprep.subr.mxu0 0.0
    %426 = vmatpush1.msra.mxu0 0.0
    %427 = vmatprep.subr.mxu0 0.0
    %428 = vmatpush1.msra.mxu0 0.0
    %429 = vmatprep.subr.mxu0 0.0
    %430 = vmatpush1.msra.mxu0 0.0
    %431 = vmatprep.subr.mxu0 0.0
    %432 = vmatpush1.msra.mxu0 0.0
    %433 = vmatprep.subr.mxu0 0.0
    %434 = vmatpush1.msra.mxu0 0.0
    %435 = vmatprep.subr.mxu0 0.0
    %436 = vmatpush1.msra.mxu0 0.0
    %437 = vmatprep.subr.mxu0 0.0
    %438 = vmatpush1.msra.mxu0 0.0
    %439 = vmatprep.subr.mxu0 0.0
    %440 = vmatpush1.msra.mxu0 0.0
    %441 = vmatprep.subr.mxu0 0.0
    %442 = vmatpush1.msra.mxu0 0.0
    %443 = vmatprep.subr.mxu0 0.0
    %444 = vmatpush1.msra.mxu0 0.0
    %445 = vmatprep.subr.mxu0 0.0
    %446 = vmatpush1.msra.mxu0 0.0
    %447 = vmatprep.subr.mxu0 0.0
    %448 = vmatpush1.msra.mxu0 0.0
    %449 = vmatprep.subr.mxu0 0.0
    %450 = vmatpush1.msra.mxu0 0.0
    %451 = vmatprep.subr.mxu0 0.0
    %452 = vmatpush1.msra.mxu0 0.0
    %453 = vmatprep.mubr.f32.mxu0 0.0
    %454 = vmatmul.mubr.f32.gmra.mrb[0].mxu0 %v384
    %v455 = vpop.f32.mrb[0].mxu0
    %v456 = vadd.f32 0.0, %v455
    %v457 = vpop.f32.mrb[0].mxu0
    %458 = vmatprep.mubr.f32.mxu0 0.0
    %459 = vmatmul.mubr.f32.gmra.mrb[0].mxu0 %v387
    %v460 = vpop.f32.mrb[0].mxu0
    %v461 = vadd.f32 0.0, %v460
    %v462 = vpop.f32.mrb[0].mxu0
    %463 = vdwg.mxu0
    %464 = vrot.lane.b32.xlu0 %v252, 120
    %v465 = vpop.permute.xlu0 %464
    %466 = vrot.lane.b32.xlu0 %v257, 120
    %v467 = vpop.permute.xlu0 %466
    %468 = vrot.lane.b32.xlu0 %v252, 88
    %v469 = vpop.permute.xlu0 %468
    %470 = vrot.lane.b32.xlu0 %v257, 88
    %v471 = vpop.permute.xlu0 %470
    %v472 = vsel %vm270, %v465, 0
    %v474 = vsel %vm270, %v467, 0
    %v476 = vsel %vm270, %v469, 0
    %v478 = vsel %vm270, %v471, 0
    %480 = vmatprep.subr.mxu0 0.0
    %481 = vmatpush1.xpose.msra.mxu0 %v476
    %482 = vmatprep.subr.mxu0 0.0
    %483 = vmatpush1.xpose.msra.mxu0 %v478
    %484 = vmatprep.subr.mxu0 0.0
    %485 = vmatpush1.xpose.msra.mxu0 0.0
    %486 = vmatprep.subr.mxu0 0.0
    %487 = vmatpush1.xpose.msra.mxu0 0.0
    %488 = vmatprep.subr.mxu0 0.0
    %489 = vmatpush1.xpose.msra.mxu0 0.0
    %490 = vmatprep.subr.mxu0 0.0
    %491 = vmatpush1.xpose.msra.mxu0 0.0
    %492 = vmatprep.subr.mxu0 0.0
    %493 = vmatpush1.xpose.msra.mxu0 0.0
    %494 = vmatprep.subr.mxu0 0.0
    %495 = vmatpush1.xpose.msra.mxu0 0.0
    %496 = vmatprep.subr.mxu0 0.0
    %497 = vmatpush1.xpose.msra.mxu0 0.0
    %498 = vmatprep.subr.mxu0 0.0
    %499 = vmatpush1.xpose.msra.mxu0 0.0
    %500 = vmatprep.subr.mxu0 0.0
    %501 = vmatpush1.xpose.msra.mxu0 0.0
    %502 = vmatprep.subr.mxu0 0.0
    %503 = vmatpush1.xpose.msra.mxu0 0.0
    %504 = vmatprep.subr.mxu0 0.0
    %505 = vmatpush1.xpose.msra.mxu0 0.0
    %506 = vmatprep.subr.mxu0 0.0
    %507 = vmatpush1.xpose.msra.mxu0 0.0
    %508 = vmatprep.subr.mxu0 0.0
    %509 = vmatpush1.xpose.msra.mxu0 0.0
    %510 = vmatprep.subr.mxu0 0.0
    %511 = vmatpush1.xpose.msra.mxu0 0.0
    %512 = vmatprep.subr.mxu0 0.0
    %513 = vmatpush1.xpose.msra.mxu0 0.0
    %514 = vmatprep.subr.mxu0 0.0
    %515 = vmatpush1.xpose.msra.mxu0 0.0
    %516 = vmatprep.subr.mxu0 0.0
    %517 = vmatpush1.xpose.msra.mxu0 0.0
    %518 = vmatprep.subr.mxu0 0.0
    %519 = vmatpush1.xpose.msra.mxu0 0.0
    %520 = vmatprep.subr.mxu0 0.0
    %521 = vmatpush1.xpose.msra.mxu0 0.0
    %522 = vmatprep.subr.mxu0 0.0
    %523 = vmatpush1.xpose.msra.mxu0 0.0
    %524 = vmatprep.subr.mxu0 0.0
    %525 = vmatpush1.xpose.msra.mxu0 0.0
    %526 = vmatprep.subr.mxu0 0.0
    %527 = vmatpush1.xpose.msra.mxu0 0.0
    %528 = vmatprep.subr.mxu0 0.0
    %529 = vmatpush1.xpose.msra.mxu0 0.0
    %530 = vmatprep.subr.mxu0 0.0
    %531 = vmatpush1.xpose.msra.mxu0 0.0
    %532 = vmatprep.subr.mxu0 0.0
    %533 = vmatpush1.xpose.msra.mxu0 0.0
    %534 = vmatprep.subr.mxu0 0.0
    %535 = vmatpush1.xpose.msra.mxu0 0.0
    %536 = vmatprep.subr.mxu0 0.0
    %537 = vmatpush1.xpose.msra.mxu0 0.0
    %538 = vmatprep.subr.mxu0 0.0
    %539 = vmatpush1.xpose.msra.mxu0 0.0
    %540 = vmatprep.subr.mxu0 0.0
    %541 = vmatpush1.xpose.msra.mxu0 0.0
    %542 = vmatprep.subr.mxu0 0.0
    %543 = vmatpush1.xpose.msra.mxu0 0.0
    %544 = vmatprep.mubr.f32.mxu0 0.0
    %545 = vmatmul.mubr.f32.gmra.mrb[0].mxu0 %v472
    %v546 = vpop.f32.mrb[0].mxu0
    %v547 = vadd.f32 %v168, %v546
    %v548 = vpop.f32.mrb[0].mxu0
    %549 = vmatprep.mubr.f32.mxu0 0.0
    %550 = vmatmul.mubr.f32.gmra.mrb[0].mxu0 %v474
    %v551 = vpop.f32.mrb[0].mxu0
    %v552 = vadd.f32 %v169, %v551
    %v553 = vpop.f32.mrb[0].mxu0
    %554 = vdwg.mxu0
    %v555 = vsel %vm354, %v547, -inf
    %556 = vmax.xlane.f32.xlu0 %v555
    %v557 = vpop.xlane.xlu0 %556
    %v558 = vsel %vm354, %v552, -inf
    %559 = vmax.xlane.f32.xlu0 %v558
    %v560 = vpop.xlane.xlu0 %559
    %v561 = vsub.f32 %v547, %v557
    %v562 = vsub.f32 %v552, %v560
    %v563 = vmul.f32 %v561, 1.442695
    %v564 = vpow.pop %v563
    %v565 = vmul.f32 %v562, 1.442695
    %v566 = vpow.pop %v565
    %v567 = vsel %vm354, %v564, 0.0
    %568 = vadd.xlane.f32.xlu0 %v567
    %v569 = vpop.xlane.xlu0 %568
    %v570 = vsel %vm354, %v566, 0.0
    %571 = vadd.xlane.f32.xlu0 %v570
    %v572 = vpop.xlane.xlu0 %571
    %v573 = vrcp.pop %v569
    %v574 = vrcp.pop %v572
    %v575 = vmul.f32 %v564, %v573
    %v576 = vmul.f32 %v566, %v574
    %577 = vrot.lane.b32.xlu0 %v252, 56
    %v578 = vpop.permute.xlu0 %577
    %579 = vrot.lane.b32.xlu0 %v257, 56
    %v580 = vpop.permute.xlu0 %579
    %v584 = vsel %vm354, %v575, 0
    %v587 = vsel %vm354, %v576, 0
    %589 = vmatprep.subr.mxu0 0.0
    %590 = vmatpush1.msra.mxu0 %v578
    %591 = vmatprep.subr.mxu0 0.0
    %592 = vmatpush1.msra.mxu0 %v580
    %593 = vmatprep.subr.mxu0 0.0
    %594 = vmatpush1.msra.mxu0 0.0
    %595 = vmatprep.subr.mxu0 0.0
    %596 = vmatpush1.msra.mxu0 0.0
    %597 = vmatprep.subr.mxu0 0.0
    %598 = vmatpush1.msra.mxu0 0.0
    %599 = vmatprep.subr.mxu0 0.0
    %600 = vmatpush1.msra.mxu0 0.0
    %601 = vmatprep.subr.mxu0 0.0
    %602 = vmatpush1.msra.mxu0 0.0
    %603 = vmatprep.subr.mxu0 0.0
    %604 = vmatpush1.msra.mxu0 0.0
    %605 = vmatprep.subr.mxu0 0.0
    %606 = vmatpush1.msra.mxu0 0.0
    %607 = vmatprep.subr.mxu0 0.0
    %608 = vmatpush1.msra.mxu0 0.0
    %609 = vmatprep.subr.mxu0 0.0
    %610 = vmatpush1.msra.mxu0 0.0
    %611 = vmatprep.subr.mxu0 0.0
    %612 = vmatpush1.msra.mxu0 0.0
    %613 = vmatprep.subr.mxu0 0.0
    %614 = vmatpush1.msra.mxu0 0.0
    %615 = vmatprep.subr.mxu0 0.0
    %616 = vmatpush1.msra.mxu0 0.0
    %617 = vmatprep.subr.mxu0 0.0
    %618 = vmatpush1.msra.mxu0 0.0
    %619 = vmatprep.subr.mxu0 0.0
    %620 = vmatpush1.msra.mxu0 0.0
    %621 = vmatprep.subr.mxu0 0.0
    %622 = vmatpush1.msra.mxu0 0.0
    %623 = vmatprep.subr.mxu0 0.0
    %624 = vmatpush1.msra.mxu0 0.0
    %625 = vmatprep.subr.mxu0 0.0
    %626 = vmatpush1.msra.mxu0 0.0
    %627 = vmatprep.subr.mxu0 0.0
    %628 = vmatpush1.msra.mxu0 0.0
    %629 = vmatprep.subr.mxu0 0.0
    %630 = vmatpush1.msra.mxu0 0.0
    %631 = vmatprep.subr.mxu0 0.0
    %632 = vmatpush1.msra.mxu0 0.0
    %633 = vmatprep.subr.mxu0 0.0
    %634 = vmatpush1.msra.mxu0 0.0
    %635 = vmatprep.subr.mxu0 0.0
    %636 = vmatpush1.msra.mxu0 0.0
    %637 = vmatprep.subr.mxu0 0.0
    %638 = vmatpush1.msra.mxu0 0.0
    %639 = vmatprep.subr.mxu0 0.0
    %640 = vmatpush1.msra.mxu0 0.0
    %641 = vmatprep.subr.mxu0 0.0
    %642 = vmatpush1.msra.mxu0 0.0
    %643 = vmatprep.subr.mxu0 0.0
    %644 = vmatpush1.msra.mxu0 0.0
    %645 = vmatprep.subr.mxu0 0.0
    %646 = vmatpush1.msra.mxu0 0.0
    %647 = vmatprep.subr.mxu0 0.0
    %648 = vmatpush1.msra.mxu0 0.0
    %649 = vmatprep.subr.mxu0 0.0
    %650 = vmatpush1.msra.mxu0 0.0
    %651 = vmatprep.subr.mxu0 0.0
    %652 = vmatpush1.msra.mxu0 0.0
    %653 = vmatprep.mubr.f32.mxu0 0.0
    %654 = vmatmul.mubr.f32.gmra.mrb[0].mxu0 %v584
    %v655 = vpop.f32.mrb[0].mxu0
    %v656 = vadd.f32 0.0, %v655
    %v657 = vpop.f32.mrb[0].mxu0
    %658 = vmatprep.mubr.f32.mxu0 0.0
    %659 = vmatmul.mubr.f32.gmra.mrb[0].mxu0 %v587
    %v660 = vpop.f32.mrb[0].mxu0
    %v661 = vadd.f32 0.0, %v660
    %v662 = vpop.f32.mrb[0].mxu0
    %663 = vdwg.mxu0
    %v665 = vsel %vm270, %v656, 0
    %v668 = vsel %vm270, %v661, 0
    %670 = vmatprep.subr.mxu0 0.0
    %671 = vmatpush1.msra.mxu0 %v261
    %672 = vmatprep.subr.mxu0 0.0
    %673 = vmatpush1.msra.mxu0 0.0
    %674 = vmatprep.subr.mxu0 0.0
    %675 = vmatpush1.msra.mxu0 0.0
    %676 = vmatprep.subr.mxu0 0.0
    %677 = vmatpush1.msra.mxu0 0.0
    %678 = vmatprep.subr.mxu0 0.0
    %679 = vmatpush1.msra.mxu0 0.0
    %680 = vmatprep.subr.mxu0 0.0
    %681 = vmatpush1.msra.mxu0 0.0
    %682 = vmatprep.subr.mxu0 0.0
    %683 = vmatpush1.msra.mxu0 0.0
    %684 = vmatprep.subr.mxu0 0.0
    %685 = vmatpush1.msra.mxu0 0.0
    %686 = vmatprep.subr.mxu0 0.0
    %687 = vmatpush1.msra.mxu0 0.0
    %688 = vmatprep.subr.mxu0 0.0
    %689 = vmatpush1.msra.mxu0 0.0
    %690 = vmatprep.subr.mxu0 0.0
    %691 = vmatpush1.msra.mxu0 0.0
    %692 = vmatprep.subr.mxu0 0.0
    %693 = vmatpush1.msra.mxu0 0.0
    %694 = vmatprep.subr.mxu0 0.0
    %695 = vmatpush1.msra.mxu0 0.0
    %696 = vmatprep.subr.mxu0 0.0
    %697 = vmatpush1.msra.mxu0 0.0
    %698 = vmatprep.subr.mxu0 0.0
    %699 = vmatpush1.msra.mxu0 0.0
    %700 = vmatprep.subr.mxu0 0.0
    %701 = vmatpush1.msra.mxu0 0.0
    %702 = vmatprep.subr.mxu0 0.0
    %703 = vmatpush1.msra.mxu0 0.0
    %704 = vmatprep.subr.mxu0 0.0
    %705 = vmatpush1.msra.mxu0 0.0
    %706 = vmatprep.subr.mxu0 0.0
    %707 = vmatpush1.msra.mxu0 0.0
    %708 = vmatprep.subr.mxu0 0.0
    %709 = vmatpush1.msra.mxu0 0.0
    %710 = vmatprep.subr.mxu0 0.0
    %711 = vmatpush1.msra.mxu0 0.0
    %712 = vmatprep.subr.mxu0 0.0
    %713 = vmatpush1.msra.mxu0 0.0
    %714 = vmatprep.subr.mxu0 0.0
    %715 = vmatpush1.msra.mxu0 0.0
    %716 = vmatprep.subr.mxu0 0.0
    %717 = vmatpush1.msra.mxu0 0.0
    %718 = vmatprep.subr.mxu0 0.0
    %719 = vmatpush1.msra.mxu0 0.0
    %720 = vmatprep.subr.mxu0 0.0
    %721 = vmatpush1.msra.mxu0 0.0
    %722 = vmatprep.subr.mxu0 0.0
    %723 = vmatpush1.msra.mxu0 0.0
    %724 = vmatprep.subr.mxu0 0.0
    %725 = vmatpush1.msra.mxu0 0.0
    %726 = vmatprep.subr.mxu0 0.0
    %727 = vmatpush1.msra.mxu0 0.0
    %728 = vmatprep.subr.mxu0 0.0
    %729 = vmatpush1.msra.mxu0 0.0
    %730 = vmatprep.subr.mxu0 0.0
    %731 = vmatpush1.msra.mxu0 0.0
    %732 = vmatprep.subr.mxu0 0.0
    %733 = vmatpush1.msra.mxu0 0.0
    %734 = vmatprep.mubr.f32.mxu0 0.0
    %735 = vmatmul.mubr.f32.gmra.mrb[0].mxu0 %v665
    %v736 = vpop.f32.mrb[0].mxu0
    %v737 = vadd.f32 0.0, %v736
    %v738 = vpop.f32.mrb[0].mxu0
    %739 = vmatprep.mubr.f32.mxu0 0.0
    %740 = vmatmul.mubr.f32.gmra.mrb[0].mxu0 %v668
    %v741 = vpop.f32.mrb[0].mxu0
    %v742 = vadd.f32 0.0, %v741
    %v743 = vpop.f32.mrb[0].mxu0
    %744 = vdwg.mxu0
    %v746 = vsel %vm270, %v456, 0
    %v749 = vsel %vm270, %v461, 0
    %751 = vmatprep.subr.mxu0 0.0
    %752 = vmatpush1.msra.mxu0 %v260
    %753 = vmatprep.subr.mxu0 0.0
    %754 = vmatpush1.msra.mxu0 0.0
    %755 = vmatprep.subr.mxu0 0.0
    %756 = vmatpush1.msra.mxu0 0.0
    %757 = vmatprep.subr.mxu0 0.0
    %758 = vmatpush1.msra.mxu0 0.0
    %759 = vmatprep.subr.mxu0 0.0
    %760 = vmatpush1.msra.mxu0 0.0
    %761 = vmatprep.subr.mxu0 0.0
    %762 = vmatpush1.msra.mxu0 0.0
    %763 = vmatprep.subr.mxu0 0.0
    %764 = vmatpush1.msra.mxu0 0.0
    %765 = vmatprep.subr.mxu0 0.0
    %766 = vmatpush1.msra.mxu0 0.0
    %767 = vmatprep.subr.mxu0 0.0
    %768 = vmatpush1.msra.mxu0 0.0
    %769 = vmatprep.subr.mxu0 0.0
    %770 = vmatpush1.msra.mxu0 0.0
    %771 = vmatprep.subr.mxu0 0.0
    %772 = vmatpush1.msra.mxu0 0.0
    %773 = vmatprep.subr.mxu0 0.0
    %774 = vmatpush1.msra.mxu0 0.0
    %775 = vmatprep.subr.mxu0 0.0
    %776 = vmatpush1.msra.mxu0 0.0
    %777 = vmatprep.subr.mxu0 0.0
    %778 = vmatpush1.msra.mxu0 0.0
    %779 = vmatprep.subr.mxu0 0.0
    %780 = vmatpush1.msra.mxu0 0.0
    %781 = vmatprep.subr.mxu0 0.0
    %782 = vmatpush1.msra.mxu0 0.0
    %783 = vmatprep.subr.mxu0 0.0
    %784 = vmatpush1.msra.mxu0 0.0
    %785 = vmatprep.subr.mxu0 0.0
    %786 = vmatpush1.msra.mxu0 0.0
    %787 = vmatprep.subr.mxu0 0.0
    %788 = vmatpush1.msra.mxu0 0.0
    %789 = vmatprep.subr.mxu0 0.0
    %790 = vmatpush1.msra.mxu0 0.0
    %791 = vmatprep.subr.mxu0 0.0
    %792 = vmatpush1.msra.mxu0 0.0
    %793 = vmatprep.subr.mxu0 0.0
    %794 = vmatpush1.msra.mxu0 0.0
    %795 = vmatprep.subr.mxu0 0.0
    %796 = vmatpush1.msra.mxu0 0.0
    %797 = vmatprep.subr.mxu0 0.0
    %798 = vmatpush1.msra.mxu0 0.0
    %799 = vmatprep.subr.mxu0 0.0
    %800 = vmatpush1.msra.mxu0 0.0
    %801 = vmatprep.subr.mxu0 0.0
    %802 = vmatpush1.msra.mxu0 0.0
    %803 = vmatprep.subr.mxu0 0.0
    %804 = vmatpush1.msra.mxu0 0.0
    %805 = vmatprep.subr.mxu0 0.0
    %806 = vmatpush1.msra.mxu0 0.0
    %807 = vmatprep.subr.mxu0 0.0
    %808 = vmatpush1.msra.mxu0 0.0
    %809 = vmatprep.subr.mxu0 0.0
    %810 = vmatpush1.msra.mxu0 0.0
    %811 = vmatprep.subr.mxu0 0.0
    %812 = vmatpush1.msra.mxu0 0.0
    %813 = vmatprep.subr.mxu0 0.0
    %814 = vmatpush1.msra.mxu0 0.0
    %815 = vmatprep.mubr.f32.mxu0 0.0
    %816 = vmatmul.mubr.f32.gmra.mrb[0].mxu0 %v746
    %v817 = vpop.f32.mrb[0].mxu0
    %v818 = vadd.f32 %v737, %v817
    %v819 = vpop.f32.mrb[0].mxu0
    %820 = vmatprep.mubr.f32.mxu0 0.0
    %821 = vmatmul.mubr.f32.gmra.mrb[0].mxu0 %v749
    %v822 = vpop.f32.mrb[0].mxu0
    %v823 = vadd.f32 %v742, %v822
    %v824 = vpop.f32.mrb[0].mxu0
    %825 = vdwg.mxu0
    %826 = vrot.lane.b32.xlu0 %v252, 112
    %v827 = vpop.permute.xlu0 %826
    %828 = vrot.lane.b32.xlu0 %v257, 112
    %v829 = vpop.permute.xlu0 %828
    %830 = vrot.lane.b32.xlu0 %v252, 80
    %v831 = vpop.permute.xlu0 %830
    %832 = vrot.lane.b32.xlu0 %v257, 80
    %v833 = vpop.permute.xlu0 %832
    %v834 = vsel %vm270, %v827, 0
    %v836 = vsel %vm270, %v829, 0
    %v838 = vsel %vm270, %v831, 0
    %v840 = vsel %vm270, %v833, 0
    %842 = vmatprep.subr.mxu0 0.0
    %843 = vmatpush1.xpose.msra.mxu0 %v838
    %844 = vmatprep.subr.mxu0 0.0
    %845 = vmatpush1.xpose.msra.mxu0 %v840
    %846 = vmatprep.subr.mxu0 0.0
    %847 = vmatpush1.xpose.msra.mxu0 0.0
    %848 = vmatprep.subr.mxu0 0.0
    %849 = vmatpush1.xpose.msra.mxu0 0.0
    %850 = vmatprep.subr.mxu0 0.0
    %851 = vmatpush1.xpose.msra.mxu0 0.0
    %852 = vmatprep.subr.mxu0 0.0
    %853 = vmatpush1.xpose.msra.mxu0 0.0
    %854 = vmatprep.subr.mxu0 0.0
    %855 = vmatpush1.xpose.msra.mxu0 0.0
    %856 = vmatprep.subr.mxu0 0.0
    %857 = vmatpush1.xpose.msra.mxu0 0.0
    %858 = vmatprep.subr.mxu0 0.0
    %859 = vmatpush1.xpose.msra.mxu0 0.0
    %860 = vmatprep.subr.mxu0 0.0
    %861 = vmatpush1.xpose.msra.mxu0 0.0
    %862 = vmatprep.subr.mxu0 0.0
    %863 = vmatpush1.xpose.msra.mxu0 0.0
    %864 = vmatprep.subr.mxu0 0.0
    %865 = vmatpush1.xpose.msra.mxu0 0.0
    %866 = vmatprep.subr.mxu0 0.0
    %867 = vmatpush1.xpose.msra.mxu0 0.0
    %868 = vmatprep.subr.mxu0 0.0
    %869 = vmatpush1.xpose.msra.mxu0 0.0
    %870 = vmatprep.subr.mxu0 0.0
    %871 = vmatpush1.xpose.msra.mxu0 0.0
    %872 = vmatprep.subr.mxu0 0.0
    %873 = vmatpush1.xpose.msra.mxu0 0.0
    %874 = vmatprep.subr.mxu0 0.0
    %875 = vmatpush1.xpose.msra.mxu0 0.0
    %876 = vmatprep.subr.mxu0 0.0
    %877 = vmatpush1.xpose.msra.mxu0 0.0
    %878 = vmatprep.subr.mxu0 0.0
    %879 = vmatpush1.xpose.msra.mxu0 0.0
    %880 = vmatprep.subr.mxu0 0.0
    %881 = vmatpush1.xpose.msra.mxu0 0.0
    %882 = vmatprep.subr.mxu0 0.0
    %883 = vmatpush1.xpose.msra.mxu0 0.0
    %884 = vmatprep.subr.mxu0 0.0
    %885 = vmatpush1.xpose.msra.mxu0 0.0
    %886 = vmatprep.subr.mxu0 0.0
    %887 = vmatpush1.xpose.msra.mxu0 0.0
    %888 = vmatprep.subr.mxu0 0.0
    %889 = vmatpush1.xpose.msra.mxu0 0.0
    %890 = vmatprep.subr.mxu0 0.0
    %891 = vmatpush1.xpose.msra.mxu0 0.0
    %892 = vmatprep.subr.mxu0 0.0
    %893 = vmatpush1.xpose.msra.mxu0 0.0
    %894 = vmatprep.subr.mxu0 0.0
    %895 = vmatpush1.xpose.msra.mxu0 0.0
    %896 = vmatprep.subr.mxu0 0.0
    %897 = vmatpush1.xpose.msra.mxu0 0.0
    %898 = vmatprep.subr.mxu0 0.0
    %899 = vmatpush1.xpose.msra.mxu0 0.0
    %900 = vmatprep.subr.mxu0 0.0
    %901 = vmatpush1.xpose.msra.mxu0 0.0
    %902 = vmatprep.subr.mxu0 0.0
    %903 = vmatpush1.xpose.msra.mxu0 0.0
    %904 = vmatprep.subr.mxu0 0.0
    %905 = vmatpush1.xpose.msra.mxu0 0.0
    %906 = vmatprep.mubr.f32.mxu0 0.0
    %907 = vmatmul.mubr.f32.gmra.mrb[0].mxu0 %v834
    %v908 = vpop.f32.mrb[0].mxu0
    %v909 = vadd.f32 %v168, %v908
    %v910 = vpop.f32.mrb[0].mxu0
    %911 = vmatprep.mubr.f32.mxu0 0.0
    %912 = vmatmul.mubr.f32.gmra.mrb[0].mxu0 %v836
    %v913 = vpop.f32.mrb[0].mxu0
    %v914 = vadd.f32 %v169, %v913
    %v915 = vpop.f32.mrb[0].mxu0
    %916 = vdwg.mxu0
    %v917 = vsel %vm354, %v909, -inf
    %918 = vmax.xlane.f32.xlu0 %v917
    %v919 = vpop.xlane.xlu0 %918
    %v920 = vsel %vm354, %v914, -inf
    %921 = vmax.xlane.f32.xlu0 %v920
    %v922 = vpop.xlane.xlu0 %921
    %v923 = vsub.f32 %v909, %v919
    %v924 = vsub.f32 %v914, %v922
    %v925 = vmul.f32 %v923, 1.442695
    %v926 = vpow.pop %v925
    %v927 = vmul.f32 %v924, 1.442695
    %v928 = vpow.pop %v927
    %v929 = vsel %vm354, %v926, 0.0
    %930 = vadd.xlane.f32.xlu0 %v929
    %v931 = vpop.xlane.xlu0 %930
    %v932 = vsel %vm354, %v928, 0.0
    %933 = vadd.xlane.f32.xlu0 %v932
    %v934 = vpop.xlane.xlu0 %933
    %v935 = vrcp.pop %v931
    %v936 = vrcp.pop %v934
    %v937 = vmul.f32 %v926, %v935
    %v938 = vmul.f32 %v928, %v936
    %939 = vrot.lane.b32.xlu0 %v252, 48
    %v940 = vpop.permute.xlu0 %939
    %941 = vrot.lane.b32.xlu0 %v257, 48
    %v942 = vpop.permute.xlu0 %941
    %v946 = vsel %vm354, %v937, 0
    %v949 = vsel %vm354, %v938, 0
    %951 = vmatprep.subr.mxu0 0.0
    %952 = vmatpush1.msra.mxu0 %v940
    %953 = vmatprep.subr.mxu0 0.0
    %954 = vmatpush1.msra.mxu0 %v942
    %955 = vmatprep.subr.mxu0 0.0
    %956 = vmatpush1.msra.mxu0 0.0
    %957 = vmatprep.subr.mxu0 0.0
    %958 = vmatpush1.msra.mxu0 0.0
    %959 = vmatprep.subr.mxu0 0.0
    %960 = vmatpush1.msra.mxu0 0.0
    %961 = vmatprep.subr.mxu0 0.0
    %962 = vmatpush1.msra.mxu0 0.0
    %963 = vmatprep.subr.mxu0 0.0
    %964 = vmatpush1.msra.mxu0 0.0
    %965 = vmatprep.subr.mxu0 0.0
    %966 = vmatpush1.msra.mxu0 0.0
    %967 = vmatprep.subr.mxu0 0.0
    %968 = vmatpush1.msra.mxu0 0.0
    %969 = vmatprep.subr.mxu0 0.0
    %970 = vmatpush1.msra.mxu0 0.0
    %971 = vmatprep.subr.mxu0 0.0
    %972 = vmatpush1.msra.mxu0 0.0
    %973 = vmatprep.subr.mxu0 0.0
    %974 = vmatpush1.msra.mxu0 0.0
    %975 = vmatprep.subr.mxu0 0.0
    %976 = vmatpush1.msra.mxu0 0.0
    %977 = vmatprep.subr.mxu0 0.0
    %978 = vmatpush1.msra.mxu0 0.0
    %979 = vmatprep.subr.mxu0 0.0
    %980 = vmatpush1.msra.mxu0 0.0
    %981 = vmatprep.subr.mxu0 0.0
    %982 = vmatpush1.msra.mxu0 0.0
    %983 = vmatprep.subr.mxu0 0.0
    %984 = vmatpush1.msra.mxu0 0.0
    %985 = vmatprep.subr.mxu0 0.0
    %986 = vmatpush1.msra.mxu0 0.0
    %987 = vmatprep.subr.mxu0 0.0
    %988 = vmatpush1.msra.mxu0 0.0
    %989 = vmatprep.subr.mxu0 0.0
    %990 = vmatpush1.msra.mxu0 0.0
    %991 = vmatprep.subr.mxu0 0.0
    %992 = vmatpush1.msra.mxu0 0.0
    %993 = vmatprep.subr.mxu0 0.0
    %994 = vmatpush1.msra.mxu0 0.0
    %995 = vmatprep.subr.mxu0 0.0
    %996 = vmatpush1.msra.mxu0 0.0
    %997 = vmatprep.subr.mxu0 0.0
    %998 = vmatpush1.msra.mxu0 0.0
    %999 = vmatprep.subr.mxu0 0.0
    %1000 = vmatpush1.msra.mxu0 0.0
    %1001 = vmatprep.subr.mxu0 0.0
    %1002 = vmatpush1.msra.mxu0 0.0
    %1003 = vmatprep.subr.mxu0 0.0
    %1004 = vmatpush1.msra.mxu0 0.0
    %1005 = vmatprep.subr.mxu0 0.0
    %1006 = vmatpush1.msra.mxu0 0.0
    %1007 = vmatprep.subr.mxu0 0.0
    %1008 = vmatpush1.msra.mxu0 0.0
    %1009 = vmatprep.subr.mxu0 0.0
    %1010 = vmatpush1.msra.mxu0 0.0
    %1011 = vmatprep.subr.mxu0 0.0
    %1012 = vmatpush1.msra.mxu0 0.0
    %1013 = vmatprep.subr.mxu0 0.0
    %1014 = vmatpush1.msra.mxu0 0.0
    %1015 = vmatprep.mubr.f32.mxu0 0.0
    %1016 = vmatmul.mubr.f32.gmra.mrb[0].mxu0 %v946
    %v1017 = vpop.f32.mrb[0].mxu0
    %v1018 = vadd.f32 0.0, %v1017
    %v1019 = vpop.f32.mrb[0].mxu0
    %1020 = vmatprep.mubr.f32.mxu0 0.0
    %1021 = vmatmul.mubr.f32.gmra.mrb[0].mxu0 %v949
    %v1022 = vpop.f32.mrb[0].mxu0
    %v1023 = vadd.f32 0.0, %v1022
    %v1024 = vpop.f32.mrb[0].mxu0
    %1025 = vdwg.mxu0
    %v1027 = vsel %vm270, %v1018, 0
    %v1030 = vsel %vm270, %v1023, 0
    %1032 = vmatprep.subr.mxu0 0.0
    %1033 = vmatpush1.msra.mxu0 %v262
    %1034 = vmatprep.subr.mxu0 0.0
    %1035 = vmatpush1.msra.mxu0 0.0
    %1036 = vmatprep.subr.mxu0 0.0
    %1037 = vmatpush1.msra.mxu0 0.0
    %1038 = vmatprep.subr.mxu0 0.0
    %1039 = vmatpush1.msra.mxu0 0.0
    %1040 = vmatprep.subr.mxu0 0.0
    %1041 = vmatpush1.msra.mxu0 0.0
    %1042 = vmatprep.subr.mxu0 0.0
    %1043 = vmatpush1.msra.mxu0 0.0
    %1044 = vmatprep.subr.mxu0 0.0
    %1045 = vmatpush1.msra.mxu0 0.0
    %1046 = vmatprep.subr.mxu0 0.0
    %1047 = vmatpush1.msra.mxu0 0.0
    %1048 = vmatprep.subr.mxu0 0.0
    %1049 = vmatpush1.msra.mxu0 0.0
    %1050 = vmatprep.subr.mxu0 0.0
    %1051 = vmatpush1.msra.mxu0 0.0
    %1052 = vmatprep.subr.mxu0 0.0
    %1053 = vmatpush1.msra.mxu0 0.0
    %1054 = vmatprep.subr.mxu0 0.0
    %1055 = vmatpush1.msra.mxu0 0.0
    %1056 = vmatprep.subr.mxu0 0.0
    %1057 = vmatpush1.msra.mxu0 0.0
    %1058 = vmatprep.subr.mxu0 0.0
    %1059 = vmatpush1.msra.mxu0 0.0
    %1060 = vmatprep.subr.mxu0 0.0
    %1061 = vmatpush1.msra.mxu0 0.0
    %1062 = vmatprep.subr.mxu0 0.0
    %1063 = vmatpush1.msra.mxu0 0.0
    %1064 = vmatprep.subr.mxu0 0.0
    %1065 = vmatpush1.msra.mxu0 0.0
    %1066 = vmatprep.subr.mxu0 0.0
    %1067 = vmatpush1.msra.mxu0 0.0
    %1068 = vmatprep.subr.mxu0 0.0
    %1069 = vmatpush1.msra.mxu0 0.0
    %1070 = vmatprep.subr.mxu0 0.0
    %1071 = vmatpush1.msra.mxu0 0.0
    %1072 = vmatprep.subr.mxu0 0.0
    %1073 = vmatpush1.msra.mxu0 0.0
    %1074 = vmatprep.subr.mxu0 0.0
    %1075 = vmatpush1.msra.mxu0 0.0
    %1076 = vmatprep.subr.mxu0 0.0
    %1077 = vmatpush1.msra.mxu0 0.0
    %1078 = vmatprep.subr.mxu0 0.0
    %1079 = vmatpush1.msra.mxu0 0.0
    %1080 = vmatprep.subr.mxu0 0.0
    %1081 = vmatpush1.msra.mxu0 0.0
    %1082 = vmatprep.subr.mxu0 0.0
    %1083 = vmatpush1.msra.mxu0 0.0
    %1084 = vmatprep.subr.mxu0 0.0
    %1085 = vmatpush1.msra.mxu0 0.0
    %1086 = vmatprep.subr.mxu0 0.0
    %1087 = vmatpush1.msra.mxu0 0.0
    %1088 = vmatprep.subr.mxu0 0.0
    %1089 = vmatpush1.msra.mxu0 0.0
    %1090 = vmatprep.subr.mxu0 0.0
    %1091 = vmatpush1.msra.mxu0 0.0
    %1092 = vmatprep.subr.mxu0 0.0
    %1093 = vmatpush1.msra.mxu0 0.0
    %1094 = vmatprep.subr.mxu0 0.0
    %1095 = vmatpush1.msra.mxu0 0.0
    %1096 = vmatprep.mubr.f32.mxu0 0.0
    %1097 = vmatmul.mubr.f32.gmra.mrb[0].mxu0 %v1027
    %v1098 = vpop.f32.mrb[0].mxu0
    %v1099 = vadd.f32 0.0, %v1098
    %v1100 = vpop.f32.mrb[0].mxu0
    %1101 = vmatprep.mubr.f32.mxu0 0.0
    %1102 = vmatmul.mubr.f32.gmra.mrb[0].mxu0 %v1030
    %v1103 = vpop.f32.mrb[0].mxu0
    %v1104 = vadd.f32 0.0, %v1103
    %v1105 = vpop.f32.mrb[0].mxu0
    %1106 = vdwg.mxu0
    %v1107 = vadd.f32 %v818, %v1099
    %v1108 = vadd.f32 %v823, %v1104
    %1109 = vrot.lane.b32.xlu0 %v252, 104
    %v1110 = vpop.permute.xlu0 %1109
    %1111 = vrot.lane.b32.xlu0 %v257, 104
    %v1112 = vpop.permute.xlu0 %1111
    %1113 = vrot.lane.b32.xlu0 %v252, 72
    %v1114 = vpop.permute.xlu0 %1113
    %1115 = vrot.lane.b32.xlu0 %v257, 72
    %v1116 = vpop.permute.xlu0 %1115
    %v1117 = vsel %vm270, %v1110, 0
    %v1119 = vsel %vm270, %v1112, 0
    %v1121 = vsel %vm270, %v1114, 0
    %v1123 = vsel %vm270, %v1116, 0
    %1125 = vmatprep.subr.mxu0 0.0
    %1126 = vmatpush1.xpose.msra.mxu0 %v1121
    %1127 = vmatprep.subr.mxu0 0.0
    %1128 = vmatpush1.xpose.msra.mxu0 %v1123
    %1129 = vmatprep.subr.mxu0 0.0
    %1130 = vmatpush1.xpose.msra.mxu0 0.0
    %1131 = vmatprep.subr.mxu0 0.0
    %1132 = vmatpush1.xpose.msra.mxu0 0.0
    %1133 = vmatprep.subr.mxu0 0.0
    %1134 = vmatpush1.xpose.msra.mxu0 0.0
    %1135 = vmatprep.subr.mxu0 0.0
    %1136 = vmatpush1.xpose.msra.mxu0 0.0
    %1137 = vmatprep.subr.mxu0 0.0
    %1138 = vmatpush1.xpose.msra.mxu0 0.0
    %1139 = vmatprep.subr.mxu0 0.0
    %1140 = vmatpush1.xpose.msra.mxu0 0.0
    %1141 = vmatprep.subr.mxu0 0.0
    %1142 = vmatpush1.xpose.msra.mxu0 0.0
    %1143 = vmatprep.subr.mxu0 0.0
    %1144 = vmatpush1.xpose.msra.mxu0 0.0
    %1145 = vmatprep.subr.mxu0 0.0
    %1146 = vmatpush1.xpose.msra.mxu0 0.0
    %1147 = vmatprep.subr.mxu0 0.0
    %1148 = vmatpush1.xpose.msra.mxu0 0.0
    %1149 = vmatprep.subr.mxu0 0.0
    %1150 = vmatpush1.xpose.msra.mxu0 0.0
    %1151 = vmatprep.subr.mxu0 0.0
    %1152 = vmatpush1.xpose.msra.mxu0 0.0
    %1153 = vmatprep.subr.mxu0 0.0
    %1154 = vmatpush1.xpose.msra.mxu0 0.0
    %1155 = vmatprep.subr.mxu0 0.0
    %1156 = vmatpush1.xpose.msra.mxu0 0.0
    %1157 = vmatprep.subr.mxu0 0.0
    %1158 = vmatpush1.xpose.msra.mxu0 0.0
    %1159 = vmatprep.subr.mxu0 0.0
    %1160 = vmatpush1.xpose.msra.mxu0 0.0
    %1161 = vmatprep.subr.mxu0 0.0
    %1162 = vmatpush1.xpose.msra.mxu0 0.0
    %1163 = vmatprep.subr.mxu0 0.0
    %1164 = vmatpush1.xpose.msra.mxu0 0.0
    %1165 = vmatprep.subr.mxu0 0.0
    %1166 = vmatpush1.xpose.msra.mxu0 0.0
    %1167 = vmatprep.subr.mxu0 0.0
    %1168 = vmatpush1.xpose.msra.mxu0 0.0
    %1169 = vmatprep.subr.mxu0 0.0
    %1170 = vmatpush1.xpose.msra.mxu0 0.0
    %1171 = vmatprep.subr.mxu0 0.0
    %1172 = vmatpush1.xpose.msra.mxu0 0.0
    %1173 = vmatprep.subr.mxu0 0.0
    %1174 = vmatpush1.xpose.msra.mxu0 0.0
    %1175 = vmatprep.subr.mxu0 0.0
    %1176 = vmatpush1.xpose.msra.mxu0 0.0
    %1177 = vmatprep.subr.mxu0 0.0
    %1178 = vmatpush1.xpose.msra.mxu0 0.0
    %1179 = vmatprep.subr.mxu0 0.0
    %1180 = vmatpush1.xpose.msra.mxu0 0.0
    %1181 = vmatprep.subr.mxu0 0.0
    %1182 = vmatpush1.xpose.msra.mxu0 0.0
    %1183 = vmatprep.subr.mxu0 0.0
    %1184 = vmatpush1.xpose.msra.mxu0 0.0
    %1185 = vmatprep.subr.mxu0 0.0
    %1186 = vmatpush1.xpose.msra.mxu0 0.0
    %1187 = vmatprep.subr.mxu0 0.0
    %1188 = vmatpush1.xpose.msra.mxu0 0.0
    %1189 = vmatprep.mubr.f32.mxu0 0.0
    %1190 = vmatmul.mubr.f32.gmra.mrb[0].mxu0 %v1117
    %v1191 = vpop.f32.mrb[0].mxu0
    %v1192 = vadd.f32 %v168, %v1191
    %v1193 = vpop.f32.mrb[0].mxu0
    %1194 = vmatprep.mubr.f32.mxu0 0.0
    %1195 = vmatmul.mubr.f32.gmra.mrb[0].mxu0 %v1119
    %v1196 = vpop.f32.mrb[0].mxu0
    %v1197 = vadd.f32 %v169, %v1196
    %v1198 = vpop.f32.mrb[0].mxu0
    %1199 = vdwg.mxu0
    %v1200 = vsel %vm354, %v1192, -inf
    %1201 = vmax.xlane.f32.xlu0 %v1200
    %v1202 = vpop.xlane.xlu0 %1201
    %v1203 = vsel %vm354, %v1197, -inf
    %1204 = vmax.xlane.f32.xlu0 %v1203
    %v1205 = vpop.xlane.xlu0 %1204
    %v1206 = vsub.f32 %v1192, %v1202
    %v1207 = vsub.f32 %v1197, %v1205
    %v1208 = vmul.f32 %v1206, 1.442695
    %v1209 = vpow.pop %v1208
    %v1210 = vmul.f32 %v1207, 1.442695
    %v1211 = vpow.pop %v1210
    %v1212 = vsel %vm354, %v1209, 0.0
    %1213 = vadd.xlane.f32.xlu0 %v1212
    %v1214 = vpop.xlane.xlu0 %1213
    %v1215 = vsel %vm354, %v1211, 0.0
    %1216 = vadd.xlane.f32.xlu0 %v1215
    %v1217 = vpop.xlane.xlu0 %1216
    %v1218 = vrcp.pop %v1214
    %v1219 = vrcp.pop %v1217
    %v1220 = vmul.f32 %v1209, %v1218
    %v1221 = vmul.f32 %v1211, %v1219
    %1222 = vrot.lane.b32.xlu0 %v252, 40
    %v1223 = vpop.permute.xlu0 %1222
    %1224 = vrot.lane.b32.xlu0 %v257, 40
    %v1225 = vpop.permute.xlu0 %1224
    %v1229 = vsel %vm354, %v1220, 0
    %v1232 = vsel %vm354, %v1221, 0
    %1234 = vmatprep.subr.mxu0 0.0
    %1235 = vmatpush1.msra.mxu0 %v1223
    %1236 = vmatprep.subr.mxu0 0.0
    %1237 = vmatpush1.msra.mxu0 %v1225
    %1238 = vmatprep.subr.mxu0 0.0
    %1239 = vmatpush1.msra.mxu0 0.0
    %1240 = vmatprep.subr.mxu0 0.0
    %1241 = vmatpush1.msra.mxu0 0.0
    %1242 = vmatprep.subr.mxu0 0.0
    %1243 = vmatpush1.msra.mxu0 0.0
    %1244 = vmatprep.subr.mxu0 0.0
    %1245 = vmatpush1.msra.mxu0 0.0
    %1246 = vmatprep.subr.mxu0 0.0
    %1247 = vmatpush1.msra.mxu0 0.0
    %1248 = vmatprep.subr.mxu0 0.0
    %1249 = vmatpush1.msra.mxu0 0.0
    %1250 = vmatprep.subr.mxu0 0.0
    %1251 = vmatpush1.msra.mxu0 0.0
    %1252 = vmatprep.subr.mxu0 0.0
    %1253 = vmatpush1.msra.mxu0 0.0
    %1254 = vmatprep.subr.mxu0 0.0
    %1255 = vmatpush1.msra.mxu0 0.0
    %1256 = vmatprep.subr.mxu0 0.0
    %1257 = vmatpush1.msra.mxu0 0.0
    %1258 = vmatprep.subr.mxu0 0.0
    %1259 = vmatpush1.msra.mxu0 0.0
    %1260 = vmatprep.subr.mxu0 0.0
    %1261 = vmatpush1.msra.mxu0 0.0
    %1262 = vmatprep.subr.mxu0 0.0
    %1263 = vmatpush1.msra.mxu0 0.0
    %1264 = vmatprep.subr.mxu0 0.0
    %1265 = vmatpush1.msra.mxu0 0.0
    %1266 = vmatprep.subr.mxu0 0.0
    %1267 = vmatpush1.msra.mxu0 0.0
    %1268 = vmatprep.subr.mxu0 0.0
    %1269 = vmatpush1.msra.mxu0 0.0
    %1270 = vmatprep.subr.mxu0 0.0
    %1271 = vmatpush1.msra.mxu0 0.0
    %1272 = vmatprep.subr.mxu0 0.0
    %1273 = vmatpush1.msra.mxu0 0.0
    %1274 = vmatprep.subr.mxu0 0.0
    %1275 = vmatpush1.msra.mxu0 0.0
    %1276 = vmatprep.subr.mxu0 0.0
    %1277 = vmatpush1.msra.mxu0 0.0
    %1278 = vmatprep.subr.mxu0 0.0
    %1279 = vmatpush1.msra.mxu0 0.0
    %1280 = vmatprep.subr.mxu0 0.0
    %1281 = vmatpush1.msra.mxu0 0.0
    %1282 = vmatprep.subr.mxu0 0.0
    %1283 = vmatpush1.msra.mxu0 0.0
    %1284 = vmatprep.subr.mxu0 0.0
    %1285 = vmatpush1.msra.mxu0 0.0
    %1286 = vmatprep.subr.mxu0 0.0
    %1287 = vmatpush1.msra.mxu0 0.0
    %1288 = vmatprep.subr.mxu0 0.0
    %1289 = vmatpush1.msra.mxu0 0.0
    %1290 = vmatprep.subr.mxu0 0.0
    %1291 = vmatpush1.msra.mxu0 0.0
    %1292 = vmatprep.subr.mxu0 0.0
    %1293 = vmatpush1.msra.mxu0 0.0
    %1294 = vmatprep.subr.mxu0 0.0
    %1295 = vmatpush1.msra.mxu0 0.0
    %1296 = vmatprep.subr.mxu0 0.0
    %1297 = vmatpush1.msra.mxu0 0.0
    %1298 = vmatprep.mubr.f32.mxu0 0.0
    %1299 = vmatmul.mubr.f32.gmra.mrb[0].mxu0 %v1229
    %v1300 = vpop.f32.mrb[0].mxu0
    %v1301 = vadd.f32 0.0, %v1300
    %v1302 = vpop.f32.mrb[0].mxu0
    %1303 = vmatprep.mubr.f32.mxu0 0.0
    %1304 = vmatmul.mubr.f32.gmra.mrb[0].mxu0 %v1232
    %v1305 = vpop.f32.mrb[0].mxu0
    %v1306 = vadd.f32 0.0, %v1305
    %v1307 = vpop.f32.mrb[0].mxu0
    %1308 = vdwg.mxu0
    %v1310 = vsel %vm270, %v1301, 0
    %v1313 = vsel %vm270, %v1306, 0
    %1315 = vmatprep.subr.mxu0 0.0
    %1316 = vmatpush1.msra.mxu0 %v263
    %1317 = vmatprep.subr.mxu0 0.0
    %1318 = vmatpush1.msra.mxu0 0.0
    %1319 = vmatprep.subr.mxu0 0.0
    %1320 = vmatpush1.msra.mxu0 0.0
    %1321 = vmatprep.subr.mxu0 0.0
    %1322 = vmatpush1.msra.mxu0 0.0
    %1323 = vmatprep.subr.mxu0 0.0
    %1324 = vmatpush1.msra.mxu0 0.0
    %1325 = vmatprep.subr.mxu0 0.0
    %1326 = vmatpush1.msra.mxu0 0.0
    %1327 = vmatprep.subr.mxu0 0.0
    %1328 = vmatpush1.msra.mxu0 0.0
    %1329 = vmatprep.subr.mxu0 0.0
    %1330 = vmatpush1.msra.mxu0 0.0
    %1331 = vmatprep.subr.mxu0 0.0
    %1332 = vmatpush1.msra.mxu0 0.0
    %1333 = vmatprep.subr.mxu0 0.0
    %1334 = vmatpush1.msra.mxu0 0.0
    %1335 = vmatprep.subr.mxu0 0.0
    %1336 = vmatpush1.msra.mxu0 0.0
    %1337 = vmatprep.subr.mxu0 0.0
    %1338 = vmatpush1.msra.mxu0 0.0
    %1339 = vmatprep.subr.mxu0 0.0
    %1340 = vmatpush1.msra.mxu0 0.0
    %1341 = vmatprep.subr.mxu0 0.0
    %1342 = vmatpush1.msra.mxu0 0.0
    %1343 = vmatprep.subr.mxu0 0.0
    %1344 = vmatpush1.msra.mxu0 0.0
    %1345 = vmatprep.subr.mxu0 0.0
    %1346 = vmatpush1.msra.mxu0 0.0
    %1347 = vmatprep.subr.mxu0 0.0
    %1348 = vmatpush1.msra.mxu0 0.0
    %1349 = vmatprep.subr.mxu0 0.0
    %1350 = vmatpush1.msra.mxu0 0.0
    %1351 = vmatprep.subr.mxu0 0.0
    %1352 = vmatpush1.msra.mxu0 0.0
    %1353 = vmatprep.subr.mxu0 0.0
    %1354 = vmatpush1.msra.mxu0 0.0
    %1355 = vmatprep.subr.mxu0 0.0
    %1356 = vmatpush1.msra.mxu0 0.0
    %1357 = vmatprep.subr.mxu0 0.0
    %1358 = vmatpush1.msra.mxu0 0.0
    %1359 = vmatprep.subr.mxu0 0.0
    %1360 = vmatpush1.msra.mxu0 0.0
    %1361 = vmatprep.subr.mxu0 0.0
    %1362 = vmatpush1.msra.mxu0 0.0
    %1363 = vmatprep.subr.mxu0 0.0
    %1364 = vmatpush1.msra.mxu0 0.0
    %1365 = vmatprep.subr.mxu0 0.0
    %1366 = vmatpush1.msra.mxu0 0.0
    %1367 = vmatprep.subr.mxu0 0.0
    %1368 = vmatpush1.msra.mxu0 0.0
    %1369 = vmatprep.subr.mxu0 0.0
    %1370 = vmatpush1.msra.mxu0 0.0
    %1371 = vmatprep.subr.mxu0 0.0
    %1372 = vmatpush1.msra.mxu0 0.0
    %1373 = vmatprep.subr.mxu0 0.0
    %1374 = vmatpush1.msra.mxu0 0.0
    %1375 = vmatprep.subr.mxu0 0.0
    %1376 = vmatpush1.msra.mxu0 0.0
    %1377 = vmatprep.subr.mxu0 0.0
    %1378 = vmatpush1.msra.mxu0 0.0
    %1379 = vmatprep.mubr.f32.mxu0 0.0
    %1380 = vmatmul.mubr.f32.gmra.mrb[0].mxu0 %v1310
    %v1381 = vpop.f32.mrb[0].mxu0
    %v1382 = vadd.f32 0.0, %v1381
    %v1383 = vpop.f32.mrb[0].mxu0
    %1384 = vmatprep.mubr.f32.mxu0 0.0
    %1385 = vmatmul.mubr.f32.gmra.mrb[0].mxu0 %v1313
    %v1386 = vpop.f32.mrb[0].mxu0
    %v1387 = vadd.f32 0.0, %v1386
    %v1388 = vpop.f32.mrb[0].mxu0
    %1389 = vdwg.mxu0
    %v1390 = vadd.f32 %v1107, %v1382
    %v1391 = vadd.f32 %v1108, %v1387
    %v1392 = vadd.f32 %v117, %v1390
    %v1393 = vadd.f32 %v122, %v1391
    %v1394 = vlaneseq
    %v1395 = vshrl.u32 %v1394, 7
    %v1396 = vsub.s32 1, %v1395
    %v1397 = vrot.slane %v27, %v1396
    %v1398 = vadd.f32 %v1392, %v1397
    %v1399 = vadd.f32 %v1393, %v1397
    %v1400 = vsel %vm178, %v1398, 0.0
    %1401 = vadd.xlane.f32.xlu0 %v1400
    %v1402 = vpop.xlane.xlu0 %1401
    %v1403 = vsel %vm178, %v1399, 0.0
    %1404 = vadd.xlane.f32.xlu0 %v1403
    %v1405 = vpop.xlane.xlu0 %1404
    %v1406 = vrcp.pop 32.0
    %v1407 = vmul.f32 %v1402, %v1406
    %v1408 = vmul.f32 %v1405, %v1406
    %v1409 = vsub.f32 %v1398, %v1407
    %v1410 = vsub.f32 %v1399, %v1408
    %v1411 = vmul.f32 %v1409, %v1409
    %v1412 = vmul.f32 %v1410, %v1410
    %v1413 = vsel %vm178, %v1411, 0.0
    %1414 = vadd.xlane.f32.xlu0 %v1413
    %v1415 = vpop.xlane.xlu0 %1414
    %v1416 = vsel %vm178, %v1412, 0.0
    %1417 = vadd.xlane.f32.xlu0 %v1416
    %v1418 = vpop.xlane.xlu0 %1417
    %v1419 = vmul.f32 %v1415, %v1406
    %v1420 = vmul.f32 %v1418, %v1406
    %v1421 = vadd.f32 %v1419, 1e-05
    %v1422 = vadd.f32 %v1420, 1e-05
    %v1423 = vrsqrt.pop %v1421
    %v1424 = vrsqrt.pop %v1422
    %v1425 = vmul.f32 %v1409, %v1423
    %v1426 = vmul.f32 %v1410, %v1424
    %v1427 = vlaneseq
    %v1428 = vshrl.u32 %v1427, 7
    %v1429 = vsub.s32 4, %v1428
    %v1430 = vrot.slane %v27, %v1429
    %v1431 = vmul.f32 %v1425, %v1430
    %v1432 = vmul.f32 %v1426, %v1430
    %v1433 = vlaneseq
    %v1434 = vshrl.u32 %v1433, 7
    %v1435 = vsub.s32 5, %v1434
    %v1436 = vrot.slane %v27, %v1435
    %v1437 = vadd.f32 %v1431, %v1436
    %v1438 = vadd.f32 %v1432, %v1436
    %v1439 = vld [vmem:[%s4] sm:$0xff]
    %v1440 = vld [vmem:[%s4 + $0x8] sm:$0xff]
    %v1441 = vld [vmem:[%s4 + $0x10] sm:$0xff]
    %v1442 = vld [vmem:[%s4 + $0x18] sm:$0xff]
    %v1443 = vlaneseq
    %v1444 = vshrl.u32 %v1443, 7
    %v1445 = vsub.s32 2, %v1444
    %v1446 = vrot.slane %v27, %v1445
    %v1448 = vsel %vm178, %v1437, 0
    %v1451 = vsel %vm178, %v1438, 0
    %1453 = vmatprep.subr.mxu0 0.0
    %1454 = vmatpush1.msra.mxu0 %v1439
    %1455 = vmatprep.subr.mxu0 0.0
    %1456 = vmatpush1.msra.mxu0 %v1440
    %1457 = vmatprep.subr.mxu0 0.0
    %1458 = vmatpush1.msra.mxu0 %v1441
    %1459 = vmatprep.subr.mxu0 0.0
    %1460 = vmatpush1.msra.mxu0 %v1442
    %1461 = vmatprep.subr.mxu0 0.0
    %1462 = vmatpush1.msra.mxu0 0.0
    %1463 = vmatprep.subr.mxu0 0.0
    %1464 = vmatpush1.msra.mxu0 0.0
    %1465 = vmatprep.subr.mxu0 0.0
    %1466 = vmatpush1.msra.mxu0 0.0
    %1467 = vmatprep.subr.mxu0 0.0
    %1468 = vmatpush1.msra.mxu0 0.0
    %1469 = vmatprep.subr.mxu0 0.0
    %1470 = vmatpush1.msra.mxu0 0.0
    %1471 = vmatprep.subr.mxu0 0.0
    %1472 = vmatpush1.msra.mxu0 0.0
    %1473 = vmatprep.subr.mxu0 0.0
    %1474 = vmatpush1.msra.mxu0 0.0
    %1475 = vmatprep.subr.mxu0 0.0
    %1476 = vmatpush1.msra.mxu0 0.0
    %1477 = vmatprep.subr.mxu0 0.0
    %1478 = vmatpush1.msra.mxu0 0.0
    %1479 = vmatprep.subr.mxu0 0.0
    %1480 = vmatpush1.msra.mxu0 0.0
    %1481 = vmatprep.subr.mxu0 0.0
    %1482 = vmatpush1.msra.mxu0 0.0
    %1483 = vmatprep.subr.mxu0 0.0
    %1484 = vmatpush1.msra.mxu0 0.0
    %1485 = vmatprep.subr.mxu0 0.0
    %1486 = vmatpush1.msra.mxu0 0.0
    %1487 = vmatprep.subr.mxu0 0.0
    %1488 = vmatpush1.msra.mxu0 0.0
    %1489 = vmatprep.subr.mxu0 0.0
    %1490 = vmatpush1.msra.mxu0 0.0
    %1491 = vmatprep.subr.mxu0 0.0
    %1492 = vmatpush1.msra.mxu0 0.0
    %1493 = vmatprep.subr.mxu0 0.0
    %1494 = vmatpush1.msra.mxu0 0.0
    %1495 = vmatprep.subr.mxu0 0.0
    %1496 = vmatpush1.msra.mxu0 0.0
    %1497 = vmatprep.subr.mxu0 0.0
    %1498 = vmatpush1.msra.mxu0 0.0
    %1499 = vmatprep.subr.mxu0 0.0
    %1500 = vmatpush1.msra.mxu0 0.0
    %1501 = vmatprep.subr.mxu0 0.0
    %1502 = vmatpush1.msra.mxu0 0.0
    %1503 = vmatprep.subr.mxu0 0.0
    %1504 = vmatpush1.msra.mxu0 0.0
    %1505 = vmatprep.subr.mxu0 0.0
    %1506 = vmatpush1.msra.mxu0 0.0
    %1507 = vmatprep.subr.mxu0 0.0
    %1508 = vmatpush1.msra.mxu0 0.0
    %1509 = vmatprep.subr.mxu0 0.0
    %1510 = vmatpush1.msra.mxu0 0.0
    %1511 = vmatprep.subr.mxu0 0.0
    %1512 = vmatpush1.msra.mxu0 0.0
    %1513 = vmatprep.subr.mxu0 0.0
    %1514 = vmatpush1.msra.mxu0 0.0
    %1515 = vmatprep.subr.mxu0 0.0
    %1516 = vmatpush1.msra.mxu0 0.0
    %1517 = vmatprep.mubr.f32.mxu0 0.0
    %1518 = vmatmul.mubr.f32.gmra.mrb[0].mxu0 %v1448
    %v1519 = vpop.f32.mrb[0].mxu0
    %v1520 = vadd.f32 %v1446, %v1519
    %v1521 = vpop.f32.mrb[0].mxu0
    %1522 = vmatprep.mubr.f32.mxu0 0.0
    %1523 = vmatmul.mubr.f32.gmra.mrb[0].mxu0 %v1451
    %v1524 = vpop.f32.mrb[0].mxu0
    %v1525 = vadd.f32 %v1446, %v1524
    %v1526 = vpop.f32.mrb[0].mxu0
    %1527 = vdwg.mxu0
    %v1528 = vmax.f32 %v1520, 0.0
    %v1529 = vmax.f32 %v1525, 0.0
    %v1530 = vld [vmem:[%s5] sm:$0xff]
    %v1531 = vld [vmem:[%s5 + $0x8] sm:$0xff]
    %v1532 = vld [vmem:[%s5 + $0x10] sm:$0xff]
    %v1533 = vld [vmem:[%s5 + $0x18] sm:$0xff]
    %v1534 = vld [vmem:[%s5 + $0x20] sm:$0xff]
    %v1535 = vld [vmem:[%s5 + $0x28] sm:$0xff]
    %v1536 = vld [vmem:[%s5 + $0x30] sm:$0xff]
    %v1537 = vld [vmem:[%s5 + $0x38] sm:$0xff]
    %v1538 = vlaneseq
    %v1539 = vshrl.u32 %v1538, 7
    %v1540 = vsub.s32 3, %v1539
    %v1541 = vrot.slane %v27, %v1540
    %v1543 = vsel %vm43, %v1528, 0
    %v1546 = vsel %vm43, %v1529, 0
    %1548 = vmatprep.subr.mxu0 0.0
    %1549 = vmatpush1.msra.mxu0 %v1530
    %1550 = vmatprep.subr.mxu0 0.0
    %1551 = vmatpush1.msra.mxu0 %v1531
    %1552 = vmatprep.subr.mxu0 0.0
    %1553 = vmatpush1.msra.mxu0 %v1532
    %1554 = vmatprep.subr.mxu0 0.0
    %1555 = vmatpush1.msra.mxu0 %v1533
    %1556 = vmatprep.subr.mxu0 0.0
    %1557 = vmatpush1.msra.mxu0 %v1534
    %1558 = vmatprep.subr.mxu0 0.0
    %1559 = vmatpush1.msra.mxu0 %v1535
    %1560 = vmatprep.subr.mxu0 0.0
    %1561 = vmatpush1.msra.mxu0 %v1536
    %1562 = vmatprep.subr.mxu0 0.0
    %1563 = vmatpush1.msra.mxu0 %v1537
    %1564 = vmatprep.subr.mxu0 0.0
    %1565 = vmatpush1.msra.mxu0 0.0
    %1566 = vmatprep.subr.mxu0 0.0
    %1567 = vmatpush1.msra.mxu0 0.0
    %1568 = vmatprep.subr.mxu0 0.0
    %1569 = vmatpush1.msra.mxu0 0.0
    %1570 = vmatprep.subr.mxu0 0.0
    %1571 = vmatpush1.msra.mxu0 0.0
    %1572 = vmatprep.subr.mxu0 0.0
    %1573 = vmatpush1.msra.mxu0 0.0
    %1574 = vmatprep.subr.mxu0 0.0
    %1575 = vmatpush1.msra.mxu0 0.0
    %1576 = vmatprep.subr.mxu0 0.0
    %1577 = vmatpush1.msra.mxu0 0.0
    %1578 = vmatprep.subr.mxu0 0.0
    %1579 = vmatpush1.msra.mxu0 0.0
    %1580 = vmatprep.subr.mxu0 0.0
    %1581 = vmatpush1.msra.mxu0 0.0
    %1582 = vmatprep.subr.mxu0 0.0
    %1583 = vmatpush1.msra.mxu0 0.0
    %1584 = vmatprep.subr.mxu0 0.0
    %1585 = vmatpush1.msra.mxu0 0.0
    %1586 = vmatprep.subr.mxu0 0.0
    %1587 = vmatpush1.msra.mxu0 0.0
    %1588 = vmatprep.subr.mxu0 0.0
    %1589 = vmatpush1.msra.mxu0 0.0
    %1590 = vmatprep.subr.mxu0 0.0
    %1591 = vmatpush1.msra.mxu0 0.0
    %1592 = vmatprep.subr.mxu0 0.0
    %1593 = vmatpush1.msra.mxu0 0.0
    %1594 = vmatprep.subr.mxu0 0.0
    %1595 = vmatpush1.msra.mxu0 0.0
    %1596 = vmatprep.subr.mxu0 0.0
    %1597 = vmatpush1.msra.mxu0 0.0
    %1598 = vmatprep.subr.mxu0 0.0
    %1599 = vmatpush1.msra.mxu0 0.0
    %1600 = vmatprep.subr.mxu0 0.0
    %1601 = vmatpush1.msra.mxu0 0.0
    %1602 = vmatprep.subr.mxu0 0.0
    %1603 = vmatpush1.msra.mxu0 0.0
    %1604 = vmatprep.subr.mxu0 0.0
    %1605 = vmatpush1.msra.mxu0 0.0
    %1606 = vmatprep.subr.mxu0 0.0
    %1607 = vmatpush1.msra.mxu0 0.0
    %1608 = vmatprep.subr.mxu0 0.0
    %1609 = vmatpush1.msra.mxu0 0.0
    %1610 = vmatprep.subr.mxu0 0.0
    %1611 = vmatpush1.msra.mxu0 0.0
    %1612 = vmatprep.mubr.f32.mxu0 0.0
    %1613 = vmatmul.mubr.f32.gmra.mrb[0].mxu0 %v1543
    %v1614 = vpop.f32.mrb[0].mxu0
    %v1615 = vadd.f32 %v1541, %v1614
    %v1616 = vpop.f32.mrb[0].mxu0
    %1617 = vmatprep.mubr.f32.mxu0 0.0
    %1618 = vmatmul.mubr.f32.gmra.mrb[0].mxu0 %v1546
    %v1619 = vpop.f32.mrb[0].mxu0
    %v1620 = vadd.f32 %v1541, %v1619
    %v1621 = vpop.f32.mrb[0].mxu0
    %1622 = vdwg.mxu0
    %v1623 = vadd.f32 %v1437, %v1615
    %v1624 = vadd.f32 %v1438, %v1620
    %v1625 = vsel %vm178, %v1623, 0.0
    %1626 = vadd.xlane.f32.xlu0 %v1625
    %v1627 = vpop.xlane.xlu0 %1626
    %v1628 = vsel %vm178, %v1624, 0.0
    %1629 = vadd.xlane.f32.xlu0 %v1628
    %v1630 = vpop.xlane.xlu0 %1629
    %v1631 = vmul.f32 %v1627, %v1406
    %v1632 = vmul.f32 %v1630, %v1406
    %v1633 = vsub.f32 %v1623, %v1631
    %v1634 = vsub.f32 %v1624, %v1632
    %v1635 = vmul.f32 %v1633, %v1633
    %v1636 = vmul.f32 %v1634, %v1634
    %v1637 = vsel %vm178, %v1635, 0.0
    %1638 = vadd.xlane.f32.xlu0 %v1637
    %v1639 = vpop.xlane.xlu0 %1638
    %v1640 = vsel %vm178, %v1636, 0.0
    %1641 = vadd.xlane.f32.xlu0 %v1640
    %v1642 = vpop.xlane.xlu0 %1641
    %v1643 = vmul.f32 %v1639, %v1406
    %v1644 = vmul.f32 %v1642, %v1406
    %v1645 = vadd.f32 %v1643, 1e-05
    %v1646 = vadd.f32 %v1644, 1e-05
    %v1647 = vrsqrt.pop %v1645
    %v1648 = vrsqrt.pop %v1646
    %v1649 = vmul.f32 %v1633, %v1647
    %v1650 = vmul.f32 %v1634, %v1648
    %v1651 = vlaneseq
    %v1652 = vshrl.u32 %v1651, 7
    %v1653 = vsub.s32 6, %v1652
    %v1654 = vrot.slane %v27, %v1653
    %v1655 = vmul.f32 %v1649, %v1654
    %v1656 = vmul.f32 %v1650, %v1654
    %v1657 = vlaneseq
    %v1658 = vshrl.u32 %v1657, 7
    %v1659 = vsub.s32 7, %v1658
    %v1660 = vrot.slane %v27, %v1659
    %v1661 = vadd.f32 %v1655, %v1660
    %v1662 = vadd.f32 %v1656, %v1660
    %s1663 = scalar_lea.vmem %s6, 16
    %v1664 = vld [vmem:[%s1663] sm:$0xff]
    %s1665 = scalar_lea.vmem %s2, 32
    %v1666 = vld [vmem:[%s1665] sm:$0xff]
    %v1667 = vld [vmem:[%s1665 + $0x8] sm:$0xff]
    %v1668 = vld [vmem:[%s1665 + $0x10] sm:$0xff]
    %v1669 = vld [vmem:[%s1665 + $0x18] sm:$0xff]
    %v1670 = vlaneseq
    %v1671 = vshrl.u32 %v1670, 7
    %v1672 = vsub.s32 0, %v1671
    %v1673 = vrot.slane %v1664, %v1672
    %v1675 = vsel %vm178, %v1661, 0
    %v1678 = vsel %vm178, %v1662, 0
    %1680 = vmatprep.subr.mxu0 0.0
    %1681 = vmatpush1.msra.mxu0 %v1666
    %1682 = vmatprep.subr.mxu0 0.0
    %1683 = vmatpush1.msra.mxu0 %v1667
    %1684 = vmatprep.subr.mxu0 0.0
    %1685 = vmatpush1.msra.mxu0 %v1668
    %1686 = vmatprep.subr.mxu0 0.0
    %1687 = vmatpush1.msra.mxu0 %v1669
    %1688 = vmatprep.subr.mxu0 0.0
    %1689 = vmatpush1.msra.mxu0 0.0
    %1690 = vmatprep.subr.mxu0 0.0
    %1691 = vmatpush1.msra.mxu0 0.0
    %1692 = vmatprep.subr.mxu0 0.0
    %1693 = vmatpush1.msra.mxu0 0.0
    %1694 = vmatprep.subr.mxu0 0.0
    %1695 = vmatpush1.msra.mxu0 0.0
    %1696 = vmatprep.subr.mxu0 0.0
    %1697 = vmatpush1.msra.mxu0 0.0
    %1698 = vmatprep.subr.mxu0 0.0
    %1699 = vmatpush1.msra.mxu0 0.0
    %1700 = vmatprep.subr.mxu0 0.0
    %1701 = vmatpush1.msra.mxu0 0.0
    %1702 = vmatprep.subr.mxu0 0.0
    %1703 = vmatpush1.msra.mxu0 0.0
    %1704 = vmatprep.subr.mxu0 0.0
    %1705 = vmatpush1.msra.mxu0 0.0
    %1706 = vmatprep.subr.mxu0 0.0
    %1707 = vmatpush1.msra.mxu0 0.0
    %1708 = vmatprep.subr.mxu0 0.0
    %1709 = vmatpush1.msra.mxu0 0.0
    %1710 = vmatprep.subr.mxu0 0.0
    %1711 = vmatpush1.msra.mxu0 0.0
    %1712 = vmatprep.subr.mxu0 0.0
    %1713 = vmatpush1.msra.mxu0 0.0
    %1714 = vmatprep.subr.mxu0 0.0
    %1715 = vmatpush1.msra.mxu0 0.0
    %1716 = vmatprep.subr.mxu0 0.0
    %1717 = vmatpush1.msra.mxu0 0.0
    %1718 = vmatprep.subr.mxu0 0.0
    %1719 = vmatpush1.msra.mxu0 0.0
    %1720 = vmatprep.subr.mxu0 0.0
    %1721 = vmatpush1.msra.mxu0 0.0
    %1722 = vmatprep.subr.mxu0 0.0
    %1723 = vmatpush1.msra.mxu0 0.0
    %1724 = vmatprep.subr.mxu0 0.0
    %1725 = vmatpush1.msra.mxu0 0.0
    %1726 = vmatprep.subr.mxu0 0.0
    %1727 = vmatpush1.msra.mxu0 0.0
    %1728 = vmatprep.subr.mxu0 0.0
    %1729 = vmatpush1.msra.mxu0 0.0
    %1730 = vmatprep.subr.mxu0 0.0
    %1731 = vmatpush1.msra.mxu0 0.0
    %1732 = vmatprep.subr.mxu0 0.0
    %1733 = vmatpush1.msra.mxu0 0.0
    %1734 = vmatprep.subr.mxu0 0.0
    %1735 = vmatpush1.msra.mxu0 0.0
    %1736 = vmatprep.subr.mxu0 0.0
    %1737 = vmatpush1.msra.mxu0 0.0
    %1738 = vmatprep.subr.mxu0 0.0
    %1739 = vmatpush1.msra.mxu0 0.0
    %1740 = vmatprep.subr.mxu0 0.0
    %1741 = vmatpush1.msra.mxu0 0.0
    %1742 = vmatprep.subr.mxu0 0.0
    %1743 = vmatpush1.msra.mxu0 0.0
    %1744 = vmatprep.mubr.f32.mxu0 0.0
    %1745 = vmatmul.mubr.f32.gmra.mrb[0].mxu0 %v1675
    %v1746 = vpop.f32.mrb[0].mxu0
    %v1747 = vadd.f32 %v1673, %v1746
    %v1748 = vpop.f32.mrb[0].mxu0
    %1749 = vmatprep.mubr.f32.mxu0 0.0
    %1750 = vmatmul.mubr.f32.gmra.mrb[0].mxu0 %v1678
    %v1751 = vpop.f32.mrb[0].mxu0
    %v1752 = vadd.f32 %v1673, %v1751
    %v1753 = vpop.f32.mrb[0].mxu0
    %1754 = vdwg.mxu0
    %s1755 = scalar_lea.vmem %s3, 32
    %v1756 = vld [vmem:[%s1755] sm:$0xff]
    %v1757 = vld [vmem:[%s1755 + $0x8] sm:$0xff]
    %v1758 = vld [vmem:[%s1755 + $0x10] sm:$0xff]
    %v1759 = vld [vmem:[%s1755 + $0x18] sm:$0xff]
    %1762 = vrot.lane.b32.xlu0 %v1747, 96
    %v1763 = vpop.permute.xlu0 %1762
    %1764 = vrot.lane.b32.xlu0 %v1752, 96
    %v1765 = vpop.permute.xlu0 %1764
    %v1766 = vsel %vm270, %v1747, 0
    %v1768 = vsel %vm270, %v1752, 0
    %v1770 = vsel %vm270, %v1763, 0
    %v1772 = vsel %vm270, %v1765, 0
    %1774 = vmatprep.subr.mxu0 0.0
    %1775 = vmatpush1.xpose.msra.mxu0 %v1770
    %1776 = vmatprep.subr.mxu0 0.0
    %1777 = vmatpush1.xpose.msra.mxu0 %v1772
    %1778 = vmatprep.subr.mxu0 0.0
    %1779 = vmatpush1.xpose.msra.mxu0 0.0
    %1780 = vmatprep.subr.mxu0 0.0
    %1781 = vmatpush1.xpose.msra.mxu0 0.0
    %1782 = vmatprep.subr.mxu0 0.0
    %1783 = vmatpush1.xpose.msra.mxu0 0.0
    %1784 = vmatprep.subr.mxu0 0.0
    %1785 = vmatpush1.xpose.msra.mxu0 0.0
    %1786 = vmatprep.subr.mxu0 0.0
    %1787 = vmatpush1.xpose.msra.mxu0 0.0
    %1788 = vmatprep.subr.mxu0 0.0
    %1789 = vmatpush1.xpose.msra.mxu0 0.0
    %1790 = vmatprep.subr.mxu0 0.0
    %1791 = vmatpush1.xpose.msra.mxu0 0.0
    %1792 = vmatprep.subr.mxu0 0.0
    %1793 = vmatpush1.xpose.msra.mxu0 0.0
    %1794 = vmatprep.subr.mxu0 0.0
    %1795 = vmatpush1.xpose.msra.mxu0 0.0
    %1796 = vmatprep.subr.mxu0 0.0
    %1797 = vmatpush1.xpose.msra.mxu0 0.0
    %1798 = vmatprep.subr.mxu0 0.0
    %1799 = vmatpush1.xpose.msra.mxu0 0.0
    %1800 = vmatprep.subr.mxu0 0.0
    %1801 = vmatpush1.xpose.msra.mxu0 0.0
    %1802 = vmatprep.subr.mxu0 0.0
    %1803 = vmatpush1.xpose.msra.mxu0 0.0
    %1804 = vmatprep.subr.mxu0 0.0
    %1805 = vmatpush1.xpose.msra.mxu0 0.0
    %1806 = vmatprep.subr.mxu0 0.0
    %1807 = vmatpush1.xpose.msra.mxu0 0.0
    %1808 = vmatprep.subr.mxu0 0.0
    %1809 = vmatpush1.xpose.msra.mxu0 0.0
    %1810 = vmatprep.subr.mxu0 0.0
    %1811 = vmatpush1.xpose.msra.mxu0 0.0
    %1812 = vmatprep.subr.mxu0 0.0
    %1813 = vmatpush1.xpose.msra.mxu0 0.0
    %1814 = vmatprep.subr.mxu0 0.0
    %1815 = vmatpush1.xpose.msra.mxu0 0.0
    %1816 = vmatprep.subr.mxu0 0.0
    %1817 = vmatpush1.xpose.msra.mxu0 0.0
    %1818 = vmatprep.subr.mxu0 0.0
    %1819 = vmatpush1.xpose.msra.mxu0 0.0
    %1820 = vmatprep.subr.mxu0 0.0
    %1821 = vmatpush1.xpose.msra.mxu0 0.0
    %1822 = vmatprep.subr.mxu0 0.0
    %1823 = vmatpush1.xpose.msra.mxu0 0.0
    %1824 = vmatprep.subr.mxu0 0.0
    %1825 = vmatpush1.xpose.msra.mxu0 0.0
    %1826 = vmatprep.subr.mxu0 0.0
    %1827 = vmatpush1.xpose.msra.mxu0 0.0
    %1828 = vmatprep.subr.mxu0 0.0
    %1829 = vmatpush1.xpose.msra.mxu0 0.0
    %1830 = vmatprep.subr.mxu0 0.0
    %1831 = vmatpush1.xpose.msra.mxu0 0.0
    %1832 = vmatprep.subr.mxu0 0.0
    %1833 = vmatpush1.xpose.msra.mxu0 0.0
    %1834 = vmatprep.subr.mxu0 0.0
    %1835 = vmatpush1.xpose.msra.mxu0 0.0
    %1836 = vmatprep.subr.mxu0 0.0
    %1837 = vmatpush1.xpose.msra.mxu0 0.0
    %1838 = vmatprep.mubr.f32.mxu0 0.0
    %1839 = vmatmul.mubr.f32.gmra.mrb[0].mxu0 %v1766
    %v1840 = vpop.f32.mrb[0].mxu0
    %v1841 = vadd.f32 %v168, %v1840
    %v1842 = vpop.f32.mrb[0].mxu0
    %1843 = vmatprep.mubr.f32.mxu0 0.0
    %1844 = vmatmul.mubr.f32.gmra.mrb[0].mxu0 %v1768
    %v1845 = vpop.f32.mrb[0].mxu0
    %v1846 = vadd.f32 %v169, %v1845
    %v1847 = vpop.f32.mrb[0].mxu0
    %1848 = vdwg.mxu0
    %v1849 = vsel %vm354, %v1841, -inf
    %1850 = vmax.xlane.f32.xlu0 %v1849
    %v1851 = vpop.xlane.xlu0 %1850
    %v1852 = vsel %vm354, %v1846, -inf
    %1853 = vmax.xlane.f32.xlu0 %v1852
    %v1854 = vpop.xlane.xlu0 %1853
    %v1855 = vsub.f32 %v1841, %v1851
    %v1856 = vsub.f32 %v1846, %v1854
    %v1857 = vmul.f32 %v1855, 1.442695
    %v1858 = vpow.pop %v1857
    %v1859 = vmul.f32 %v1856, 1.442695
    %v1860 = vpow.pop %v1859
    %v1861 = vsel %vm354, %v1858, 0.0
    %1862 = vadd.xlane.f32.xlu0 %v1861
    %v1863 = vpop.xlane.xlu0 %1862
    %v1864 = vsel %vm354, %v1860, 0.0
    %1865 = vadd.xlane.f32.xlu0 %v1864
    %v1866 = vpop.xlane.xlu0 %1865
    %v1867 = vrcp.pop %v1863
    %v1868 = vrcp.pop %v1866
    %v1869 = vmul.f32 %v1858, %v1867
    %v1870 = vmul.f32 %v1860, %v1868
    %1871 = vrot.lane.b32.xlu0 %v1747, 64
    %v1872 = vpop.permute.xlu0 %1871
    %1873 = vrot.lane.b32.xlu0 %v1752, 64
    %v1874 = vpop.permute.xlu0 %1873
    %v1878 = vsel %vm354, %v1869, 0
    %v1881 = vsel %vm354, %v1870, 0
    %1883 = vmatprep.subr.mxu0 0.0
    %1884 = vmatpush1.msra.mxu0 %v1872
    %1885 = vmatprep.subr.mxu0 0.0
    %1886 = vmatpush1.msra.mxu0 %v1874
    %1887 = vmatprep.subr.mxu0 0.0
    %1888 = vmatpush1.msra.mxu0 0.0
    %1889 = vmatprep.subr.mxu0 0.0
    %1890 = vmatpush1.msra.mxu0 0.0
    %1891 = vmatprep.subr.mxu0 0.0
    %1892 = vmatpush1.msra.mxu0 0.0
    %1893 = vmatprep.subr.mxu0 0.0
    %1894 = vmatpush1.msra.mxu0 0.0
    %1895 = vmatprep.subr.mxu0 0.0
    %1896 = vmatpush1.msra.mxu0 0.0
    %1897 = vmatprep.subr.mxu0 0.0
    %1898 = vmatpush1.msra.mxu0 0.0
    %1899 = vmatprep.subr.mxu0 0.0
    %1900 = vmatpush1.msra.mxu0 0.0
    %1901 = vmatprep.subr.mxu0 0.0
    %1902 = vmatpush1.msra.mxu0 0.0
    %1903 = vmatprep.subr.mxu0 0.0
    %1904 = vmatpush1.msra.mxu0 0.0
    %1905 = vmatprep.subr.mxu0 0.0
    %1906 = vmatpush1.msra.mxu0 0.0
    %1907 = vmatprep.subr.mxu0 0.0
    %1908 = vmatpush1.msra.mxu0 0.0
    %1909 = vmatprep.subr.mxu0 0.0
    %1910 = vmatpush1.msra.mxu0 0.0
    %1911 = vmatprep.subr.mxu0 0.0
    %1912 = vmatpush1.msra.mxu0 0.0
    %1913 = vmatprep.subr.mxu0 0.0
    %1914 = vmatpush1.msra.mxu0 0.0
    %1915 = vmatprep.subr.mxu0 0.0
    %1916 = vmatpush1.msra.mxu0 0.0
    %1917 = vmatprep.subr.mxu0 0.0
    %1918 = vmatpush1.msra.mxu0 0.0
    %1919 = vmatprep.subr.mxu0 0.0
    %1920 = vmatpush1.msra.mxu0 0.0
    %1921 = vmatprep.subr.mxu0 0.0
    %1922 = vmatpush1.msra.mxu0 0.0
    %1923 = vmatprep.subr.mxu0 0.0
    %1924 = vmatpush1.msra.mxu0 0.0
    %1925 = vmatprep.subr.mxu0 0.0
    %1926 = vmatpush1.msra.mxu0 0.0
    %1927 = vmatprep.subr.mxu0 0.0
    %1928 = vmatpush1.msra.mxu0 0.0
    %1929 = vmatprep.subr.mxu0 0.0
    %1930 = vmatpush1.msra.mxu0 0.0
    %1931 = vmatprep.subr.mxu0 0.0
    %1932 = vmatpush1.msra.mxu0 0.0
    %1933 = vmatprep.subr.mxu0 0.0
    %1934 = vmatpush1.msra.mxu0 0.0
    %1935 = vmatprep.subr.mxu0 0.0
    %1936 = vmatpush1.msra.mxu0 0.0
    %1937 = vmatprep.subr.mxu0 0.0
    %1938 = vmatpush1.msra.mxu0 0.0
    %1939 = vmatprep.subr.mxu0 0.0
    %1940 = vmatpush1.msra.mxu0 0.0
    %1941 = vmatprep.subr.mxu0 0.0
    %1942 = vmatpush1.msra.mxu0 0.0
    %1943 = vmatprep.subr.mxu0 0.0
    %1944 = vmatpush1.msra.mxu0 0.0
    %1945 = vmatprep.subr.mxu0 0.0
    %1946 = vmatpush1.msra.mxu0 0.0
    %1947 = vmatprep.mubr.f32.mxu0 0.0
    %1948 = vmatmul.mubr.f32.gmra.mrb[0].mxu0 %v1878
    %v1949 = vpop.f32.mrb[0].mxu0
    %v1950 = vadd.f32 0.0, %v1949
    %v1951 = vpop.f32.mrb[0].mxu0
    %1952 = vmatprep.mubr.f32.mxu0 0.0
    %1953 = vmatmul.mubr.f32.gmra.mrb[0].mxu0 %v1881
    %v1954 = vpop.f32.mrb[0].mxu0
    %v1955 = vadd.f32 0.0, %v1954
    %v1956 = vpop.f32.mrb[0].mxu0
    %1957 = vdwg.mxu0
    %1958 = vrot.lane.b32.xlu0 %v1747, 120
    %v1959 = vpop.permute.xlu0 %1958
    %1960 = vrot.lane.b32.xlu0 %v1752, 120
    %v1961 = vpop.permute.xlu0 %1960
    %1962 = vrot.lane.b32.xlu0 %v1747, 88
    %v1963 = vpop.permute.xlu0 %1962
    %1964 = vrot.lane.b32.xlu0 %v1752, 88
    %v1965 = vpop.permute.xlu0 %1964
    %v1966 = vsel %vm270, %v1959, 0
    %v1968 = vsel %vm270, %v1961, 0
    %v1970 = vsel %vm270, %v1963, 0
    %v1972 = vsel %vm270, %v1965, 0
    %1974 = vmatprep.subr.mxu0 0.0
    %1975 = vmatpush1.xpose.msra.mxu0 %v1970
    %1976 = vmatprep.subr.mxu0 0.0
    %1977 = vmatpush1.xpose.msra.mxu0 %v1972
    %1978 = vmatprep.subr.mxu0 0.0
    %1979 = vmatpush1.xpose.msra.mxu0 0.0
    %1980 = vmatprep.subr.mxu0 0.0
    %1981 = vmatpush1.xpose.msra.mxu0 0.0
    %1982 = vmatprep.subr.mxu0 0.0
    %1983 = vmatpush1.xpose.msra.mxu0 0.0
    %1984 = vmatprep.subr.mxu0 0.0
    %1985 = vmatpush1.xpose.msra.mxu0 0.0
    %1986 = vmatprep.subr.mxu0 0.0
    %1987 = vmatpush1.xpose.msra.mxu0 0.0
    %1988 = vmatprep.subr.mxu0 0.0
    %1989 = vmatpush1.xpose.msra.mxu0 0.0
    %1990 = vmatprep.subr.mxu0 0.0
    %1991 = vmatpush1.xpose.msra.mxu0 0.0
    %1992 = vmatprep.subr.mxu0 0.0
    %1993 = vmatpush1.xpose.msra.mxu0 0.0
    %1994 = vmatprep.subr.mxu0 0.0
    %1995 = vmatpush1.xpose.msra.mxu0 0.0
    %1996 = vmatprep.subr.mxu0 0.0
    %1997 = vmatpush1.xpose.msra.mxu0 0.0
    %1998 = vmatprep.subr.mxu0 0.0
    %1999 = vmatpush1.xpose.msra.mxu0 0.0
    %2000 = vmatprep.subr.mxu0 0.0
    %2001 = vmatpush1.xpose.msra.mxu0 0.0
    %2002 = vmatprep.subr.mxu0 0.0
    %2003 = vmatpush1.xpose.msra.mxu0 0.0
    %2004 = vmatprep.subr.mxu0 0.0
    %2005 = vmatpush1.xpose.msra.mxu0 0.0
    %2006 = vmatprep.subr.mxu0 0.0
    %2007 = vmatpush1.xpose.msra.mxu0 0.0
    %2008 = vmatprep.subr.mxu0 0.0
    %2009 = vmatpush1.xpose.msra.mxu0 0.0
    %2010 = vmatprep.subr.mxu0 0.0
    %2011 = vmatpush1.xpose.msra.mxu0 0.0
    %2012 = vmatprep.subr.mxu0 0.0
    %2013 = vmatpush1.xpose.msra.mxu0 0.0
    %2014 = vmatprep.subr.mxu0 0.0
    %2015 = vmatpush1.xpose.msra.mxu0 0.0
    %2016 = vmatprep.subr.mxu0 0.0
    %2017 = vmatpush1.xpose.msra.mxu0 0.0
    %2018 = vmatprep.subr.mxu0 0.0
    %2019 = vmatpush1.xpose.msra.mxu0 0.0
    %2020 = vmatprep.subr.mxu0 0.0
    %2021 = vmatpush1.xpose.msra.mxu0 0.0
    %2022 = vmatprep.subr.mxu0 0.0
    %2023 = vmatpush1.xpose.msra.mxu0 0.0
    %2024 = vmatprep.subr.mxu0 0.0
    %2025 = vmatpush1.xpose.msra.mxu0 0.0
    %2026 = vmatprep.subr.mxu0 0.0
    %2027 = vmatpush1.xpose.msra.mxu0 0.0
    %2028 = vmatprep.subr.mxu0 0.0
    %2029 = vmatpush1.xpose.msra.mxu0 0.0
    %2030 = vmatprep.subr.mxu0 0.0
    %2031 = vmatpush1.xpose.msra.mxu0 0.0
    %2032 = vmatprep.subr.mxu0 0.0
    %2033 = vmatpush1.xpose.msra.mxu0 0.0
    %2034 = vmatprep.subr.mxu0 0.0
    %2035 = vmatpush1.xpose.msra.mxu0 0.0
    %2036 = vmatprep.subr.mxu0 0.0
    %2037 = vmatpush1.xpose.msra.mxu0 0.0
    %2038 = vmatprep.mubr.f32.mxu0 0.0
    %2039 = vmatmul.mubr.f32.gmra.mrb[0].mxu0 %v1966
    %v2040 = vpop.f32.mrb[0].mxu0
    %v2041 = vadd.f32 %v168, %v2040
    %v2042 = vpop.f32.mrb[0].mxu0
    %2043 = vmatprep.mubr.f32.mxu0 0.0
    %2044 = vmatmul.mubr.f32.gmra.mrb[0].mxu0 %v1968
    %v2045 = vpop.f32.mrb[0].mxu0
    %v2046 = vadd.f32 %v169, %v2045
    %v2047 = vpop.f32.mrb[0].mxu0
    %2048 = vdwg.mxu0
    %v2049 = vsel %vm354, %v2041, -inf
    %2050 = vmax.xlane.f32.xlu0 %v2049
    %v2051 = vpop.xlane.xlu0 %2050
    %v2052 = vsel %vm354, %v2046, -inf
    %2053 = vmax.xlane.f32.xlu0 %v2052
    %v2054 = vpop.xlane.xlu0 %2053
    %v2055 = vsub.f32 %v2041, %v2051
    %v2056 = vsub.f32 %v2046, %v2054
    %v2057 = vmul.f32 %v2055, 1.442695
    %v2058 = vpow.pop %v2057
    %v2059 = vmul.f32 %v2056, 1.442695
    %v2060 = vpow.pop %v2059
    %v2061 = vsel %vm354, %v2058, 0.0
    %2062 = vadd.xlane.f32.xlu0 %v2061
    %v2063 = vpop.xlane.xlu0 %2062
    %v2064 = vsel %vm354, %v2060, 0.0
    %2065 = vadd.xlane.f32.xlu0 %v2064
    %v2066 = vpop.xlane.xlu0 %2065
    %v2067 = vrcp.pop %v2063
    %v2068 = vrcp.pop %v2066
    %v2069 = vmul.f32 %v2058, %v2067
    %v2070 = vmul.f32 %v2060, %v2068
    %2071 = vrot.lane.b32.xlu0 %v1747, 56
    %v2072 = vpop.permute.xlu0 %2071
    %2073 = vrot.lane.b32.xlu0 %v1752, 56
    %v2074 = vpop.permute.xlu0 %2073
    %v2078 = vsel %vm354, %v2069, 0
    %v2081 = vsel %vm354, %v2070, 0
    %2083 = vmatprep.subr.mxu0 0.0
    %2084 = vmatpush1.msra.mxu0 %v2072
    %2085 = vmatprep.subr.mxu0 0.0
    %2086 = vmatpush1.msra.mxu0 %v2074
    %2087 = vmatprep.subr.mxu0 0.0
    %2088 = vmatpush1.msra.mxu0 0.0
    %2089 = vmatprep.subr.mxu0 0.0
    %2090 = vmatpush1.msra.mxu0 0.0
    %2091 = vmatprep.subr.mxu0 0.0
    %2092 = vmatpush1.msra.mxu0 0.0
    %2093 = vmatprep.subr.mxu0 0.0
    %2094 = vmatpush1.msra.mxu0 0.0
    %2095 = vmatprep.subr.mxu0 0.0
    %2096 = vmatpush1.msra.mxu0 0.0
    %2097 = vmatprep.subr.mxu0 0.0
    %2098 = vmatpush1.msra.mxu0 0.0
    %2099 = vmatprep.subr.mxu0 0.0
    %2100 = vmatpush1.msra.mxu0 0.0
    %2101 = vmatprep.subr.mxu0 0.0
    %2102 = vmatpush1.msra.mxu0 0.0
    %2103 = vmatprep.subr.mxu0 0.0
    %2104 = vmatpush1.msra.mxu0 0.0
    %2105 = vmatprep.subr.mxu0 0.0
    %2106 = vmatpush1.msra.mxu0 0.0
    %2107 = vmatprep.subr.mxu0 0.0
    %2108 = vmatpush1.msra.mxu0 0.0
    %2109 = vmatprep.subr.mxu0 0.0
    %2110 = vmatpush1.msra.mxu0 0.0
    %2111 = vmatprep.subr.mxu0 0.0
    %2112 = vmatpush1.msra.mxu0 0.0
    %2113 = vmatprep.subr.mxu0 0.0
    %2114 = vmatpush1.msra.mxu0 0.0
    %2115 = vmatprep.subr.mxu0 0.0
    %2116 = vmatpush1.msra.mxu0 0.0
    %2117 = vmatprep.subr.mxu0 0.0
    %2118 = vmatpush1.msra.mxu0 0.0
    %2119 = vmatprep.subr.mxu0 0.0
    %2120 = vmatpush1.msra.mxu0 0.0
    %2121 = vmatprep.subr.mxu0 0.0
    %2122 = vmatpush1.msra.mxu0 0.0
    %2123 = vmatprep.subr.mxu0 0.0
    %2124 = vmatpush1.msra.mxu0 0.0
    %2125 = vmatprep.subr.mxu0 0.0
    %2126 = vmatpush1.msra.mxu0 0.0
    %2127 = vmatprep.subr.mxu0 0.0
    %2128 = vmatpush1.msra.mxu0 0.0
    %2129 = vmatprep.subr.mxu0 0.0
    %2130 = vmatpush1.msra.mxu0 0.0
    %2131 = vmatprep.subr.mxu0 0.0
    %2132 = vmatpush1.msra.mxu0 0.0
    %2133 = vmatprep.subr.mxu0 0.0
    %2134 = vmatpush1.msra.mxu0 0.0
    %2135 = vmatprep.subr.mxu0 0.0
    %2136 = vmatpush1.msra.mxu0 0.0
    %2137 = vmatprep.subr.mxu0 0.0
    %2138 = vmatpush1.msra.mxu0 0.0
    %2139 = vmatprep.subr.mxu0 0.0
    %2140 = vmatpush1.msra.mxu0 0.0
    %2141 = vmatprep.subr.mxu0 0.0
    %2142 = vmatpush1.msra.mxu0 0.0
    %2143 = vmatprep.subr.mxu0 0.0
    %2144 = vmatpush1.msra.mxu0 0.0
    %2145 = vmatprep.subr.mxu0 0.0
    %2146 = vmatpush1.msra.mxu0 0.0
    %2147 = vmatprep.mubr.f32.mxu0 0.0
    %2148 = vmatmul.mubr.f32.gmra.mrb[0].mxu0 %v2078
    %v2149 = vpop.f32.mrb[0].mxu0
    %v2150 = vadd.f32 0.0, %v2149
    %v2151 = vpop.f32.mrb[0].mxu0
    %2152 = vmatprep.mubr.f32.mxu0 0.0
    %2153 = vmatmul.mubr.f32.gmra.mrb[0].mxu0 %v2081
    %v2154 = vpop.f32.mrb[0].mxu0
    %v2155 = vadd.f32 0.0, %v2154
    %v2156 = vpop.f32.mrb[0].mxu0
    %2157 = vdwg.mxu0
    %v2159 = vsel %vm270, %v2150, 0
    %v2162 = vsel %vm270, %v2155, 0
    %2164 = vmatprep.subr.mxu0 0.0
    %2165 = vmatpush1.msra.mxu0 %v1757
    %2166 = vmatprep.subr.mxu0 0.0
    %2167 = vmatpush1.msra.mxu0 0.0
    %2168 = vmatprep.subr.mxu0 0.0
    %2169 = vmatpush1.msra.mxu0 0.0
    %2170 = vmatprep.subr.mxu0 0.0
    %2171 = vmatpush1.msra.mxu0 0.0
    %2172 = vmatprep.subr.mxu0 0.0
    %2173 = vmatpush1.msra.mxu0 0.0
    %2174 = vmatprep.subr.mxu0 0.0
    %2175 = vmatpush1.msra.mxu0 0.0
    %2176 = vmatprep.subr.mxu0 0.0
    %2177 = vmatpush1.msra.mxu0 0.0
    %2178 = vmatprep.subr.mxu0 0.0
    %2179 = vmatpush1.msra.mxu0 0.0
    %2180 = vmatprep.subr.mxu0 0.0
    %2181 = vmatpush1.msra.mxu0 0.0
    %2182 = vmatprep.subr.mxu0 0.0
    %2183 = vmatpush1.msra.mxu0 0.0
    %2184 = vmatprep.subr.mxu0 0.0
    %2185 = vmatpush1.msra.mxu0 0.0
    %2186 = vmatprep.subr.mxu0 0.0
    %2187 = vmatpush1.msra.mxu0 0.0
    %2188 = vmatprep.subr.mxu0 0.0
    %2189 = vmatpush1.msra.mxu0 0.0
    %2190 = vmatprep.subr.mxu0 0.0
    %2191 = vmatpush1.msra.mxu0 0.0
    %2192 = vmatprep.subr.mxu0 0.0
    %2193 = vmatpush1.msra.mxu0 0.0
    %2194 = vmatprep.subr.mxu0 0.0
    %2195 = vmatpush1.msra.mxu0 0.0
    %2196 = vmatprep.subr.mxu0 0.0
    %2197 = vmatpush1.msra.mxu0 0.0
    %2198 = vmatprep.subr.mxu0 0.0
    %2199 = vmatpush1.msra.mxu0 0.0
    %2200 = vmatprep.subr.mxu0 0.0
    %2201 = vmatpush1.msra.mxu0 0.0
    %2202 = vmatprep.subr.mxu0 0.0
    %2203 = vmatpush1.msra.mxu0 0.0
    %2204 = vmatprep.subr.mxu0 0.0
    %2205 = vmatpush1.msra.mxu0 0.0
    %2206 = vmatprep.subr.mxu0 0.0
    %2207 = vmatpush1.msra.mxu0 0.0
    %2208 = vmatprep.subr.mxu0 0.0
    %2209 = vmatpush1.msra.mxu0 0.0
    %2210 = vmatprep.subr.mxu0 0.0
    %2211 = vmatpush1.msra.mxu0 0.0
    %2212 = vmatprep.subr.mxu0 0.0
    %2213 = vmatpush1.msra.mxu0 0.0
    %2214 = vmatprep.subr.mxu0 0.0
    %2215 = vmatpush1.msra.mxu0 0.0
    %2216 = vmatprep.subr.mxu0 0.0
    %2217 = vmatpush1.msra.mxu0 0.0
    %2218 = vmatprep.subr.mxu0 0.0
    %2219 = vmatpush1.msra.mxu0 0.0
    %2220 = vmatprep.subr.mxu0 0.0
    %2221 = vmatpush1.msra.mxu0 0.0
    %2222 = vmatprep.subr.mxu0 0.0
    %2223 = vmatpush1.msra.mxu0 0.0
    %2224 = vmatprep.subr.mxu0 0.0
    %2225 = vmatpush1.msra.mxu0 0.0
    %2226 = vmatprep.subr.mxu0 0.0
    %2227 = vmatpush1.msra.mxu0 0.0
    %2228 = vmatprep.mubr.f32.mxu0 0.0
    %2229 = vmatmul.mubr.f32.gmra.mrb[0].mxu0 %v2159
    %v2230 = vpop.f32.mrb[0].mxu0
    %v2231 = vadd.f32 0.0, %v2230
    %v2232 = vpop.f32.mrb[0].mxu0
    %2233 = vmatprep.mubr.f32.mxu0 0.0
    %2234 = vmatmul.mubr.f32.gmra.mrb[0].mxu0 %v2162
    %v2235 = vpop.f32.mrb[0].mxu0
    %v2236 = vadd.f32 0.0, %v2235
    %v2237 = vpop.f32.mrb[0].mxu0
    %2238 = vdwg.mxu0
    %v2240 = vsel %vm270, %v1950, 0
    %v2243 = vsel %vm270, %v1955, 0
    %2245 = vmatprep.subr.mxu0 0.0
    %2246 = vmatpush1.msra.mxu0 %v1756
    %2247 = vmatprep.subr.mxu0 0.0
    %2248 = vmatpush1.msra.mxu0 0.0
    %2249 = vmatprep.subr.mxu0 0.0
    %2250 = vmatpush1.msra.mxu0 0.0
    %2251 = vmatprep.subr.mxu0 0.0
    %2252 = vmatpush1.msra.mxu0 0.0
    %2253 = vmatprep.subr.mxu0 0.0
    %2254 = vmatpush1.msra.mxu0 0.0
    %2255 = vmatprep.subr.mxu0 0.0
    %2256 = vmatpush1.msra.mxu0 0.0
    %2257 = vmatprep.subr.mxu0 0.0
    %2258 = vmatpush1.msra.mxu0 0.0
    %2259 = vmatprep.subr.mxu0 0.0
    %2260 = vmatpush1.msra.mxu0 0.0
    %2261 = vmatprep.subr.mxu0 0.0
    %2262 = vmatpush1.msra.mxu0 0.0
    %2263 = vmatprep.subr.mxu0 0.0
    %2264 = vmatpush1.msra.mxu0 0.0
    %2265 = vmatprep.subr.mxu0 0.0
    %2266 = vmatpush1.msra.mxu0 0.0
    %2267 = vmatprep.subr.mxu0 0.0
    %2268 = vmatpush1.msra.mxu0 0.0
    %2269 = vmatprep.subr.mxu0 0.0
    %2270 = vmatpush1.msra.mxu0 0.0
    %2271 = vmatprep.subr.mxu0 0.0
    %2272 = vmatpush1.msra.mxu0 0.0
    %2273 = vmatprep.subr.mxu0 0.0
    %2274 = vmatpush1.msra.mxu0 0.0
    %2275 = vmatprep.subr.mxu0 0.0
    %2276 = vmatpush1.msra.mxu0 0.0
    %2277 = vmatprep.subr.mxu0 0.0
    %2278 = vmatpush1.msra.mxu0 0.0
    %2279 = vmatprep.subr.mxu0 0.0
    %2280 = vmatpush1.msra.mxu0 0.0
    %2281 = vmatprep.subr.mxu0 0.0
    %2282 = vmatpush1.msra.mxu0 0.0
    %2283 = vmatprep.subr.mxu0 0.0
    %2284 = vmatpush1.msra.mxu0 0.0
    %2285 = vmatprep.subr.mxu0 0.0
    %2286 = vmatpush1.msra.mxu0 0.0
    %2287 = vmatprep.subr.mxu0 0.0
    %2288 = vmatpush1.msra.mxu0 0.0
    %2289 = vmatprep.subr.mxu0 0.0
    %2290 = vmatpush1.msra.mxu0 0.0
    %2291 = vmatprep.subr.mxu0 0.0
    %2292 = vmatpush1.msra.mxu0 0.0
    %2293 = vmatprep.subr.mxu0 0.0
    %2294 = vmatpush1.msra.mxu0 0.0
    %2295 = vmatprep.subr.mxu0 0.0
    %2296 = vmatpush1.msra.mxu0 0.0
    %2297 = vmatprep.subr.mxu0 0.0
    %2298 = vmatpush1.msra.mxu0 0.0
    %2299 = vmatprep.subr.mxu0 0.0
    %2300 = vmatpush1.msra.mxu0 0.0
    %2301 = vmatprep.subr.mxu0 0.0
    %2302 = vmatpush1.msra.mxu0 0.0
    %2303 = vmatprep.subr.mxu0 0.0
    %2304 = vmatpush1.msra.mxu0 0.0
    %2305 = vmatprep.subr.mxu0 0.0
    %2306 = vmatpush1.msra.mxu0 0.0
    %2307 = vmatprep.subr.mxu0 0.0
    %2308 = vmatpush1.msra.mxu0 0.0
    %2309 = vmatprep.mubr.f32.mxu0 0.0
    %2310 = vmatmul.mubr.f32.gmra.mrb[0].mxu0 %v2240
    %v2311 = vpop.f32.mrb[0].mxu0
    %v2312 = vadd.f32 %v2231, %v2311
    %v2313 = vpop.f32.mrb[0].mxu0
    %2314 = vmatprep.mubr.f32.mxu0 0.0
    %2315 = vmatmul.mubr.f32.gmra.mrb[0].mxu0 %v2243
    %v2316 = vpop.f32.mrb[0].mxu0
    %v2317 = vadd.f32 %v2236, %v2316
    %v2318 = vpop.f32.mrb[0].mxu0
    %2319 = vdwg.mxu0
    %2320 = vrot.lane.b32.xlu0 %v1747, 112
    %v2321 = vpop.permute.xlu0 %2320
    %2322 = vrot.lane.b32.xlu0 %v1752, 112
    %v2323 = vpop.permute.xlu0 %2322
    %2324 = vrot.lane.b32.xlu0 %v1747, 80
    %v2325 = vpop.permute.xlu0 %2324
    %2326 = vrot.lane.b32.xlu0 %v1752, 80
    %v2327 = vpop.permute.xlu0 %2326
    %v2328 = vsel %vm270, %v2321, 0
    %v2330 = vsel %vm270, %v2323, 0
    %v2332 = vsel %vm270, %v2325, 0
    %v2334 = vsel %vm270, %v2327, 0
    %2336 = vmatprep.subr.mxu0 0.0
    %2337 = vmatpush1.xpose.msra.mxu0 %v2332
    %2338 = vmatprep.subr.mxu0 0.0
    %2339 = vmatpush1.xpose.msra.mxu0 %v2334
    %2340 = vmatprep.subr.mxu0 0.0
    %2341 = vmatpush1.xpose.msra.mxu0 0.0
    %2342 = vmatprep.subr.mxu0 0.0
    %2343 = vmatpush1.xpose.msra.mxu0 0.0
    %2344 = vmatprep.subr.mxu0 0.0
    %2345 = vmatpush1.xpose.msra.mxu0 0.0
    %2346 = vmatprep.subr.mxu0 0.0
    %2347 = vmatpush1.xpose.msra.mxu0 0.0
    %2348 = vmatprep.subr.mxu0 0.0
    %2349 = vmatpush1.xpose.msra.mxu0 0.0
    %2350 = vmatprep.subr.mxu0 0.0
    %2351 = vmatpush1.xpose.msra.mxu0 0.0
    %2352 = vmatprep.subr.mxu0 0.0
    %2353 = vmatpush1.xpose.msra.mxu0 0.0
    %2354 = vmatprep.subr.mxu0 0.0
    %2355 = vmatpush1.xpose.msra.mxu0 0.0
    %2356 = vmatprep.subr.mxu0 0.0
    %2357 = vmatpush1.xpose.msra.mxu0 0.0
    %2358 = vmatprep.subr.mxu0 0.0
    %2359 = vmatpush1.xpose.msra.mxu0 0.0
    %2360 = vmatprep.subr.mxu0 0.0
    %2361 = vmatpush1.xpose.msra.mxu0 0.0
    %2362 = vmatprep.subr.mxu0 0.0
    %2363 = vmatpush1.xpose.msra.mxu0 0.0
    %2364 = vmatprep.subr.mxu0 0.0
    %2365 = vmatpush1.xpose.msra.mxu0 0.0
    %2366 = vmatprep.subr.mxu0 0.0
    %2367 = vmatpush1.xpose.msra.mxu0 0.0
    %2368 = vmatprep.subr.mxu0 0.0
    %2369 = vmatpush1.xpose.msra.mxu0 0.0
    %2370 = vmatprep.subr.mxu0 0.0
    %2371 = vmatpush1.xpose.msra.mxu0 0.0
    %2372 = vmatprep.subr.mxu0 0.0
    %2373 = vmatpush1.xpose.msra.mxu0 0.0
    %2374 = vmatprep.subr.mxu0 0.0
    %2375 = vmatpush1.xpose.msra.mxu0 0.0
    %2376 = vmatprep.subr.mxu0 0.0
    %2377 = vmatpush1.xpose.msra.mxu0 0.0
    %2378 = vmatprep.subr.mxu0 0.0
    %2379 = vmatpush1.xpose.msra.mxu0 0.0
    %2380 = vmatprep.subr.mxu0 0.0
    %2381 = vmatpush1.xpose.msra.mxu0 0.0
    %2382 = vmatprep.subr.mxu0 0.0
    %2383 = vmatpush1.xpose.msra.mxu0 0.0
    %2384 = vmatprep.subr.mxu0 0.0
    %2385 = vmatpush1.xpose.msra.mxu0 0.0
    %2386 = vmatprep.subr.mxu0 0.0
    %2387 = vmatpush1.xpose.msra.mxu0 0.0
    %2388 = vmatprep.subr.mxu0 0.0
    %2389 = vmatpush1.xpose.msra.mxu0 0.0
    %2390 = vmatprep.subr.mxu0 0.0
    %2391 = vmatpush1.xpose.msra.mxu0 0.0
    %2392 = vmatprep.subr.mxu0 0.0
    %2393 = vmatpush1.xpose.msra.mxu0 0.0
    %2394 = vmatprep.subr.mxu0 0.0
    %2395 = vmatpush1.xpose.msra.mxu0 0.0
    %2396 = vmatprep.subr.mxu0 0.0
    %2397 = vmatpush1.xpose.msra.mxu0 0.0
    %2398 = vmatprep.subr.mxu0 0.0
    %2399 = vmatpush1.xpose.msra.mxu0 0.0
    %2400 = vmatprep.mubr.f32.mxu0 0.0
    %2401 = vmatmul.mubr.f32.gmra.mrb[0].mxu0 %v2328
    %v2402 = vpop.f32.mrb[0].mxu0
    %v2403 = vadd.f32 %v168, %v2402
    %v2404 = vpop.f32.mrb[0].mxu0
    %2405 = vmatprep.mubr.f32.mxu0 0.0
    %2406 = vmatmul.mubr.f32.gmra.mrb[0].mxu0 %v2330
    %v2407 = vpop.f32.mrb[0].mxu0
    %v2408 = vadd.f32 %v169, %v2407
    %v2409 = vpop.f32.mrb[0].mxu0
    %2410 = vdwg.mxu0
    %v2411 = vsel %vm354, %v2403, -inf
    %2412 = vmax.xlane.f32.xlu0 %v2411
    %v2413 = vpop.xlane.xlu0 %2412
    %v2414 = vsel %vm354, %v2408, -inf
    %2415 = vmax.xlane.f32.xlu0 %v2414
    %v2416 = vpop.xlane.xlu0 %2415
    %v2417 = vsub.f32 %v2403, %v2413
    %v2418 = vsub.f32 %v2408, %v2416
    %v2419 = vmul.f32 %v2417, 1.442695
    %v2420 = vpow.pop %v2419
    %v2421 = vmul.f32 %v2418, 1.442695
    %v2422 = vpow.pop %v2421
    %v2423 = vsel %vm354, %v2420, 0.0
    %2424 = vadd.xlane.f32.xlu0 %v2423
    %v2425 = vpop.xlane.xlu0 %2424
    %v2426 = vsel %vm354, %v2422, 0.0
    %2427 = vadd.xlane.f32.xlu0 %v2426
    %v2428 = vpop.xlane.xlu0 %2427
    %v2429 = vrcp.pop %v2425
    %v2430 = vrcp.pop %v2428
    %v2431 = vmul.f32 %v2420, %v2429
    %v2432 = vmul.f32 %v2422, %v2430
    %2433 = vrot.lane.b32.xlu0 %v1747, 48
    %v2434 = vpop.permute.xlu0 %2433
    %2435 = vrot.lane.b32.xlu0 %v1752, 48
    %v2436 = vpop.permute.xlu0 %2435
    %v2440 = vsel %vm354, %v2431, 0
    %v2443 = vsel %vm354, %v2432, 0
    %2445 = vmatprep.subr.mxu0 0.0
    %2446 = vmatpush1.msra.mxu0 %v2434
    %2447 = vmatprep.subr.mxu0 0.0
    %2448 = vmatpush1.msra.mxu0 %v2436
    %2449 = vmatprep.subr.mxu0 0.0
    %2450 = vmatpush1.msra.mxu0 0.0
    %2451 = vmatprep.subr.mxu0 0.0
    %2452 = vmatpush1.msra.mxu0 0.0
    %2453 = vmatprep.subr.mxu0 0.0
    %2454 = vmatpush1.msra.mxu0 0.0
    %2455 = vmatprep.subr.mxu0 0.0
    %2456 = vmatpush1.msra.mxu0 0.0
    %2457 = vmatprep.subr.mxu0 0.0
    %2458 = vmatpush1.msra.mxu0 0.0
    %2459 = vmatprep.subr.mxu0 0.0
    %2460 = vmatpush1.msra.mxu0 0.0
    %2461 = vmatprep.subr.mxu0 0.0
    %2462 = vmatpush1.msra.mxu0 0.0
    %2463 = vmatprep.subr.mxu0 0.0
    %2464 = vmatpush1.msra.mxu0 0.0
    %2465 = vmatprep.subr.mxu0 0.0
    %2466 = vmatpush1.msra.mxu0 0.0
    %2467 = vmatprep.subr.mxu0 0.0
    %2468 = vmatpush1.msra.mxu0 0.0
    %2469 = vmatprep.subr.mxu0 0.0
    %2470 = vmatpush1.msra.mxu0 0.0
    %2471 = vmatprep.subr.mxu0 0.0
    %2472 = vmatpush1.msra.mxu0 0.0
    %2473 = vmatprep.subr.mxu0 0.0
    %2474 = vmatpush1.msra.mxu0 0.0
    %2475 = vmatprep.subr.mxu0 0.0
    %2476 = vmatpush1.msra.mxu0 0.0
    %2477 = vmatprep.subr.mxu0 0.0
    %2478 = vmatpush1.msra.mxu0 0.0
    %2479 = vmatprep.subr.mxu0 0.0
    %2480 = vmatpush1.msra.mxu0 0.0
    %2481 = vmatprep.subr.mxu0 0.0
    %2482 = vmatpush1.msra.mxu0 0.0
    %2483 = vmatprep.subr.mxu0 0.0
    %2484 = vmatpush1.msra.mxu0 0.0
    %2485 = vmatprep.subr.mxu0 0.0
    %2486 = vmatpush1.msra.mxu0 0.0
    %2487 = vmatprep.subr.mxu0 0.0
    %2488 = vmatpush1.msra.mxu0 0.0
    %2489 = vmatprep.subr.mxu0 0.0
    %2490 = vmatpush1.msra.mxu0 0.0
    %2491 = vmatprep.subr.mxu0 0.0
    %2492 = vmatpush1.msra.mxu0 0.0
    %2493 = vmatprep.subr.mxu0 0.0
    %2494 = vmatpush1.msra.mxu0 0.0
    %2495 = vmatprep.subr.mxu0 0.0
    %2496 = vmatpush1.msra.mxu0 0.0
    %2497 = vmatprep.subr.mxu0 0.0
    %2498 = vmatpush1.msra.mxu0 0.0
    %2499 = vmatprep.subr.mxu0 0.0
    %2500 = vmatpush1.msra.mxu0 0.0
    %2501 = vmatprep.subr.mxu0 0.0
    %2502 = vmatpush1.msra.mxu0 0.0
    %2503 = vmatprep.subr.mxu0 0.0
    %2504 = vmatpush1.msra.mxu0 0.0
    %2505 = vmatprep.subr.mxu0 0.0
    %2506 = vmatpush1.msra.mxu0 0.0
    %2507 = vmatprep.subr.mxu0 0.0
    %2508 = vmatpush1.msra.mxu0 0.0
    %2509 = vmatprep.mubr.f32.mxu0 0.0
    %2510 = vmatmul.mubr.f32.gmra.mrb[0].mxu0 %v2440
    %v2511 = vpop.f32.mrb[0].mxu0
    %v2512 = vadd.f32 0.0, %v2511
    %v2513 = vpop.f32.mrb[0].mxu0
    %2514 = vmatprep.mubr.f32.mxu0 0.0
    %2515 = vmatmul.mubr.f32.gmra.mrb[0].mxu0 %v2443
    %v2516 = vpop.f32.mrb[0].mxu0
    %v2517 = vadd.f32 0.0, %v2516
    %v2518 = vpop.f32.mrb[0].mxu0
    %2519 = vdwg.mxu0
    %v2521 = vsel %vm270, %v2512, 0
    %v2524 = vsel %vm270, %v2517, 0
    %2526 = vmatprep.subr.mxu0 0.0
    %2527 = vmatpush1.msra.mxu0 %v1758
    %2528 = vmatprep.subr.mxu0 0.0
    %2529 = vmatpush1.msra.mxu0 0.0
    %2530 = vmatprep.subr.mxu0 0.0
    %2531 = vmatpush1.msra.mxu0 0.0
    %2532 = vmatprep.subr.mxu0 0.0
    %2533 = vmatpush1.msra.mxu0 0.0
    %2534 = vmatprep.subr.mxu0 0.0
    %2535 = vmatpush1.msra.mxu0 0.0
    %2536 = vmatprep.subr.mxu0 0.0
    %2537 = vmatpush1.msra.mxu0 0.0
    %2538 = vmatprep.subr.mxu0 0.0
    %2539 = vmatpush1.msra.mxu0 0.0
    %2540 = vmatprep.subr.mxu0 0.0
    %2541 = vmatpush1.msra.mxu0 0.0
    %2542 = vmatprep.subr.mxu0 0.0
    %2543 = vmatpush1.msra.mxu0 0.0
    %2544 = vmatprep.subr.mxu0 0.0
    %2545 = vmatpush1.msra.mxu0 0.0
    %2546 = vmatprep.subr.mxu0 0.0
    %2547 = vmatpush1.msra.mxu0 0.0
    %2548 = vmatprep.subr.mxu0 0.0
    %2549 = vmatpush1.msra.mxu0 0.0
    %2550 = vmatprep.subr.mxu0 0.0
    %2551 = vmatpush1.msra.mxu0 0.0
    %2552 = vmatprep.subr.mxu0 0.0
    %2553 = vmatpush1.msra.mxu0 0.0
    %2554 = vmatprep.subr.mxu0 0.0
    %2555 = vmatpush1.msra.mxu0 0.0
    %2556 = vmatprep.subr.mxu0 0.0
    %2557 = vmatpush1.msra.mxu0 0.0
    %2558 = vmatprep.subr.mxu0 0.0
    %2559 = vmatpush1.msra.mxu0 0.0
    %2560 = vmatprep.subr.mxu0 0.0
    %2561 = vmatpush1.msra.mxu0 0.0
    %2562 = vmatprep.subr.mxu0 0.0
    %2563 = vmatpush1.msra.mxu0 0.0
    %2564 = vmatprep.subr.mxu0 0.0
    %2565 = vmatpush1.msra.mxu0 0.0
    %2566 = vmatprep.subr.mxu0 0.0
    %2567 = vmatpush1.msra.mxu0 0.0
    %2568 = vmatprep.subr.mxu0 0.0
    %2569 = vmatpush1.msra.mxu0 0.0
    %2570 = vmatprep.subr.mxu0 0.0
    %2571 = vmatpush1.msra.mxu0 0.0
    %2572 = vmatprep.subr.mxu0 0.0
    %2573 = vmatpush1.msra.mxu0 0.0
    %2574 = vmatprep.subr.mxu0 0.0
    %2575 = vmatpush1.msra.mxu0 0.0
    %2576 = vmatprep.subr.mxu0 0.0
    %2577 = vmatpush1.msra.mxu0 0.0
    %2578 = vmatprep.subr.mxu0 0.0
    %2579 = vmatpush1.msra.mxu0 0.0
    %2580 = vmatprep.subr.mxu0 0.0
    %2581 = vmatpush1.msra.mxu0 0.0
    %2582 = vmatprep.subr.mxu0 0.0
    %2583 = vmatpush1.msra.mxu0 0.0
    %2584 = vmatprep.subr.mxu0 0.0
    %2585 = vmatpush1.msra.mxu0 0.0
    %2586 = vmatprep.subr.mxu0 0.0
    %2587 = vmatpush1.msra.mxu0 0.0
    %2588 = vmatprep.subr.mxu0 0.0
    %2589 = vmatpush1.msra.mxu0 0.0
    %2590 = vmatprep.mubr.f32.mxu0 0.0
    %2591 = vmatmul.mubr.f32.gmra.mrb[0].mxu0 %v2521
    %v2592 = vpop.f32.mrb[0].mxu0
    %v2593 = vadd.f32 0.0, %v2592
    %v2594 = vpop.f32.mrb[0].mxu0
    %2595 = vmatprep.mubr.f32.mxu0 0.0
    %2596 = vmatmul.mubr.f32.gmra.mrb[0].mxu0 %v2524
    %v2597 = vpop.f32.mrb[0].mxu0
    %v2598 = vadd.f32 0.0, %v2597
    %v2599 = vpop.f32.mrb[0].mxu0
    %2600 = vdwg.mxu0
    %v2601 = vadd.f32 %v2312, %v2593
    %v2602 = vadd.f32 %v2317, %v2598
    %2603 = vrot.lane.b32.xlu0 %v1747, 104
    %v2604 = vpop.permute.xlu0 %2603
    %2605 = vrot.lane.b32.xlu0 %v1752, 104
    %v2606 = vpop.permute.xlu0 %2605
    %2607 = vrot.lane.b32.xlu0 %v1747, 72
    %v2608 = vpop.permute.xlu0 %2607
    %2609 = vrot.lane.b32.xlu0 %v1752, 72
    %v2610 = vpop.permute.xlu0 %2609
    %v2611 = vsel %vm270, %v2604, 0
    %v2613 = vsel %vm270, %v2606, 0
    %v2615 = vsel %vm270, %v2608, 0
    %v2617 = vsel %vm270, %v2610, 0
    %2619 = vmatprep.subr.mxu0 0.0
    %2620 = vmatpush1.xpose.msra.mxu0 %v2615
    %2621 = vmatprep.subr.mxu0 0.0
    %2622 = vmatpush1.xpose.msra.mxu0 %v2617
    %2623 = vmatprep.subr.mxu0 0.0
    %2624 = vmatpush1.xpose.msra.mxu0 0.0
    %2625 = vmatprep.subr.mxu0 0.0
    %2626 = vmatpush1.xpose.msra.mxu0 0.0
    %2627 = vmatprep.subr.mxu0 0.0
    %2628 = vmatpush1.xpose.msra.mxu0 0.0
    %2629 = vmatprep.subr.mxu0 0.0
    %2630 = vmatpush1.xpose.msra.mxu0 0.0
    %2631 = vmatprep.subr.mxu0 0.0
    %2632 = vmatpush1.xpose.msra.mxu0 0.0
    %2633 = vmatprep.subr.mxu0 0.0
    %2634 = vmatpush1.xpose.msra.mxu0 0.0
    %2635 = vmatprep.subr.mxu0 0.0
    %2636 = vmatpush1.xpose.msra.mxu0 0.0
    %2637 = vmatprep.subr.mxu0 0.0
    %2638 = vmatpush1.xpose.msra.mxu0 0.0
    %2639 = vmatprep.subr.mxu0 0.0
    %2640 = vmatpush1.xpose.msra.mxu0 0.0
    %2641 = vmatprep.subr.mxu0 0.0
    %2642 = vmatpush1.xpose.msra.mxu0 0.0
    %2643 = vmatprep.subr.mxu0 0.0
    %2644 = vmatpush1.xpose.msra.mxu0 0.0
    %2645 = vmatprep.subr.mxu0 0.0
    %2646 = vmatpush1.xpose.msra.mxu0 0.0
    %2647 = vmatprep.subr.mxu0 0.0
    %2648 = vmatpush1.xpose.msra.mxu0 0.0
    %2649 = vmatprep.subr.mxu0 0.0
    %2650 = vmatpush1.xpose.msra.mxu0 0.0
    %2651 = vmatprep.subr.mxu0 0.0
    %2652 = vmatpush1.xpose.msra.mxu0 0.0
    %2653 = vmatprep.subr.mxu0 0.0
    %2654 = vmatpush1.xpose.msra.mxu0 0.0
    %2655 = vmatprep.subr.mxu0 0.0
    %2656 = vmatpush1.xpose.msra.mxu0 0.0
    %2657 = vmatprep.subr.mxu0 0.0
    %2658 = vmatpush1.xpose.msra.mxu0 0.0
    %2659 = vmatprep.subr.mxu0 0.0
    %2660 = vmatpush1.xpose.msra.mxu0 0.0
    %2661 = vmatprep.subr.mxu0 0.0
    %2662 = vmatpush1.xpose.msra.mxu0 0.0
    %2663 = vmatprep.subr.mxu0 0.0
    %2664 = vmatpush1.xpose.msra.mxu0 0.0
    %2665 = vmatprep.subr.mxu0 0.0
    %2666 = vmatpush1.xpose.msra.mxu0 0.0
    %2667 = vmatprep.subr.mxu0 0.0
    %2668 = vmatpush1.xpose.msra.mxu0 0.0
    %2669 = vmatprep.subr.mxu0 0.0
    %2670 = vmatpush1.xpose.msra.mxu0 0.0
    %2671 = vmatprep.subr.mxu0 0.0
    %2672 = vmatpush1.xpose.msra.mxu0 0.0
    %2673 = vmatprep.subr.mxu0 0.0
    %2674 = vmatpush1.xpose.msra.mxu0 0.0
    %2675 = vmatprep.subr.mxu0 0.0
    %2676 = vmatpush1.xpose.msra.mxu0 0.0
    %2677 = vmatprep.subr.mxu0 0.0
    %2678 = vmatpush1.xpose.msra.mxu0 0.0
    %2679 = vmatprep.subr.mxu0 0.0
    %2680 = vmatpush1.xpose.msra.mxu0 0.0
    %2681 = vmatprep.subr.mxu0 0.0
    %2682 = vmatpush1.xpose.msra.mxu0 0.0
    %2683 = vmatprep.mubr.f32.mxu0 0.0
    %2684 = vmatmul.mubr.f32.gmra.mrb[0].mxu0 %v2611
    %v2685 = vpop.f32.mrb[0].mxu0
    %v2686 = vadd.f32 %v168, %v2685
    %v2687 = vpop.f32.mrb[0].mxu0
    %2688 = vmatprep.mubr.f32.mxu0 0.0
    %2689 = vmatmul.mubr.f32.gmra.mrb[0].mxu0 %v2613
    %v2690 = vpop.f32.mrb[0].mxu0
    %v2691 = vadd.f32 %v169, %v2690
    %v2692 = vpop.f32.mrb[0].mxu0
    %2693 = vdwg.mxu0
    %v2694 = vsel %vm354, %v2686, -inf
    %2695 = vmax.xlane.f32.xlu0 %v2694
    %v2696 = vpop.xlane.xlu0 %2695
    %v2697 = vsel %vm354, %v2691, -inf
    %2698 = vmax.xlane.f32.xlu0 %v2697
    %v2699 = vpop.xlane.xlu0 %2698
    %v2700 = vsub.f32 %v2686, %v2696
    %v2701 = vsub.f32 %v2691, %v2699
    %v2702 = vmul.f32 %v2700, 1.442695
    %v2703 = vpow.pop %v2702
    %v2704 = vmul.f32 %v2701, 1.442695
    %v2705 = vpow.pop %v2704
    %v2706 = vsel %vm354, %v2703, 0.0
    %2707 = vadd.xlane.f32.xlu0 %v2706
    %v2708 = vpop.xlane.xlu0 %2707
    %v2709 = vsel %vm354, %v2705, 0.0
    %2710 = vadd.xlane.f32.xlu0 %v2709
    %v2711 = vpop.xlane.xlu0 %2710
    %v2712 = vrcp.pop %v2708
    %v2713 = vrcp.pop %v2711
    %v2714 = vmul.f32 %v2703, %v2712
    %v2715 = vmul.f32 %v2705, %v2713
    %2716 = vrot.lane.b32.xlu0 %v1747, 40
    %v2717 = vpop.permute.xlu0 %2716
    %2718 = vrot.lane.b32.xlu0 %v1752, 40
    %v2719 = vpop.permute.xlu0 %2718
    %v2723 = vsel %vm354, %v2714, 0
    %v2726 = vsel %vm354, %v2715, 0
    %2728 = vmatprep.subr.mxu0 0.0
    %2729 = vmatpush1.msra.mxu0 %v2717
    %2730 = vmatprep.subr.mxu0 0.0
    %2731 = vmatpush1.msra.mxu0 %v2719
    %2732 = vmatprep.subr.mxu0 0.0
    %2733 = vmatpush1.msra.mxu0 0.0
    %2734 = vmatprep.subr.mxu0 0.0
    %2735 = vmatpush1.msra.mxu0 0.0
    %2736 = vmatprep.subr.mxu0 0.0
    %2737 = vmatpush1.msra.mxu0 0.0
    %2738 = vmatprep.subr.mxu0 0.0
    %2739 = vmatpush1.msra.mxu0 0.0
    %2740 = vmatprep.subr.mxu0 0.0
    %2741 = vmatpush1.msra.mxu0 0.0
    %2742 = vmatprep.subr.mxu0 0.0
    %2743 = vmatpush1.msra.mxu0 0.0
    %2744 = vmatprep.subr.mxu0 0.0
    %2745 = vmatpush1.msra.mxu0 0.0
    %2746 = vmatprep.subr.mxu0 0.0
    %2747 = vmatpush1.msra.mxu0 0.0
    %2748 = vmatprep.subr.mxu0 0.0
    %2749 = vmatpush1.msra.mxu0 0.0
    %2750 = vmatprep.subr.mxu0 0.0
    %2751 = vmatpush1.msra.mxu0 0.0
    %2752 = vmatprep.subr.mxu0 0.0
    %2753 = vmatpush1.msra.mxu0 0.0
    %2754 = vmatprep.subr.mxu0 0.0
    %2755 = vmatpush1.msra.mxu0 0.0
    %2756 = vmatprep.subr.mxu0 0.0
    %2757 = vmatpush1.msra.mxu0 0.0
    %2758 = vmatprep.subr.mxu0 0.0
    %2759 = vmatpush1.msra.mxu0 0.0
    %2760 = vmatprep.subr.mxu0 0.0
    %2761 = vmatpush1.msra.mxu0 0.0
    %2762 = vmatprep.subr.mxu0 0.0
    %2763 = vmatpush1.msra.mxu0 0.0
    %2764 = vmatprep.subr.mxu0 0.0
    %2765 = vmatpush1.msra.mxu0 0.0
    %2766 = vmatprep.subr.mxu0 0.0
    %2767 = vmatpush1.msra.mxu0 0.0
    %2768 = vmatprep.subr.mxu0 0.0
    %2769 = vmatpush1.msra.mxu0 0.0
    %2770 = vmatprep.subr.mxu0 0.0
    %2771 = vmatpush1.msra.mxu0 0.0
    %2772 = vmatprep.subr.mxu0 0.0
    %2773 = vmatpush1.msra.mxu0 0.0
    %2774 = vmatprep.subr.mxu0 0.0
    %2775 = vmatpush1.msra.mxu0 0.0
    %2776 = vmatprep.subr.mxu0 0.0
    %2777 = vmatpush1.msra.mxu0 0.0
    %2778 = vmatprep.subr.mxu0 0.0
    %2779 = vmatpush1.msra.mxu0 0.0
    %2780 = vmatprep.subr.mxu0 0.0
    %2781 = vmatpush1.msra.mxu0 0.0
    %2782 = vmatprep.subr.mxu0 0.0
    %2783 = vmatpush1.msra.mxu0 0.0
    %2784 = vmatprep.subr.mxu0 0.0
    %2785 = vmatpush1.msra.mxu0 0.0
    %2786 = vmatprep.subr.mxu0 0.0
    %2787 = vmatpush1.msra.mxu0 0.0
    %2788 = vmatprep.subr.mxu0 0.0
    %2789 = vmatpush1.msra.mxu0 0.0
    %2790 = vmatprep.subr.mxu0 0.0
    %2791 = vmatpush1.msra.mxu0 0.0
    %2792 = vmatprep.mubr.f32.mxu0 0.0
    %2793 = vmatmul.mubr.f32.gmra.mrb[0].mxu0 %v2723
    %v2794 = vpop.f32.mrb[0].mxu0
    %v2795 = vadd.f32 0.0, %v2794
    %v2796 = vpop.f32.mrb[0].mxu0
    %2797 = vmatprep.mubr.f32.mxu0 0.0
    %2798 = vmatmul.mubr.f32.gmra.mrb[0].mxu0 %v2726
    %v2799 = vpop.f32.mrb[0].mxu0
    %v2800 = vadd.f32 0.0, %v2799
    %v2801 = vpop.f32.mrb[0].mxu0
    %2802 = vdwg.mxu0
    %v2804 = vsel %vm270, %v2795, 0
    %v2807 = vsel %vm270, %v2800, 0
    %2809 = vmatprep.subr.mxu0 0.0
    %2810 = vmatpush1.msra.mxu0 %v1759
    %2811 = vmatprep.subr.mxu0 0.0
    %2812 = vmatpush1.msra.mxu0 0.0
    %2813 = vmatprep.subr.mxu0 0.0
    %2814 = vmatpush1.msra.mxu0 0.0
    %2815 = vmatprep.subr.mxu0 0.0
    %2816 = vmatpush1.msra.mxu0 0.0
    %2817 = vmatprep.subr.mxu0 0.0
    %2818 = vmatpush1.msra.mxu0 0.0
    %2819 = vmatprep.subr.mxu0 0.0
    %2820 = vmatpush1.msra.mxu0 0.0
    %2821 = vmatprep.subr.mxu0 0.0
    %2822 = vmatpush1.msra.mxu0 0.0
    %2823 = vmatprep.subr.mxu0 0.0
    %2824 = vmatpush1.msra.mxu0 0.0
    %2825 = vmatprep.subr.mxu0 0.0
    %2826 = vmatpush1.msra.mxu0 0.0
    %2827 = vmatprep.subr.mxu0 0.0
    %2828 = vmatpush1.msra.mxu0 0.0
    %2829 = vmatprep.subr.mxu0 0.0
    %2830 = vmatpush1.msra.mxu0 0.0
    %2831 = vmatprep.subr.mxu0 0.0
    %2832 = vmatpush1.msra.mxu0 0.0
    %2833 = vmatprep.subr.mxu0 0.0
    %2834 = vmatpush1.msra.mxu0 0.0
    %2835 = vmatprep.subr.mxu0 0.0
    %2836 = vmatpush1.msra.mxu0 0.0
    %2837 = vmatprep.subr.mxu0 0.0
    %2838 = vmatpush1.msra.mxu0 0.0
    %2839 = vmatprep.subr.mxu0 0.0
    %2840 = vmatpush1.msra.mxu0 0.0
    %2841 = vmatprep.subr.mxu0 0.0
    %2842 = vmatpush1.msra.mxu0 0.0
    %2843 = vmatprep.subr.mxu0 0.0
    %2844 = vmatpush1.msra.mxu0 0.0
    %2845 = vmatprep.subr.mxu0 0.0
    %2846 = vmatpush1.msra.mxu0 0.0
    %2847 = vmatprep.subr.mxu0 0.0
    %2848 = vmatpush1.msra.mxu0 0.0
    %2849 = vmatprep.subr.mxu0 0.0
    %2850 = vmatpush1.msra.mxu0 0.0
    %2851 = vmatprep.subr.mxu0 0.0
    %2852 = vmatpush1.msra.mxu0 0.0
    %2853 = vmatprep.subr.mxu0 0.0
    %2854 = vmatpush1.msra.mxu0 0.0
    %2855 = vmatprep.subr.mxu0 0.0
    %2856 = vmatpush1.msra.mxu0 0.0
    %2857 = vmatprep.subr.mxu0 0.0
    %2858 = vmatpush1.msra.mxu0 0.0
    %2859 = vmatprep.subr.mxu0 0.0
    %2860 = vmatpush1.msra.mxu0 0.0
    %2861 = vmatprep.subr.mxu0 0.0
    %2862 = vmatpush1.msra.mxu0 0.0
    %2863 = vmatprep.subr.mxu0 0.0
    %2864 = vmatpush1.msra.mxu0 0.0
    %2865 = vmatprep.subr.mxu0 0.0
    %2866 = vmatpush1.msra.mxu0 0.0
    %2867 = vmatprep.subr.mxu0 0.0
    %2868 = vmatpush1.msra.mxu0 0.0
    %2869 = vmatprep.subr.mxu0 0.0
    %2870 = vmatpush1.msra.mxu0 0.0
    %2871 = vmatprep.subr.mxu0 0.0
    %2872 = vmatpush1.msra.mxu0 0.0
    %2873 = vmatprep.mubr.f32.mxu0 0.0
    %2874 = vmatmul.mubr.f32.gmra.mrb[0].mxu0 %v2804
    %v2875 = vpop.f32.mrb[0].mxu0
    %v2876 = vadd.f32 0.0, %v2875
    %v2877 = vpop.f32.mrb[0].mxu0
    %2878 = vmatprep.mubr.f32.mxu0 0.0
    %2879 = vmatmul.mubr.f32.gmra.mrb[0].mxu0 %v2807
    %v2880 = vpop.f32.mrb[0].mxu0
    %v2881 = vadd.f32 0.0, %v2880
    %v2882 = vpop.f32.mrb[0].mxu0
    %2883 = vdwg.mxu0
    %v2884 = vadd.f32 %v2601, %v2876
    %v2885 = vadd.f32 %v2602, %v2881
    %v2886 = vadd.f32 %v1661, %v2884
    %v2887 = vadd.f32 %v1662, %v2885
    %v2888 = vlaneseq
    %v2889 = vshrl.u32 %v2888, 7
    %v2890 = vsub.s32 1, %v2889
    %v2891 = vrot.slane %v1664, %v2890
    %v2892 = vadd.f32 %v2886, %v2891
    %v2893 = vadd.f32 %v2887, %v2891
    %v2894 = vsel %vm178, %v2892, 0.0
    %2895 = vadd.xlane.f32.xlu0 %v2894
    %v2896 = vpop.xlane.xlu0 %2895
    %v2897 = vsel %vm178, %v2893, 0.0
    %2898 = vadd.xlane.f32.xlu0 %v2897
    %v2899 = vpop.xlane.xlu0 %2898
    %v2900 = vmul.f32 %v2896, %v1406
    %v2901 = vmul.f32 %v2899, %v1406
    %v2902 = vsub.f32 %v2892, %v2900
    %v2903 = vsub.f32 %v2893, %v2901
    %v2904 = vmul.f32 %v2902, %v2902
    %v2905 = vmul.f32 %v2903, %v2903
    %v2906 = vsel %vm178, %v2904, 0.0
    %2907 = vadd.xlane.f32.xlu0 %v2906
    %v2908 = vpop.xlane.xlu0 %2907
    %v2909 = vsel %vm178, %v2905, 0.0
    %2910 = vadd.xlane.f32.xlu0 %v2909
    %v2911 = vpop.xlane.xlu0 %2910
    %v2912 = vmul.f32 %v2908, %v1406
    %v2913 = vmul.f32 %v2911, %v1406
    %v2914 = vadd.f32 %v2912, 1e-05
    %v2915 = vadd.f32 %v2913, 1e-05
    %v2916 = vrsqrt.pop %v2914
    %v2917 = vrsqrt.pop %v2915
    %v2918 = vmul.f32 %v2902, %v2916
    %v2919 = vmul.f32 %v2903, %v2917
    %v2920 = vlaneseq
    %v2921 = vshrl.u32 %v2920, 7
    %v2922 = vsub.s32 4, %v2921
    %v2923 = vrot.slane %v1664, %v2922
    %v2924 = vmul.f32 %v2918, %v2923
    %v2925 = vmul.f32 %v2919, %v2923
    %v2926 = vlaneseq
    %v2927 = vshrl.u32 %v2926, 7
    %v2928 = vsub.s32 5, %v2927
    %v2929 = vrot.slane %v1664, %v2928
    %v2930 = vadd.f32 %v2924, %v2929
    %v2931 = vadd.f32 %v2925, %v2929
    %s2932 = scalar_lea.vmem %s4, 32
    %v2933 = vld [vmem:[%s2932] sm:$0xff]
    %v2934 = vld [vmem:[%s2932 + $0x8] sm:$0xff]
    %v2935 = vld [vmem:[%s2932 + $0x10] sm:$0xff]
    %v2936 = vld [vmem:[%s2932 + $0x18] sm:$0xff]
    %v2937 = vlaneseq
    %v2938 = vshrl.u32 %v2937, 7
    %v2939 = vsub.s32 2, %v2938
    %v2940 = vrot.slane %v1664, %v2939
    %v2942 = vsel %vm178, %v2930, 0
    %v2945 = vsel %vm178, %v2931, 0
    %2947 = vmatprep.subr.mxu0 0.0
    %2948 = vmatpush1.msra.mxu0 %v2933
    %2949 = vmatprep.subr.mxu0 0.0
    %2950 = vmatpush1.msra.mxu0 %v2934
    %2951 = vmatprep.subr.mxu0 0.0
    %2952 = vmatpush1.msra.mxu0 %v2935
    %2953 = vmatprep.subr.mxu0 0.0
    %2954 = vmatpush1.msra.mxu0 %v2936
    %2955 = vmatprep.subr.mxu0 0.0
    %2956 = vmatpush1.msra.mxu0 0.0
    %2957 = vmatprep.subr.mxu0 0.0
    %2958 = vmatpush1.msra.mxu0 0.0
    %2959 = vmatprep.subr.mxu0 0.0
    %2960 = vmatpush1.msra.mxu0 0.0
    %2961 = vmatprep.subr.mxu0 0.0
    %2962 = vmatpush1.msra.mxu0 0.0
    %2963 = vmatprep.subr.mxu0 0.0
    %2964 = vmatpush1.msra.mxu0 0.0
    %2965 = vmatprep.subr.mxu0 0.0
    %2966 = vmatpush1.msra.mxu0 0.0
    %2967 = vmatprep.subr.mxu0 0.0
    %2968 = vmatpush1.msra.mxu0 0.0
    %2969 = vmatprep.subr.mxu0 0.0
    %2970 = vmatpush1.msra.mxu0 0.0
    %2971 = vmatprep.subr.mxu0 0.0
    %2972 = vmatpush1.msra.mxu0 0.0
    %2973 = vmatprep.subr.mxu0 0.0
    %2974 = vmatpush1.msra.mxu0 0.0
    %2975 = vmatprep.subr.mxu0 0.0
    %2976 = vmatpush1.msra.mxu0 0.0
    %2977 = vmatprep.subr.mxu0 0.0
    %2978 = vmatpush1.msra.mxu0 0.0
    %2979 = vmatprep.subr.mxu0 0.0
    %2980 = vmatpush1.msra.mxu0 0.0
    %2981 = vmatprep.subr.mxu0 0.0
    %2982 = vmatpush1.msra.mxu0 0.0
    %2983 = vmatprep.subr.mxu0 0.0
    %2984 = vmatpush1.msra.mxu0 0.0
    %2985 = vmatprep.subr.mxu0 0.0
    %2986 = vmatpush1.msra.mxu0 0.0
    %2987 = vmatprep.subr.mxu0 0.0
    %2988 = vmatpush1.msra.mxu0 0.0
    %2989 = vmatprep.subr.mxu0 0.0
    %2990 = vmatpush1.msra.mxu0 0.0
    %2991 = vmatprep.subr.mxu0 0.0
    %2992 = vmatpush1.msra.mxu0 0.0
    %2993 = vmatprep.subr.mxu0 0.0
    %2994 = vmatpush1.msra.mxu0 0.0
    %2995 = vmatprep.subr.mxu0 0.0
    %2996 = vmatpush1.msra.mxu0 0.0
    %2997 = vmatprep.subr.mxu0 0.0
    %2998 = vmatpush1.msra.mxu0 0.0
    %2999 = vmatprep.subr.mxu0 0.0
    %3000 = vmatpush1.msra.mxu0 0.0
    %3001 = vmatprep.subr.mxu0 0.0
    %3002 = vmatpush1.msra.mxu0 0.0
    %3003 = vmatprep.subr.mxu0 0.0
    %3004 = vmatpush1.msra.mxu0 0.0
    %3005 = vmatprep.subr.mxu0 0.0
    %3006 = vmatpush1.msra.mxu0 0.0
    %3007 = vmatprep.subr.mxu0 0.0
    %3008 = vmatpush1.msra.mxu0 0.0
    %3009 = vmatprep.subr.mxu0 0.0
    %3010 = vmatpush1.msra.mxu0 0.0
    %3011 = vmatprep.mubr.f32.mxu0 0.0
    %3012 = vmatmul.mubr.f32.gmra.mrb[0].mxu0 %v2942
    %v3013 = vpop.f32.mrb[0].mxu0
    %v3014 = vadd.f32 %v2940, %v3013
    %v3015 = vpop.f32.mrb[0].mxu0
    %3016 = vmatprep.mubr.f32.mxu0 0.0
    %3017 = vmatmul.mubr.f32.gmra.mrb[0].mxu0 %v2945
    %v3018 = vpop.f32.mrb[0].mxu0
    %v3019 = vadd.f32 %v2940, %v3018
    %v3020 = vpop.f32.mrb[0].mxu0
    %3021 = vdwg.mxu0
    %v3022 = vmax.f32 %v3014, 0.0
    %v3023 = vmax.f32 %v3019, 0.0
    %s3024 = scalar_lea.vmem %s5, 64
    %v3025 = vld [vmem:[%s3024] sm:$0xff]
    %v3026 = vld [vmem:[%s3024 + $0x8] sm:$0xff]
    %v3027 = vld [vmem:[%s3024 + $0x10] sm:$0xff]
    %v3028 = vld [vmem:[%s3024 + $0x18] sm:$0xff]
    %v3029 = vld [vmem:[%s3024 + $0x20] sm:$0xff]
    %v3030 = vld [vmem:[%s3024 + $0x28] sm:$0xff]
    %v3031 = vld [vmem:[%s3024 + $0x30] sm:$0xff]
    %v3032 = vld [vmem:[%s3024 + $0x38] sm:$0xff]
    %v3033 = vlaneseq
    %v3034 = vshrl.u32 %v3033, 7
    %v3035 = vsub.s32 3, %v3034
    %v3036 = vrot.slane %v1664, %v3035
    %v3038 = vsel %vm43, %v3022, 0
    %v3041 = vsel %vm43, %v3023, 0
    %3043 = vmatprep.subr.mxu0 0.0
    %3044 = vmatpush1.msra.mxu0 %v3025
    %3045 = vmatprep.subr.mxu0 0.0
    %3046 = vmatpush1.msra.mxu0 %v3026
    %3047 = vmatprep.subr.mxu0 0.0
    %3048 = vmatpush1.msra.mxu0 %v3027
    %3049 = vmatprep.subr.mxu0 0.0
    %3050 = vmatpush1.msra.mxu0 %v3028
    %3051 = vmatprep.subr.mxu0 0.0
    %3052 = vmatpush1.msra.mxu0 %v3029
    %3053 = vmatprep.subr.mxu0 0.0
    %3054 = vmatpush1.msra.mxu0 %v3030
    %3055 = vmatprep.subr.mxu0 0.0
    %3056 = vmatpush1.msra.mxu0 %v3031
    %3057 = vmatprep.subr.mxu0 0.0
    %3058 = vmatpush1.msra.mxu0 %v3032
    %3059 = vmatprep.subr.mxu0 0.0
    %3060 = vmatpush1.msra.mxu0 0.0
    %3061 = vmatprep.subr.mxu0 0.0
    %3062 = vmatpush1.msra.mxu0 0.0
    %3063 = vmatprep.subr.mxu0 0.0
    %3064 = vmatpush1.msra.mxu0 0.0
    %3065 = vmatprep.subr.mxu0 0.0
    %3066 = vmatpush1.msra.mxu0 0.0
    %3067 = vmatprep.subr.mxu0 0.0
    %3068 = vmatpush1.msra.mxu0 0.0
    %3069 = vmatprep.subr.mxu0 0.0
    %3070 = vmatpush1.msra.mxu0 0.0
    %3071 = vmatprep.subr.mxu0 0.0
    %3072 = vmatpush1.msra.mxu0 0.0
    %3073 = vmatprep.subr.mxu0 0.0
    %3074 = vmatpush1.msra.mxu0 0.0
    %3075 = vmatprep.subr.mxu0 0.0
    %3076 = vmatpush1.msra.mxu0 0.0
    %3077 = vmatprep.subr.mxu0 0.0
    %3078 = vmatpush1.msra.mxu0 0.0
    %3079 = vmatprep.subr.mxu0 0.0
    %3080 = vmatpush1.msra.mxu0 0.0
    %3081 = vmatprep.subr.mxu0 0.0
    %3082 = vmatpush1.msra.mxu0 0.0
    %3083 = vmatprep.subr.mxu0 0.0
    %3084 = vmatpush1.msra.mxu0 0.0
    %3085 = vmatprep.subr.mxu0 0.0
    %3086 = vmatpush1.msra.mxu0 0.0
    %3087 = vmatprep.subr.mxu0 0.0
    %3088 = vmatpush1.msra.mxu0 0.0
    %3089 = vmatprep.subr.mxu0 0.0
    %3090 = vmatpush1.msra.mxu0 0.0
    %3091 = vmatprep.subr.mxu0 0.0
    %3092 = vmatpush1.msra.mxu0 0.0
    %3093 = vmatprep.subr.mxu0 0.0
    %3094 = vmatpush1.msra.mxu0 0.0
    %3095 = vmatprep.subr.mxu0 0.0
    %3096 = vmatpush1.msra.mxu0 0.0
    %3097 = vmatprep.subr.mxu0 0.0
    %3098 = vmatpush1.msra.mxu0 0.0
    %3099 = vmatprep.subr.mxu0 0.0
    %3100 = vmatpush1.msra.mxu0 0.0
    %3101 = vmatprep.subr.mxu0 0.0
    %3102 = vmatpush1.msra.mxu0 0.0
    %3103 = vmatprep.subr.mxu0 0.0
    %3104 = vmatpush1.msra.mxu0 0.0
    %3105 = vmatprep.subr.mxu0 0.0
    %3106 = vmatpush1.msra.mxu0 0.0
    %3107 = vmatprep.mubr.f32.mxu0 0.0
    %3108 = vmatmul.mubr.f32.gmra.mrb[0].mxu0 %v3038
    %v3109 = vpop.f32.mrb[0].mxu0
    %v3110 = vadd.f32 %v3036, %v3109
    %v3111 = vpop.f32.mrb[0].mxu0
    %3112 = vmatprep.mubr.f32.mxu0 0.0
    %3113 = vmatmul.mubr.f32.gmra.mrb[0].mxu0 %v3041
    %v3114 = vpop.f32.mrb[0].mxu0
    %v3115 = vadd.f32 %v3036, %v3114
    %v3116 = vpop.f32.mrb[0].mxu0
    %3117 = vdwg.mxu0
    %v3118 = vadd.f32 %v2930, %v3110
    %v3119 = vadd.f32 %v2931, %v3115
    %v3120 = vsel %vm178, %v3118, 0.0
    %3121 = vadd.xlane.f32.xlu0 %v3120
    %v3122 = vpop.xlane.xlu0 %3121
    %v3123 = vsel %vm178, %v3119, 0.0
    %3124 = vadd.xlane.f32.xlu0 %v3123
    %v3125 = vpop.xlane.xlu0 %3124
    %v3126 = vmul.f32 %v3122, %v1406
    %v3127 = vmul.f32 %v3125, %v1406
    %v3128 = vsub.f32 %v3118, %v3126
    %v3129 = vsub.f32 %v3119, %v3127
    %v3130 = vmul.f32 %v3128, %v3128
    %v3131 = vmul.f32 %v3129, %v3129
    %v3132 = vsel %vm178, %v3130, 0.0
    %3133 = vadd.xlane.f32.xlu0 %v3132
    %v3134 = vpop.xlane.xlu0 %3133
    %v3135 = vsel %vm178, %v3131, 0.0
    %3136 = vadd.xlane.f32.xlu0 %v3135
    %v3137 = vpop.xlane.xlu0 %3136
    %v3138 = vmul.f32 %v3134, %v1406
    %v3139 = vmul.f32 %v3137, %v1406
    %v3140 = vadd.f32 %v3138, 1e-05
    %v3141 = vadd.f32 %v3139, 1e-05
    %v3142 = vrsqrt.pop %v3140
    %v3143 = vrsqrt.pop %v3141
    %v3144 = vmul.f32 %v3128, %v3142
    %v3145 = vmul.f32 %v3129, %v3143
    %v3146 = vlaneseq
    %v3147 = vshrl.u32 %v3146, 7
    %v3148 = vsub.s32 6, %v3147
    %v3149 = vrot.slane %v1664, %v3148
    %v3150 = vmul.f32 %v3144, %v3149
    %v3151 = vmul.f32 %v3145, %v3149
    %v3152 = vlaneseq
    %v3153 = vshrl.u32 %v3152, 7
    %v3154 = vsub.s32 7, %v3153
    %v3155 = vrot.slane %v1664, %v3154
    %v3156 = vadd.f32 %v3150, %v3155
    %v3157 = vadd.f32 %v3151, %v3155
    %3158 = vst.msk [vmem:[#allocation2] sm:$0xff] %vm178, %v3156
    %3159 = vst.msk [vmem:[#allocation2 + $0x8] sm:$0xff] %vm178, %v3157
    // Predicated region
    $region30: #{internal_temporal_relation.1} parent=1 // pred_check
      _
    $region31: #{internal_temporal_relation.1} parent=1 // pred_check_branch
      %3161 = sbr.rel (0) target = $region33
    $region32: #{internal_temporal_relation.1} parent=1 // pred_region
      %s3163 = ssub.s32 256, 256
      %3164 = vsyncadd [#allocation3], %s3163
      %s3165 = sshll.u32 [#allocation2], 4
      %s3166 = int_to_ptr.vmem [resolvable:$true] %s3165
      %3171 = dma.vmem_to_hbm [thread:$0]  %s3166, 256, %s7, [#allocation3], 128, 128, 8
    $region33: #{internal_temporal_relation.1} parent=1 // pred_fallthru
      _
    // Predicated region
    $region34: #{internal_temporal_relation.1} parent=1 // pred_check
      _
    $region35: #{internal_temporal_relation.1} parent=1 // pred_check_branch
      %3173 = sbr.rel (0) target = $region37
    $region36: #{internal_temporal_relation.1} parent=1 // pred_region
      %3174 = dma.done [#allocation3], 256
    $region37: #{internal_temporal_relation.1} parent=1 // pred_fallthru
      _
    %3175 = vsyncpa [#allocation3], 1

</llo_original>
